<compile_context>
chip_gen: v5e
topology: v5e:2x2
jax: 0.10.0
libtpu: 0.0.40
codegen_flags: <defaults>
</compile_context>

<pallas_src>
import jax
import jax.numpy as jnp
from jax import lax
from jax.experimental import pallas as pl
from jax.experimental.pallas import tpu as pltpu  # noqa: F401  (kept for TPU backend import)

# ----------------------- miniature CLIP-ViT config -----------------------
B = 2              # batch
C = 3              # RGB channels (CLIP normalization is per RGB channel)
IMG = 16           # image height/width
PATCH = 8          # patch size
N_PATCH = (IMG // PATCH) ** 2          # 4 patches
SEQ = N_PATCH + 1                      # 5 tokens (CLS + patches)
SEQP = 8                               # SEQ padded to a sublane multiple
D = 32             # hidden size
HEADS = 4
HEAD_DIM = D // HEADS
MLP = 4 * D        # 128
PROJ = 16          # projection dim of visual_projection
LAYERS = 2
EPS = 1e-5

CLIP_MEAN = jnp.array([0.48145466, 0.4578275, 0.40821073], dtype=jnp.float32)
CLIP_STD = jnp.array([0.26862954, 0.26130258, 0.27577711], dtype=jnp.float32)


def _ln(x, g, b):
    mu = jnp.mean(x, axis=-1, keepdims=True)
    var = jnp.mean((x - mu) ** 2, axis=-1, keepdims=True)
    return (x - mu) * lax.rsqrt(var + EPS) * g + b


# --------------------------- fused Pallas kernel --------------------------
def clip_fused_kernel(patches_ref, wp_ref, add_ref,
                      pre_g_ref, pre_b_ref,
                      g1_ref, b1_ref, wq_ref, bq_ref, wk_ref, bk_ref,
                      wv_ref, bv_ref, wo_ref, bo_ref, g2_ref, b2_ref,
                      w1_ref, bm1_ref, w2_ref, bm2_ref,
                      post_g_ref, post_b_ref, wproj_ref,
                      o_ref):
    # 1-3. patch embedding + CLS + position embeddings.
    #      CLIP processor normalization is pre-folded into wp / add table; CLS slot and
    #      padding rows of `patches` are zero, so one matmul + one add assembles all tokens.
    x = jnp.dot(patches_ref[...], wp_ref[...],
                preferred_element_type=jnp.float32) + add_ref[...]      # (B*SEQP, D)

    # 4. pre-layernorm (padded rows are harmless; they are masked out as keys below)
    x = _ln(x, pre_g_ref[...], pre_b_ref[...])

    # key-padding mask bias (remove padded key columns from the softmax)
    col = lax.broadcasted_iota(jnp.int32, (1, SEQP, SEQP), 2)
    neg = jnp.where(col < SEQ, 0.0, -1e30).astype(jnp.float32)

    scale = HEAD_DIM ** -0.5

    # 5. transformer encoder layers (statically unrolled; weights stacked along axis 0)
    for l in range(LAYERS):
        h = _ln(x, g1_ref[l], b1_ref[l])
        q = jnp.dot(h, wq_ref[l], preferred_element_type=jnp.float32) + bq_ref[l]
        k = jnp.dot(h, wk_ref[l], preferred_element_type=jnp.float32) + bk_ref[l]
        v = jnp.dot(h, wv_ref[l], preferred_element_type=jnp.float32) + bv_ref[l]

        q3 = q.reshape(B, SEQP, D) * scale
        k3 = k.reshape(B, SEQP, D)
        v3 = v.reshape(B, SEQP, D)
        wo = wo_ref[l]                                                  # (D, D)

        # per-head attention batched over B; the output projection is applied per head and
        # accumulated, so head outputs never need to be concatenated / stored to scratch.
        attn = jnp.broadcast_to(bo_ref[l], (B * SEQP, D))
        for hh in range(HEADS):
            sl = slice(hh * HEAD_DIM, (hh + 1) * HEAD_DIM)
            s = jnp.einsum('bqd,bkd->bqk', q3[:, :, sl], k3[:, :, sl],
                           preferred_element_type=jnp.float32) + neg    # (B, SEQP, SEQP)
            s = s - jnp.max(s, axis=-1, keepdims=True)
            p = jnp.exp(s)
            p = p * pl.reciprocal(jnp.sum(p, axis=-1, keepdims=True), approx=True)
            ctx = jnp.einsum('bqk,bkd->bqd', p, v3[:, :, sl],
                             preferred_element_type=jnp.float32)        # (B, SEQP, hd)
            attn = attn + jnp.dot(ctx.reshape(B * SEQP, HEAD_DIM), wo[sl, :],
                                  preferred_element_type=jnp.float32)
        x = x + attn

        h2 = _ln(x, g2_ref[l], b2_ref[l])
        m = jnp.dot(h2, w1_ref[l], preferred_element_type=jnp.float32) + bm1_ref[l]
        m = m * jax.nn.sigmoid(1.702 * m)                               # quick_gelu
        m = jnp.dot(m, w2_ref[l], preferred_element_type=jnp.float32) + bm2_ref[l]
        x = x + m

    # 6. pooled CLS token -> post_layernorm -> visual_projection (no bias)
    pooled = x.reshape(B, SEQP, D)[:, 0:1, :].reshape(B, D)
    pooled = _ln(pooled, post_g_ref[...], post_b_ref[...])
    o_ref[...] = jnp.dot(pooled, wproj_ref[...], preferred_element_type=jnp.float32)


# ------------------------------ parameters -------------------------------
# TODO(synk): pretrained 'openai/clip-vit-large-patch14-336' weights / full-size config are
# not loadable here; miniature random weights stand in with identical forward structure.
def init_params(key):
    ks = iter(jax.random.split(key, 64))
    nrm = lambda shape, s=0.02: (s * jax.random.normal(next(ks), shape)).astype(jnp.float32)
    p = {
        # Conv2d(C, D, kernel=PATCH, stride=PATCH, bias=False) weight, pre-flattened to (C*P*P, D)
        "w_patch": nrm((C * PATCH * PATCH, D)),
        "class_emb": nrm((D,)),
        "pos_emb": nrm((SEQ, D)),
        "pre_g": jnp.ones((1, D), jnp.float32), "pre_b": jnp.zeros((1, D), jnp.float32),
        "post_g": jnp.ones((1, D), jnp.float32), "post_b": jnp.zeros((1, D), jnp.float32),
        "w_proj": nrm((D, PROJ)),
        "layers": [],
    }
    for _ in range(LAYERS):
        p["layers"].append({
            "g1": jnp.ones((1, D), jnp.float32), "b1": jnp.zeros((1, D), jnp.float32),
            "wq": nrm((D, D)), "bq": jnp.zeros((1, D), jnp.float32),
            "wk": nrm((D, D)), "bk": jnp.zeros((1, D), jnp.float32),
            "wv": nrm((D, D)), "bv": jnp.zeros((1, D), jnp.float32),
            "wo": nrm((D, D)), "bo": jnp.zeros((1, D), jnp.float32),
            "g2": jnp.ones((1, D), jnp.float32), "b2": jnp.zeros((1, D), jnp.float32),
            "w1": nrm((D, MLP)), "bm1": jnp.zeros((1, MLP), jnp.float32),
            "w2": nrm((MLP, D)), "bm2": jnp.zeros((1, D), jnp.float32),
        })
    return p


def prepare_kernel_params(params):
    # Fold the CLIP processor normalization into the patch-embedding weight (exact math):
    #   ((x - mean) * invstd) @ W  ==  x @ (invstd[:,None] * W)  +  (-(mean*invstd) @ W)
    mean_vec = jnp.broadcast_to(CLIP_MEAN[:, None, None], (C, PATCH, PATCH)).reshape(-1)
    invstd_vec = jnp.broadcast_to((1.0 / CLIP_STD)[:, None, None], (C, PATCH, PATCH)).reshape(-1)
    w_fold = params["w_patch"] * invstd_vec[:, None]                    # (C*P*P, D)
    b_fold = -(mean_vec * invstd_vec)[None, :] @ params["w_patch"]      # (1, D)

    # One additive table per token row: CLS embedding + pos[0] for the CLS row,
    # pos[t] + folded-norm bias for patch rows, zeros for padding rows.
    add_one = jnp.zeros((SEQP, D), jnp.float32)
    add_one = add_one.at[0, :].set(params["class_emb"] + params["pos_emb"][0])
    add_one = add_one.at[1:SEQ, :].set(params["pos_emb"][1:SEQ] + b_fold[0])
    add_table = jnp.tile(add_one, (B, 1))                               # (B*SEQP, D)

    stack = lambda k: jnp.stack([lp[k] for lp in params["layers"]])
    return dict(
        patches_w=w_fold, add_table=add_table,
        pre_g=params["pre_g"], pre_b=params["pre_b"],
        g1=stack("g1"), b1=stack("b1"),
        wq=stack("wq"), bq=stack("bq"), wk=stack("wk"), bk=stack("bk"),
        wv=stack("wv"), bv=stack("bv"), wo=stack("wo"), bo=stack("bo"),
        g2=stack("g2"), b2=stack("b2"),
        w1=stack("w1"), bm1=stack("bm1"), w2=stack("w2"), bm2=stack("bm2"),
        post_g=params["post_g"], post_b=params["post_b"], w_proj=params["w_proj"],
    )


# ------------------------------ forward ----------------------------------
def clip_get_image_features(x_nchw, kp):
    # glue: extract non-overlapping patches in (C, ph, pw) order (matches Conv2d weight
    # flattening) and pad each batch block to SEQP rows: row 0 (CLS slot) and rows
    # SEQ..SEQP-1 (padding) are zero, so the in-kernel matmul leaves them zero.
    xb = x_nchw.reshape(B, C, IMG // PATCH, PATCH, IMG // PATCH, PATCH)
    patches = jnp.transpose(xb, (0, 2, 4, 1, 3, 5)).reshape(B, N_PATCH, C * PATCH * PATCH)
    patches = jnp.pad(patches, ((0, 0), (1, SEQP - 1 - N_PATCH), (0, 0)))
    patches = patches.reshape(B * SEQP, C * PATCH * PATCH)

    # One fused pallas_call (no grid): all weights and the hidden state stay resident in
    # VMEM (total << 1 MiB); only the final (B, PROJ) features go back to HBM.
    return pl.pallas_call(
        clip_fused_kernel,
        out_shape=jax.ShapeDtypeStruct((B, PROJ), jnp.float32),
    )(patches, kp["patches_w"], kp["add_table"],
      kp["pre_g"], kp["pre_b"],
      kp["g1"], kp["b1"], kp["wq"], kp["bq"], kp["wk"], kp["bk"],
      kp["wv"], kp["bv"], kp["wo"], kp["bo"], kp["g2"], kp["b2"],
      kp["w1"], kp["bm1"], kp["w2"], kp["bm2"],
      kp["post_g"], kp["post_b"], kp["w_proj"])


if __name__ == "__main__":
    key = jax.random.PRNGKey(0)
    k_img, k_par = jax.random.split(key)
    # images in [0, 1] (processor is called with do_rescale=False, so inputs are already floats)
    x = jax.random.uniform(k_img, (B, C, IMG, IMG), dtype=jnp.float32)
    params = init_params(k_par)
    kp = prepare_kernel_params(params)

    feats = jax.jit(clip_get_image_features)(x, kp)
    jax.block_until_ready(feats)
    assert feats.shape == (B, PROJ) and feats.dtype == jnp.float32
    print("KERNEL_OK")
</pallas_src>

<mosaic_0001>
module attributes {stable_mosaic.version = 11 : i64} {
  func.func @clip_fused_kernel(%arg0: memref<16x192xf32, #tpu.memory_space<vmem>>, %arg1: memref<192x32xf32, #tpu.memory_space<vmem>>, %arg2: memref<16x32xf32, #tpu.memory_space<vmem>>, %arg3: memref<1x32xf32, #tpu.memory_space<vmem>>, %arg4: memref<1x32xf32, #tpu.memory_space<vmem>>, %arg5: memref<2x1x32xf32, #tpu.memory_space<vmem>>, %arg6: memref<2x1x32xf32, #tpu.memory_space<vmem>>, %arg7: memref<2x32x32xf32, #tpu.memory_space<vmem>>, %arg8: memref<2x1x32xf32, #tpu.memory_space<vmem>>, %arg9: memref<2x32x32xf32, #tpu.memory_space<vmem>>, %arg10: memref<2x1x32xf32, #tpu.memory_space<vmem>>, %arg11: memref<2x32x32xf32, #tpu.memory_space<vmem>>, %arg12: memref<2x1x32xf32, #tpu.memory_space<vmem>>, %arg13: memref<2x32x32xf32, #tpu.memory_space<vmem>>, %arg14: memref<2x1x32xf32, #tpu.memory_space<vmem>>, %arg15: memref<2x1x32xf32, #tpu.memory_space<vmem>>, %arg16: memref<2x1x32xf32, #tpu.memory_space<vmem>>, %arg17: memref<2x32x128xf32, #tpu.memory_space<vmem>>, %arg18: memref<2x1x128xf32, #tpu.memory_space<vmem>>, %arg19: memref<2x128x32xf32, #tpu.memory_space<vmem>>, %arg20: memref<2x1x32xf32, #tpu.memory_space<vmem>>, %arg21: memref<1x32xf32, #tpu.memory_space<vmem>>, %arg22: memref<1x32xf32, #tpu.memory_space<vmem>>, %arg23: memref<32x16xf32, #tpu.memory_space<vmem>>, %arg24: memref<2x16xf32, #tpu.memory_space<vmem>>) attributes {dimension_semantics = [], scalar_prefetch = 0 : i64, scratch_operands = 0 : i64, tpu.core_type = #tpu.core_type<tc>} {
    %c0 = arith.constant 0 : index
    %c0_0 = arith.constant 0 : index
    %0 = vector.load %arg0[%c0, %c0_0] : memref<16x192xf32, #tpu.memory_space<vmem>>, vector<16x192xf32>
    %c0_1 = arith.constant 0 : index
    %c0_2 = arith.constant 0 : index
    %1 = vector.load %arg1[%c0_1, %c0_2] : memref<192x32xf32, #tpu.memory_space<vmem>>, vector<192x32xf32>
    %cst = arith.constant dense<0.000000e+00> : vector<16x32xf32>
    %2 = tpu.matmul %0, %1, %cst {dimension_numbers = #tpu.dot_dimension_numbers<[1], [0], [0], [1], [0, 0, 1, 1], [], []>} : vector<16x192xf32>, vector<192x32xf32>, vector<16x32xf32> -> vector<16x32xf32>
    %c0_3 = arith.constant 0 : index
    %c0_4 = arith.constant 0 : index
    %3 = vector.load %arg2[%c0_3, %c0_4] : memref<16x32xf32, #tpu.memory_space<vmem>>, vector<16x32xf32>
    %4 = arith.addf %2, %3 : vector<16x32xf32>
    %c0_5 = arith.constant 0 : index
    %c0_6 = arith.constant 0 : index
    %5 = vector.load %arg3[%c0_5, %c0_6] : memref<1x32xf32, #tpu.memory_space<vmem>>, vector<1x32xf32>
    %c0_7 = arith.constant 0 : index
    %c0_8 = arith.constant 0 : index
    %6 = vector.load %arg4[%c0_7, %c0_8] : memref<1x32xf32, #tpu.memory_space<vmem>>, vector<1x32xf32>
    %cst_9 = arith.constant dense<0.000000e+00> : vector<16xf32>
    %7 = vector.multi_reduction <add>, %4, %cst_9 [1] : vector<16x32xf32> to vector<16xf32>
    %8 = vector.shape_cast %7 : vector<16xf32> to vector<16x1xf32>
    %cst_10 = arith.constant 3.200000e+01 : f32
    %9 = vector.broadcast %cst_10 : f32 to vector<16x1xf32>
    %10 = arith.divf %8, %9 : vector<16x1xf32>
    %11 = vector.broadcast %10 : vector<16x1xf32> to vector<16x32xf32>
    %12 = arith.subf %4, %11 : vector<16x32xf32>
    %13 = arith.mulf %12, %12 : vector<16x32xf32>
    %cst_11 = arith.constant dense<0.000000e+00> : vector<16xf32>
    %14 = vector.multi_reduction <add>, %13, %cst_11 [1] : vector<16x32xf32> to vector<16xf32>
    %15 = vector.shape_cast %14 : vector<16xf32> to vector<16x1xf32>
    %cst_12 = arith.constant 3.200000e+01 : f32
    %16 = vector.broadcast %cst_12 : f32 to vector<16x1xf32>
    %17 = arith.divf %15, %16 : vector<16x1xf32>
    %18 = vector.broadcast %10 : vector<16x1xf32> to vector<16x32xf32>
    %19 = arith.subf %4, %18 : vector<16x32xf32>
    %cst_13 = arith.constant 9.99999974E-6 : f32
    %20 = vector.broadcast %cst_13 : f32 to vector<16x1xf32>
    %21 = arith.addf %17, %20 : vector<16x1xf32>
    %22 = math.rsqrt %21 : vector<16x1xf32>
    %23 = vector.broadcast %22 : vector<16x1xf32> to vector<16x32xf32>
    %24 = arith.mulf %19, %23 : vector<16x32xf32>
    %25 = vector.broadcast %5 : vector<1x32xf32> to vector<16x32xf32>
    %26 = arith.mulf %24, %25 : vector<16x32xf32>
    %27 = vector.broadcast %6 : vector<1x32xf32> to vector<16x32xf32>
    %28 = arith.addf %26, %27 : vector<16x32xf32>
    %29 = tpu.iota {dimensions = array<i32: 2>} : vector<1x8x8xi32>
    %c5_i32 = arith.constant 5 : i32
    %30 = vector.broadcast %c5_i32 : i32 to vector<1x8x8xi32>
    %31 = arith.cmpi slt, %29, %30 : vector<1x8x8xi32>
    %cst_14 = arith.constant 0.000000e+00 : f32
    %cst_15 = arith.constant -1.000000e+30 : f32
    %32 = vector.broadcast %cst_14 : f32 to vector<1x8x8xf32>
    %33 = vector.broadcast %cst_15 : f32 to vector<1x8x8xf32>
    %34 = arith.select %31, %32, %33 : vector<1x8x8xi1>, vector<1x8x8xf32>
    %c0_16 = arith.constant 0 : index
    %c0_17 = arith.constant 0 : index
    %c0_18 = arith.constant 0 : index
    %35 = vector.load %arg5[%c0_16, %c0_17, %c0_18] : memref<2x1x32xf32, #tpu.memory_space<vmem>>, vector<1x1x32xf32>
    %36 = vector.shape_cast %35 : vector<1x1x32xf32> to vector<1x32xf32>
    %c0_19 = arith.constant 0 : index
    %c0_20 = arith.constant 0 : index
    %c0_21 = arith.constant 0 : index
    %37 = vector.load %arg6[%c0_19, %c0_20, %c0_21] : memref<2x1x32xf32, #tpu.memory_space<vmem>>, vector<1x1x32xf32>
    %38 = vector.shape_cast %37 : vector<1x1x32xf32> to vector<1x32xf32>
    %cst_22 = arith.constant dense<0.000000e+00> : vector<16xf32>
    %39 = vector.multi_reduction <add>, %28, %cst_22 [1] : vector<16x32xf32> to vector<16xf32>
    %40 = vector.shape_cast %39 : vector<16xf32> to vector<16x1xf32>
    %cst_23 = arith.constant 3.200000e+01 : f32
    %41 = vector.broadcast %cst_23 : f32 to vector<16x1xf32>
    %42 = arith.divf %40, %41 : vector<16x1xf32>
    %43 = vector.broadcast %42 : vector<16x1xf32> to vector<16x32xf32>
    %44 = arith.subf %28, %43 : vector<16x32xf32>
    %45 = arith.mulf %44, %44 : vector<16x32xf32>
    %cst_24 = arith.constant dense<0.000000e+00> : vector<16xf32>
    %46 = vector.multi_reduction <add>, %45, %cst_24 [1] : vector<16x32xf32> to vector<16xf32>
    %47 = vector.shape_cast %46 : vector<16xf32> to vector<16x1xf32>
    %cst_25 = arith.constant 3.200000e+01 : f32
    %48 = vector.broadcast %cst_25 : f32 to vector<16x1xf32>
    %49 = arith.divf %47, %48 : vector<16x1xf32>
    %50 = vector.broadcast %42 : vector<16x1xf32> to vector<16x32xf32>
    %51 = arith.subf %28, %50 : vector<16x32xf32>
    %cst_26 = arith.constant 9.99999974E-6 : f32
    %52 = vector.broadcast %cst_26 : f32 to vector<16x1xf32>
    %53 = arith.addf %49, %52 : vector<16x1xf32>
    %54 = math.rsqrt %53 : vector<16x1xf32>
    %55 = vector.broadcast %54 : vector<16x1xf32> to vector<16x32xf32>
    %56 = arith.mulf %51, %55 : vector<16x32xf32>
    %57 = vector.broadcast %36 : vector<1x32xf32> to vector<16x32xf32>
    %58 = arith.mulf %56, %57 : vector<16x32xf32>
    %59 = vector.broadcast %38 : vector<1x32xf32> to vector<16x32xf32>
    %60 = arith.addf %58, %59 : vector<16x32xf32>
    %c0_27 = arith.constant 0 : index
    %c0_28 = arith.constant 0 : index
    %c0_29 = arith.constant 0 : index
    %61 = vector.load %arg7[%c0_27, %c0_28, %c0_29] : memref<2x32x32xf32, #tpu.memory_space<vmem>>, vector<1x32x32xf32>
    %62 = vector.shape_cast %61 : vector<1x32x32xf32> to vector<32x32xf32>
    %cst_30 = arith.constant dense<0.000000e+00> : vector<16x32xf32>
    %63 = tpu.matmul %60, %62, %cst_30 {dimension_numbers = #tpu.dot_dimension_numbers<[1], [0], [0], [1], [0, 0, 1, 1], [], []>} : vector<16x32xf32>, vector<32x32xf32>, vector<16x32xf32> -> vector<16x32xf32>
    %c0_31 = arith.constant 0 : index
    %c0_32 = arith.constant 0 : index
    %c0_33 = arith.constant 0 : index
    %64 = vector.load %arg8[%c0_31, %c0_32, %c0_33] : memref<2x1x32xf32, #tpu.memory_space<vmem>>, vector<1x1x32xf32>
    %65 = vector.shape_cast %64 : vector<1x1x32xf32> to vector<1x32xf32>
    %66 = vector.broadcast %65 : vector<1x32xf32> to vector<16x32xf32>
    %67 = arith.addf %63, %66 : vector<16x32xf32>
    %c0_34 = arith.constant 0 : index
    %c0_35 = arith.constant 0 : index
    %c0_36 = arith.constant 0 : index
    %68 = vector.load %arg9[%c0_34, %c0_35, %c0_36] : memref<2x32x32xf32, #tpu.memory_space<vmem>>, vector<1x32x32xf32>
    %69 = vector.shape_cast %68 : vector<1x32x32xf32> to vector<32x32xf32>
    %cst_37 = arith.constant dense<0.000000e+00> : vector<16x32xf32>
    %70 = tpu.matmul %60, %69, %cst_37 {dimension_numbers = #tpu.dot_dimension_numbers<[1], [0], [0], [1], [0, 0, 1, 1], [], []>} : vector<16x32xf32>, vector<32x32xf32>, vector<16x32xf32> -> vector<16x32xf32>
    %c0_38 = arith.constant 0 : index
    %c0_39 = arith.constant 0 : index
    %c0_40 = arith.constant 0 : index
    %71 = vector.load %arg10[%c0_38, %c0_39, %c0_40] : memref<2x1x32xf32, #tpu.memory_space<vmem>>, vector<1x1x32xf32>
    %72 = vector.shape_cast %71 : vector<1x1x32xf32> to vector<1x32xf32>
    %73 = vector.broadcast %72 : vector<1x32xf32> to vector<16x32xf32>
    %74 = arith.addf %70, %73 : vector<16x32xf32>
    %c0_41 = arith.constant 0 : index
    %c0_42 = arith.constant 0 : index
    %c0_43 = arith.constant 0 : index
    %75 = vector.load %arg11[%c0_41, %c0_42, %c0_43] : memref<2x32x32xf32, #tpu.memory_space<vmem>>, vector<1x32x32xf32>
    %76 = vector.shape_cast %75 : vector<1x32x32xf32> to vector<32x32xf32>
    %cst_44 = arith.constant dense<0.000000e+00> : vector<16x32xf32>
    %77 = tpu.matmul %60, %76, %cst_44 {dimension_numbers = #tpu.dot_dimension_numbers<[1], [0], [0], [1], [0, 0, 1, 1], [], []>} : vector<16x32xf32>, vector<32x32xf32>, vector<16x32xf32> -> vector<16x32xf32>
    %c0_45 = arith.constant 0 : index
    %c0_46 = arith.constant 0 : index
    %c0_47 = arith.constant 0 : index
    %78 = vector.load %arg12[%c0_45, %c0_46, %c0_47] : memref<2x1x32xf32, #tpu.memory_space<vmem>>, vector<1x1x32xf32>
    %79 = vector.shape_cast %78 : vector<1x1x32xf32> to vector<1x32xf32>
    %80 = vector.broadcast %79 : vector<1x32xf32> to vector<16x32xf32>
    %81 = arith.addf %77, %80 : vector<16x32xf32>
    %82 = vector.shape_cast %67 : vector<16x32xf32> to vector<2x8x32xf32>
    %cst_48 = arith.constant 0.353553385 : f32
    %83 = vector.broadcast %cst_48 : f32 to vector<2x8x32xf32>
    %84 = arith.mulf %82, %83 : vector<2x8x32xf32>
    %85 = vector.shape_cast %74 : vector<16x32xf32> to vector<2x8x32xf32>
    %86 = vector.shape_cast %81 : vector<16x32xf32> to vector<2x8x32xf32>
    %c0_49 = arith.constant 0 : index
    %c0_50 = arith.constant 0 : index
    %c0_51 = arith.constant 0 : index
    %87 = vector.load %arg13[%c0_49, %c0_50, %c0_51] : memref<2x32x32xf32, #tpu.memory_space<vmem>>, vector<1x32x32xf32>
    %88 = vector.shape_cast %87 : vector<1x32x32xf32> to vector<32x32xf32>
    %c0_52 = arith.constant 0 : index
    %c0_53 = arith.constant 0 : index
    %c0_54 = arith.constant 0 : index
    %89 = vector.load %arg14[%c0_52, %c0_53, %c0_54] : memref<2x1x32xf32, #tpu.memory_space<vmem>>, vector<1x1x32xf32>
    %90 = vector.shape_cast %89 : vector<1x1x32xf32> to vector<1x32xf32>
    %91 = vector.shape_cast %90 : vector<1x32xf32> to vector<1x32xf32>
    %92 = vector.broadcast %91 : vector<1x32xf32> to vector<16x32xf32>
    %93 = vector.extract_strided_slice %84 {offsets = [0, 0, 0], sizes = [2, 8, 8], strides = [1, 1, 1]} : vector<2x8x32xf32> to vector<2x8x8xf32>
    %94 = vector.extract_strided_slice %85 {offsets = [0, 0, 0], sizes = [2, 8, 8], strides = [1, 1, 1]} : vector<2x8x32xf32> to vector<2x8x8xf32>
    "tpu.trace_start"() <{level = 10 : i32, message = "bqd,bkd->bqk"}> : () -> ()
    %cst_55 = arith.constant dense<0.000000e+00> : vector<2x8x8xf32>
    %95 = tpu.matmul %93, %94, %cst_55 {dimension_numbers = #tpu.dot_dimension_numbers<[2], [2], [1], [1], [0, 0, 0, 1, 1, 1], [0], [0]>} : vector<2x8x8xf32>, vector<2x8x8xf32>, vector<2x8x8xf32> -> vector<2x8x8xf32>
    "tpu.trace_stop"() : () -> ()
    %96 = vector.broadcast %34 : vector<1x8x8xf32> to vector<2x8x8xf32>
    %97 = arith.addf %95, %96 : vector<2x8x8xf32>
    %cst_56 = arith.constant dense<0xFF800000> : vector<2x8xf32>
    %98 = vector.multi_reduction <maximumf>, %97, %cst_56 [2] : vector<2x8x8xf32> to vector<2x8xf32>
    %99 = vector.shape_cast %98 : vector<2x8xf32> to vector<2x8x1xf32>
    %100 = vector.broadcast %99 : vector<2x8x1xf32> to vector<2x8x8xf32>
    %101 = arith.subf %97, %100 : vector<2x8x8xf32>
    %102 = math.exp %101 : vector<2x8x8xf32>
    %cst_57 = arith.constant dense<0.000000e+00> : vector<2x8xf32>
    %103 = vector.multi_reduction <add>, %102, %cst_57 [2] : vector<2x8x8xf32> to vector<2x8xf32>
    %104 = vector.shape_cast %103 : vector<2x8xf32> to vector<2x8x1xf32>
    %105 = tpu.reciprocal %104 {approx = true} : vector<2x8x1xf32> -> vector<2x8x1xf32>
    %106 = vector.broadcast %105 : vector<2x8x1xf32> to vector<2x8x8xf32>
    %107 = arith.mulf %102, %106 : vector<2x8x8xf32>
    %108 = vector.extract_strided_slice %86 {offsets = [0, 0, 0], sizes = [2, 8, 8], strides = [1, 1, 1]} : vector<2x8x32xf32> to vector<2x8x8xf32>
    "tpu.trace_start"() <{level = 10 : i32, message = "bqk,bkd->bqd"}> : () -> ()
    %cst_58 = arith.constant dense<0.000000e+00> : vector<2x8x8xf32>
    %109 = tpu.matmul %107, %108, %cst_58 {dimension_numbers = #tpu.dot_dimension_numbers<[2], [1], [1], [2], [0, 0, 0, 1, 1, 2], [0], [0]>} : vector<2x8x8xf32>, vector<2x8x8xf32>, vector<2x8x8xf32> -> vector<2x8x8xf32>
    "tpu.trace_stop"() : () -> ()
    %110 = vector.shape_cast %109 : vector<2x8x8xf32> to vector<16x8xf32>
    %111 = vector.extract_strided_slice %88 {offsets = [0, 0], sizes = [8, 32], strides = [1, 1]} : vector<32x32xf32> to vector<8x32xf32>
    %cst_59 = arith.constant dense<0.000000e+00> : vector<16x32xf32>
    %112 = tpu.matmul %110, %111, %cst_59 {dimension_numbers = #tpu.dot_dimension_numbers<[1], [0], [0], [1], [0, 0, 1, 1], [], []>} : vector<16x8xf32>, vector<8x32xf32>, vector<16x32xf32> -> vector<16x32xf32>
    %113 = arith.addf %92, %112 : vector<16x32xf32>
    %114 = vector.extract_strided_slice %84 {offsets = [0, 0, 8], sizes = [2, 8, 8], strides = [1, 1, 1]} : vector<2x8x32xf32> to vector<2x8x8xf32>
    %115 = vector.extract_strided_slice %85 {offsets = [0, 0, 8], sizes = [2, 8, 8], strides = [1, 1, 1]} : vector<2x8x32xf32> to vector<2x8x8xf32>
    "tpu.trace_start"() <{level = 10 : i32, message = "bqd,bkd->bqk"}> : () -> ()
    %cst_60 = arith.constant dense<0.000000e+00> : vector<2x8x8xf32>
    %116 = tpu.matmul %114, %115, %cst_60 {dimension_numbers = #tpu.dot_dimension_numbers<[2], [2], [1], [1], [0, 0, 0, 1, 1, 1], [0], [0]>} : vector<2x8x8xf32>, vector<2x8x8xf32>, vector<2x8x8xf32> -> vector<2x8x8xf32>
    "tpu.trace_stop"() : () -> ()
    %117 = vector.broadcast %34 : vector<1x8x8xf32> to vector<2x8x8xf32>
    %118 = arith.addf %116, %117 : vector<2x8x8xf32>
    %cst_61 = arith.constant dense<0xFF800000> : vector<2x8xf32>
    %119 = vector.multi_reduction <maximumf>, %118, %cst_61 [2] : vector<2x8x8xf32> to vector<2x8xf32>
    %120 = vector.shape_cast %119 : vector<2x8xf32> to vector<2x8x1xf32>
    %121 = vector.broadcast %120 : vector<2x8x1xf32> to vector<2x8x8xf32>
    %122 = arith.subf %118, %121 : vector<2x8x8xf32>
    %123 = math.exp %122 : vector<2x8x8xf32>
    %cst_62 = arith.constant dense<0.000000e+00> : vector<2x8xf32>
    %124 = vector.multi_reduction <add>, %123, %cst_62 [2] : vector<2x8x8xf32> to vector<2x8xf32>
    %125 = vector.shape_cast %124 : vector<2x8xf32> to vector<2x8x1xf32>
    %126 = tpu.reciprocal %125 {approx = true} : vector<2x8x1xf32> -> vector<2x8x1xf32>
    %127 = vector.broadcast %126 : vector<2x8x1xf32> to vector<2x8x8xf32>
    %128 = arith.mulf %123, %127 : vector<2x8x8xf32>
    %129 = vector.extract_strided_slice %86 {offsets = [0, 0, 8], sizes = [2, 8, 8], strides = [1, 1, 1]} : vector<2x8x32xf32> to vector<2x8x8xf32>
    "tpu.trace_start"() <{level = 10 : i32, message = "bqk,bkd->bqd"}> : () -> ()
    %cst_63 = arith.constant dense<0.000000e+00> : vector<2x8x8xf32>
    %130 = tpu.matmul %128, %129, %cst_63 {dimension_numbers = #tpu.dot_dimension_numbers<[2], [1], [1], [2], [0, 0, 0, 1, 1, 2], [0], [0]>} : vector<2x8x8xf32>, vector<2x8x8xf32>, vector<2x8x8xf32> -> vector<2x8x8xf32>
    "tpu.trace_stop"() : () -> ()
    %131 = vector.shape_cast %130 : vector<2x8x8xf32> to vector<16x8xf32>
    %132 = vector.extract_strided_slice %88 {offsets = [8, 0], sizes = [8, 32], strides = [1, 1]} : vector<32x32xf32> to vector<8x32xf32>
    %cst_64 = arith.constant dense<0.000000e+00> : vector<16x32xf32>
    %133 = tpu.matmul %131, %132, %cst_64 {dimension_numbers = #tpu.dot_dimension_numbers<[1], [0], [0], [1], [0, 0, 1, 1], [], []>} : vector<16x8xf32>, vector<8x32xf32>, vector<16x32xf32> -> vector<16x32xf32>
    %134 = arith.addf %113, %133 : vector<16x32xf32>
    %135 = vector.extract_strided_slice %84 {offsets = [0, 0, 16], sizes = [2, 8, 8], strides = [1, 1, 1]} : vector<2x8x32xf32> to vector<2x8x8xf32>
    %136 = vector.extract_strided_slice %85 {offsets = [0, 0, 16], sizes = [2, 8, 8], strides = [1, 1, 1]} : vector<2x8x32xf32> to vector<2x8x8xf32>
    "tpu.trace_start"() <{level = 10 : i32, message = "bqd,bkd->bqk"}> : () -> ()
    %cst_65 = arith.constant dense<0.000000e+00> : vector<2x8x8xf32>
    %137 = tpu.matmul %135, %136, %cst_65 {dimension_numbers = #tpu.dot_dimension_numbers<[2], [2], [1], [1], [0, 0, 0, 1, 1, 1], [0], [0]>} : vector<2x8x8xf32>, vector<2x8x8xf32>, vector<2x8x8xf32> -> vector<2x8x8xf32>
    "tpu.trace_stop"() : () -> ()
    %138 = vector.broadcast %34 : vector<1x8x8xf32> to vector<2x8x8xf32>
    %139 = arith.addf %137, %138 : vector<2x8x8xf32>
    %cst_66 = arith.constant dense<0xFF800000> : vector<2x8xf32>
    %140 = vector.multi_reduction <maximumf>, %139, %cst_66 [2] : vector<2x8x8xf32> to vector<2x8xf32>
    %141 = vector.shape_cast %140 : vector<2x8xf32> to vector<2x8x1xf32>
    %142 = vector.broadcast %141 : vector<2x8x1xf32> to vector<2x8x8xf32>
    %143 = arith.subf %139, %142 : vector<2x8x8xf32>
    %144 = math.exp %143 : vector<2x8x8xf32>
    %cst_67 = arith.constant dense<0.000000e+00> : vector<2x8xf32>
    %145 = vector.multi_reduction <add>, %144, %cst_67 [2] : vector<2x8x8xf32> to vector<2x8xf32>
    %146 = vector.shape_cast %145 : vector<2x8xf32> to vector<2x8x1xf32>
    %147 = tpu.reciprocal %146 {approx = true} : vector<2x8x1xf32> -> vector<2x8x1xf32>
    %148 = vector.broadcast %147 : vector<2x8x1xf32> to vector<2x8x8xf32>
    %149 = arith.mulf %144, %148 : vector<2x8x8xf32>
    %150 = vector.extract_strided_slice %86 {offsets = [0, 0, 16], sizes = [2, 8, 8], strides = [1, 1, 1]} : vector<2x8x32xf32> to vector<2x8x8xf32>
    "tpu.trace_start"() <{level = 10 : i32, message = "bqk,bkd->bqd"}> : () -> ()
    %cst_68 = arith.constant dense<0.000000e+00> : vector<2x8x8xf32>
    %151 = tpu.matmul %149, %150, %cst_68 {dimension_numbers = #tpu.dot_dimension_numbers<[2], [1], [1], [2], [0, 0, 0, 1, 1, 2], [0], [0]>} : vector<2x8x8xf32>, vector<2x8x8xf32>, vector<2x8x8xf32> -> vector<2x8x8xf32>
    "tpu.trace_stop"() : () -> ()
    %152 = vector.shape_cast %151 : vector<2x8x8xf32> to vector<16x8xf32>
    %153 = vector.extract_strided_slice %88 {offsets = [16, 0], sizes = [8, 32], strides = [1, 1]} : vector<32x32xf32> to vector<8x32xf32>
    %cst_69 = arith.constant dense<0.000000e+00> : vector<16x32xf32>
    %154 = tpu.matmul %152, %153, %cst_69 {dimension_numbers = #tpu.dot_dimension_numbers<[1], [0], [0], [1], [0, 0, 1, 1], [], []>} : vector<16x8xf32>, vector<8x32xf32>, vector<16x32xf32> -> vector<16x32xf32>
    %155 = arith.addf %134, %154 : vector<16x32xf32>
    %156 = vector.extract_strided_slice %84 {offsets = [0, 0, 24], sizes = [2, 8, 8], strides = [1, 1, 1]} : vector<2x8x32xf32> to vector<2x8x8xf32>
    %157 = vector.extract_strided_slice %85 {offsets = [0, 0, 24], sizes = [2, 8, 8], strides = [1, 1, 1]} : vector<2x8x32xf32> to vector<2x8x8xf32>
    "tpu.trace_start"() <{level = 10 : i32, message = "bqd,bkd->bqk"}> : () -> ()
    %cst_70 = arith.constant dense<0.000000e+00> : vector<2x8x8xf32>
    %158 = tpu.matmul %156, %157, %cst_70 {dimension_numbers = #tpu.dot_dimension_numbers<[2], [2], [1], [1], [0, 0, 0, 1, 1, 1], [0], [0]>} : vector<2x8x8xf32>, vector<2x8x8xf32>, vector<2x8x8xf32> -> vector<2x8x8xf32>
    "tpu.trace_stop"() : () -> ()
    %159 = vector.broadcast %34 : vector<1x8x8xf32> to vector<2x8x8xf32>
    %160 = arith.addf %158, %159 : vector<2x8x8xf32>
    %cst_71 = arith.constant dense<0xFF800000> : vector<2x8xf32>
    %161 = vector.multi_reduction <maximumf>, %160, %cst_71 [2] : vector<2x8x8xf32> to vector<2x8xf32>
    %162 = vector.shape_cast %161 : vector<2x8xf32> to vector<2x8x1xf32>
    %163 = vector.broadcast %162 : vector<2x8x1xf32> to vector<2x8x8xf32>
    %164 = arith.subf %160, %163 : vector<2x8x8xf32>
    %165 = math.exp %164 : vector<2x8x8xf32>
    %cst_72 = arith.constant dense<0.000000e+00> : vector<2x8xf32>
    %166 = vector.multi_reduction <add>, %165, %cst_72 [2] : vector<2x8x8xf32> to vector<2x8xf32>
    %167 = vector.shape_cast %166 : vector<2x8xf32> to vector<2x8x1xf32>
    %168 = tpu.reciprocal %167 {approx = true} : vector<2x8x1xf32> -> vector<2x8x1xf32>
    %169 = vector.broadcast %168 : vector<2x8x1xf32> to vector<2x8x8xf32>
    %170 = arith.mulf %165, %169 : vector<2x8x8xf32>
    %171 = vector.extract_strided_slice %86 {offsets = [0, 0, 24], sizes = [2, 8, 8], strides = [1, 1, 1]} : vector<2x8x32xf32> to vector<2x8x8xf32>
    "tpu.trace_start"() <{level = 10 : i32, message = "bqk,bkd->bqd"}> : () -> ()
    %cst_73 = arith.constant dense<0.000000e+00> : vector<2x8x8xf32>
    %172 = tpu.matmul %170, %171, %cst_73 {dimension_numbers = #tpu.dot_dimension_numbers<[2], [1], [1], [2], [0, 0, 0, 1, 1, 2], [0], [0]>} : vector<2x8x8xf32>, vector<2x8x8xf32>, vector<2x8x8xf32> -> vector<2x8x8xf32>
    "tpu.trace_stop"() : () -> ()
    %173 = vector.shape_cast %172 : vector<2x8x8xf32> to vector<16x8xf32>
    %174 = vector.extract_strided_slice %88 {offsets = [24, 0], sizes = [8, 32], strides = [1, 1]} : vector<32x32xf32> to vector<8x32xf32>
    %cst_74 = arith.constant dense<0.000000e+00> : vector<16x32xf32>
    %175 = tpu.matmul %173, %174, %cst_74 {dimension_numbers = #tpu.dot_dimension_numbers<[1], [0], [0], [1], [0, 0, 1, 1], [], []>} : vector<16x8xf32>, vector<8x32xf32>, vector<16x32xf32> -> vector<16x32xf32>
    %176 = arith.addf %155, %175 : vector<16x32xf32>
    %177 = arith.addf %28, %176 : vector<16x32xf32>
    %c0_75 = arith.constant 0 : index
    %c0_76 = arith.constant 0 : index
    %c0_77 = arith.constant 0 : index
    %178 = vector.load %arg15[%c0_75, %c0_76, %c0_77] : memref<2x1x32xf32, #tpu.memory_space<vmem>>, vector<1x1x32xf32>
    %179 = vector.shape_cast %178 : vector<1x1x32xf32> to vector<1x32xf32>
    %c0_78 = arith.constant 0 : index
    %c0_79 = arith.constant 0 : index
    %c0_80 = arith.constant 0 : index
    %180 = vector.load %arg16[%c0_78, %c0_79, %c0_80] : memref<2x1x32xf32, #tpu.memory_space<vmem>>, vector<1x1x32xf32>
    %181 = vector.shape_cast %180 : vector<1x1x32xf32> to vector<1x32xf32>
    %cst_81 = arith.constant dense<0.000000e+00> : vector<16xf32>
    %182 = vector.multi_reduction <add>, %177, %cst_81 [1] : vector<16x32xf32> to vector<16xf32>
    %183 = vector.shape_cast %182 : vector<16xf32> to vector<16x1xf32>
    %cst_82 = arith.constant 3.200000e+01 : f32
    %184 = vector.broadcast %cst_82 : f32 to vector<16x1xf32>
    %185 = arith.divf %183, %184 : vector<16x1xf32>
    %186 = vector.broadcast %185 : vector<16x1xf32> to vector<16x32xf32>
    %187 = arith.subf %177, %186 : vector<16x32xf32>
    %188 = arith.mulf %187, %187 : vector<16x32xf32>
    %cst_83 = arith.constant dense<0.000000e+00> : vector<16xf32>
    %189 = vector.multi_reduction <add>, %188, %cst_83 [1] : vector<16x32xf32> to vector<16xf32>
    %190 = vector.shape_cast %189 : vector<16xf32> to vector<16x1xf32>
    %cst_84 = arith.constant 3.200000e+01 : f32
    %191 = vector.broadcast %cst_84 : f32 to vector<16x1xf32>
    %192 = arith.divf %190, %191 : vector<16x1xf32>
    %193 = vector.broadcast %185 : vector<16x1xf32> to vector<16x32xf32>
    %194 = arith.subf %177, %193 : vector<16x32xf32>
    %cst_85 = arith.constant 9.99999974E-6 : f32
    %195 = vector.broadcast %cst_85 : f32 to vector<16x1xf32>
    %196 = arith.addf %192, %195 : vector<16x1xf32>
    %197 = math.rsqrt %196 : vector<16x1xf32>
    %198 = vector.broadcast %197 : vector<16x1xf32> to vector<16x32xf32>
    %199 = arith.mulf %194, %198 : vector<16x32xf32>
    %200 = vector.broadcast %179 : vector<1x32xf32> to vector<16x32xf32>
    %201 = arith.mulf %199, %200 : vector<16x32xf32>
    %202 = vector.broadcast %181 : vector<1x32xf32> to vector<16x32xf32>
    %203 = arith.addf %201, %202 : vector<16x32xf32>
    %c0_86 = arith.constant 0 : index
    %c0_87 = arith.constant 0 : index
    %c0_88 = arith.constant 0 : index
    %204 = vector.load %arg17[%c0_86, %c0_87, %c0_88] : memref<2x32x128xf32, #tpu.memory_space<vmem>>, vector<1x32x128xf32>
    %205 = vector.shape_cast %204 : vector<1x32x128xf32> to vector<32x128xf32>
    %cst_89 = arith.constant dense<0.000000e+00> : vector<16x128xf32>
    %206 = tpu.matmul %203, %205, %cst_89 {dimension_numbers = #tpu.dot_dimension_numbers<[1], [0], [0], [1], [0, 0, 1, 1], [], []>} : vector<16x32xf32>, vector<32x128xf32>, vector<16x128xf32> -> vector<16x128xf32>
    %c0_90 = arith.constant 0 : index
    %c0_91 = arith.constant 0 : index
    %c0_92 = arith.constant 0 : index
    %207 = vector.load %arg18[%c0_90, %c0_91, %c0_92] : memref<2x1x128xf32, #tpu.memory_space<vmem>>, vector<1x1x128xf32>
    %208 = vector.shape_cast %207 : vector<1x1x128xf32> to vector<1x128xf32>
    %209 = vector.broadcast %208 : vector<1x128xf32> to vector<16x128xf32>
    %210 = arith.addf %206, %209 : vector<16x128xf32>
    %cst_93 = arith.constant 1.702000e+00 : f32
    %211 = vector.broadcast %cst_93 : f32 to vector<16x128xf32>
    %212 = arith.mulf %211, %210 : vector<16x128xf32>
    %213 = arith.negf %212 : vector<16x128xf32>
    %214 = math.exp %213 : vector<16x128xf32>
    %cst_94 = arith.constant 1.000000e+00 : f32
    %215 = vector.broadcast %cst_94 : f32 to vector<16x128xf32>
    %216 = arith.addf %215, %214 : vector<16x128xf32>
    %217 = arith.divf %215, %216 : vector<16x128xf32>
    %218 = arith.mulf %210, %217 : vector<16x128xf32>
    %c0_95 = arith.constant 0 : index
    %c0_96 = arith.constant 0 : index
    %c0_97 = arith.constant 0 : index
    %219 = vector.load %arg19[%c0_95, %c0_96, %c0_97] : memref<2x128x32xf32, #tpu.memory_space<vmem>>, vector<1x128x32xf32>
    %220 = vector.shape_cast %219 : vector<1x128x32xf32> to vector<128x32xf32>
    %cst_98 = arith.constant dense<0.000000e+00> : vector<16x32xf32>
    %221 = tpu.matmul %218, %220, %cst_98 {dimension_numbers = #tpu.dot_dimension_numbers<[1], [0], [0], [1], [0, 0, 1, 1], [], []>} : vector<16x128xf32>, vector<128x32xf32>, vector<16x32xf32> -> vector<16x32xf32>
    %c0_99 = arith.constant 0 : index
    %c0_100 = arith.constant 0 : index
    %c0_101 = arith.constant 0 : index
    %222 = vector.load %arg20[%c0_99, %c0_100, %c0_101] : memref<2x1x32xf32, #tpu.memory_space<vmem>>, vector<1x1x32xf32>
    %223 = vector.shape_cast %222 : vector<1x1x32xf32> to vector<1x32xf32>
    %224 = vector.broadcast %223 : vector<1x32xf32> to vector<16x32xf32>
    %225 = arith.addf %221, %224 : vector<16x32xf32>
    %226 = arith.addf %177, %225 : vector<16x32xf32>
    %c1 = arith.constant 1 : index
    %c0_102 = arith.constant 0 : index
    %c0_103 = arith.constant 0 : index
    %227 = vector.load %arg5[%c1, %c0_102, %c0_103] : memref<2x1x32xf32, #tpu.memory_space<vmem>>, vector<1x1x32xf32>
    %228 = vector.shape_cast %227 : vector<1x1x32xf32> to vector<1x32xf32>
    %c1_104 = arith.constant 1 : index
    %c0_105 = arith.constant 0 : index
    %c0_106 = arith.constant 0 : index
    %229 = vector.load %arg6[%c1_104, %c0_105, %c0_106] : memref<2x1x32xf32, #tpu.memory_space<vmem>>, vector<1x1x32xf32>
    %230 = vector.shape_cast %229 : vector<1x1x32xf32> to vector<1x32xf32>
    %cst_107 = arith.constant dense<0.000000e+00> : vector<16xf32>
    %231 = vector.multi_reduction <add>, %226, %cst_107 [1] : vector<16x32xf32> to vector<16xf32>
    %232 = vector.shape_cast %231 : vector<16xf32> to vector<16x1xf32>
    %cst_108 = arith.constant 3.200000e+01 : f32
    %233 = vector.broadcast %cst_108 : f32 to vector<16x1xf32>
    %234 = arith.divf %232, %233 : vector<16x1xf32>
    %235 = vector.broadcast %234 : vector<16x1xf32> to vector<16x32xf32>
    %236 = arith.subf %226, %235 : vector<16x32xf32>
    %237 = arith.mulf %236, %236 : vector<16x32xf32>
    %cst_109 = arith.constant dense<0.000000e+00> : vector<16xf32>
    %238 = vector.multi_reduction <add>, %237, %cst_109 [1] : vector<16x32xf32> to vector<16xf32>
    %239 = vector.shape_cast %238 : vector<16xf32> to vector<16x1xf32>
    %cst_110 = arith.constant 3.200000e+01 : f32
    %240 = vector.broadcast %cst_110 : f32 to vector<16x1xf32>
    %241 = arith.divf %239, %240 : vector<16x1xf32>
    %242 = vector.broadcast %234 : vector<16x1xf32> to vector<16x32xf32>
    %243 = arith.subf %226, %242 : vector<16x32xf32>
    %cst_111 = arith.constant 9.99999974E-6 : f32
    %244 = vector.broadcast %cst_111 : f32 to vector<16x1xf32>
    %245 = arith.addf %241, %244 : vector<16x1xf32>
    %246 = math.rsqrt %245 : vector<16x1xf32>
    %247 = vector.broadcast %246 : vector<16x1xf32> to vector<16x32xf32>
    %248 = arith.mulf %243, %247 : vector<16x32xf32>
    %249 = vector.broadcast %228 : vector<1x32xf32> to vector<16x32xf32>
    %250 = arith.mulf %248, %249 : vector<16x32xf32>
    %251 = vector.broadcast %230 : vector<1x32xf32> to vector<16x32xf32>
    %252 = arith.addf %250, %251 : vector<16x32xf32>
    %c1_112 = arith.constant 1 : index
    %c0_113 = arith.constant 0 : index
    %c0_114 = arith.constant 0 : index
    %253 = vector.load %arg7[%c1_112, %c0_113, %c0_114] : memref<2x32x32xf32, #tpu.memory_space<vmem>>, vector<1x32x32xf32>
    %254 = vector.shape_cast %253 : vector<1x32x32xf32> to vector<32x32xf32>
    %cst_115 = arith.constant dense<0.000000e+00> : vector<16x32xf32>
    %255 = tpu.matmul %252, %254, %cst_115 {dimension_numbers = #tpu.dot_dimension_numbers<[1], [0], [0], [1], [0, 0, 1, 1], [], []>} : vector<16x32xf32>, vector<32x32xf32>, vector<16x32xf32> -> vector<16x32xf32>
    %c1_116 = arith.constant 1 : index
    %c0_117 = arith.constant 0 : index
    %c0_118 = arith.constant 0 : index
    %256 = vector.load %arg8[%c1_116, %c0_117, %c0_118] : memref<2x1x32xf32, #tpu.memory_space<vmem>>, vector<1x1x32xf32>
    %257 = vector.shape_cast %256 : vector<1x1x32xf32> to vector<1x32xf32>
    %258 = vector.broadcast %257 : vector<1x32xf32> to vector<16x32xf32>
    %259 = arith.addf %255, %258 : vector<16x32xf32>
    %c1_119 = arith.constant 1 : index
    %c0_120 = arith.constant 0 : index
    %c0_121 = arith.constant 0 : index
    %260 = vector.load %arg9[%c1_119, %c0_120, %c0_121] : memref<2x32x32xf32, #tpu.memory_space<vmem>>, vector<1x32x32xf32>
    %261 = vector.shape_cast %260 : vector<1x32x32xf32> to vector<32x32xf32>
    %cst_122 = arith.constant dense<0.000000e+00> : vector<16x32xf32>
    %262 = tpu.matmul %252, %261, %cst_122 {dimension_numbers = #tpu.dot_dimension_numbers<[1], [0], [0], [1], [0, 0, 1, 1], [], []>} : vector<16x32xf32>, vector<32x32xf32>, vector<16x32xf32> -> vector<16x32xf32>
    %c1_123 = arith.constant 1 : index
    %c0_124 = arith.constant 0 : index
    %c0_125 = arith.constant 0 : index
    %263 = vector.load %arg10[%c1_123, %c0_124, %c0_125] : memref<2x1x32xf32, #tpu.memory_space<vmem>>, vector<1x1x32xf32>
    %264 = vector.shape_cast %263 : vector<1x1x32xf32> to vector<1x32xf32>
    %265 = vector.broadcast %264 : vector<1x32xf32> to vector<16x32xf32>
    %266 = arith.addf %262, %265 : vector<16x32xf32>
    %c1_126 = arith.constant 1 : index
    %c0_127 = arith.constant 0 : index
    %c0_128 = arith.constant 0 : index
    %267 = vector.load %arg11[%c1_126, %c0_127, %c0_128] : memref<2x32x32xf32, #tpu.memory_space<vmem>>, vector<1x32x32xf32>
    %268 = vector.shape_cast %267 : vector<1x32x32xf32> to vector<32x32xf32>
    %cst_129 = arith.constant dense<0.000000e+00> : vector<16x32xf32>
    %269 = tpu.matmul %252, %268, %cst_129 {dimension_numbers = #tpu.dot_dimension_numbers<[1], [0], [0], [1], [0, 0, 1, 1], [], []>} : vector<16x32xf32>, vector<32x32xf32>, vector<16x32xf32> -> vector<16x32xf32>
    %c1_130 = arith.constant 1 : index
    %c0_131 = arith.constant 0 : index
    %c0_132 = arith.constant 0 : index
    %270 = vector.load %arg12[%c1_130, %c0_131, %c0_132] : memref<2x1x32xf32, #tpu.memory_space<vmem>>, vector<1x1x32xf32>
    %271 = vector.shape_cast %270 : vector<1x1x32xf32> to vector<1x32xf32>
    %272 = vector.broadcast %271 : vector<1x32xf32> to vector<16x32xf32>
    %273 = arith.addf %269, %272 : vector<16x32xf32>
    %274 = vector.shape_cast %259 : vector<16x32xf32> to vector<2x8x32xf32>
    %cst_133 = arith.constant 0.353553385 : f32
    %275 = vector.broadcast %cst_133 : f32 to vector<2x8x32xf32>
    %276 = arith.mulf %274, %275 : vector<2x8x32xf32>
    %277 = vector.shape_cast %266 : vector<16x32xf32> to vector<2x8x32xf32>
    %278 = vector.shape_cast %273 : vector<16x32xf32> to vector<2x8x32xf32>
    %c1_134 = arith.constant 1 : index
    %c0_135 = arith.constant 0 : index
    %c0_136 = arith.constant 0 : index
    %279 = vector.load %arg13[%c1_134, %c0_135, %c0_136] : memref<2x32x32xf32, #tpu.memory_space<vmem>>, vector<1x32x32xf32>
    %280 = vector.shape_cast %279 : vector<1x32x32xf32> to vector<32x32xf32>
    %c1_137 = arith.constant 1 : index
    %c0_138 = arith.constant 0 : index
    %c0_139 = arith.constant 0 : index
    %281 = vector.load %arg14[%c1_137, %c0_138, %c0_139] : memref<2x1x32xf32, #tpu.memory_space<vmem>>, vector<1x1x32xf32>
    %282 = vector.shape_cast %281 : vector<1x1x32xf32> to vector<1x32xf32>
    %283 = vector.shape_cast %282 : vector<1x32xf32> to vector<1x32xf32>
    %284 = vector.broadcast %283 : vector<1x32xf32> to vector<16x32xf32>
    %285 = vector.extract_strided_slice %276 {offsets = [0, 0, 0], sizes = [2, 8, 8], strides = [1, 1, 1]} : vector<2x8x32xf32> to vector<2x8x8xf32>
    %286 = vector.extract_strided_slice %277 {offsets = [0, 0, 0], sizes = [2, 8, 8], strides = [1, 1, 1]} : vector<2x8x32xf32> to vector<2x8x8xf32>
    "tpu.trace_start"() <{level = 10 : i32, message = "bqd,bkd->bqk"}> : () -> ()
    %cst_140 = arith.constant dense<0.000000e+00> : vector<2x8x8xf32>
    %287 = tpu.matmul %285, %286, %cst_140 {dimension_numbers = #tpu.dot_dimension_numbers<[2], [2], [1], [1], [0, 0, 0, 1, 1, 1], [0], [0]>} : vector<2x8x8xf32>, vector<2x8x8xf32>, vector<2x8x8xf32> -> vector<2x8x8xf32>
    "tpu.trace_stop"() : () -> ()
    %288 = vector.broadcast %34 : vector<1x8x8xf32> to vector<2x8x8xf32>
    %289 = arith.addf %287, %288 : vector<2x8x8xf32>
    %cst_141 = arith.constant dense<0xFF800000> : vector<2x8xf32>
    %290 = vector.multi_reduction <maximumf>, %289, %cst_141 [2] : vector<2x8x8xf32> to vector<2x8xf32>
    %291 = vector.shape_cast %290 : vector<2x8xf32> to vector<2x8x1xf32>
    %292 = vector.broadcast %291 : vector<2x8x1xf32> to vector<2x8x8xf32>
    %293 = arith.subf %289, %292 : vector<2x8x8xf32>
    %294 = math.exp %293 : vector<2x8x8xf32>
    %cst_142 = arith.constant dense<0.000000e+00> : vector<2x8xf32>
    %295 = vector.multi_reduction <add>, %294, %cst_142 [2] : vector<2x8x8xf32> to vector<2x8xf32>
    %296 = vector.shape_cast %295 : vector<2x8xf32> to vector<2x8x1xf32>
    %297 = tpu.reciprocal %296 {approx = true} : vector<2x8x1xf32> -> vector<2x8x1xf32>
    %298 = vector.broadcast %297 : vector<2x8x1xf32> to vector<2x8x8xf32>
    %299 = arith.mulf %294, %298 : vector<2x8x8xf32>
    %300 = vector.extract_strided_slice %278 {offsets = [0, 0, 0], sizes = [2, 8, 8], strides = [1, 1, 1]} : vector<2x8x32xf32> to vector<2x8x8xf32>
    "tpu.trace_start"() <{level = 10 : i32, message = "bqk,bkd->bqd"}> : () -> ()
    %cst_143 = arith.constant dense<0.000000e+00> : vector<2x8x8xf32>
    %301 = tpu.matmul %299, %300, %cst_143 {dimension_numbers = #tpu.dot_dimension_numbers<[2], [1], [1], [2], [0, 0, 0, 1, 1, 2], [0], [0]>} : vector<2x8x8xf32>, vector<2x8x8xf32>, vector<2x8x8xf32> -> vector<2x8x8xf32>
    "tpu.trace_stop"() : () -> ()
    %302 = vector.shape_cast %301 : vector<2x8x8xf32> to vector<16x8xf32>
    %303 = vector.extract_strided_slice %280 {offsets = [0, 0], sizes = [8, 32], strides = [1, 1]} : vector<32x32xf32> to vector<8x32xf32>
    %cst_144 = arith.constant dense<0.000000e+00> : vector<16x32xf32>
    %304 = tpu.matmul %302, %303, %cst_144 {dimension_numbers = #tpu.dot_dimension_numbers<[1], [0], [0], [1], [0, 0, 1, 1], [], []>} : vector<16x8xf32>, vector<8x32xf32>, vector<16x32xf32> -> vector<16x32xf32>
    %305 = arith.addf %284, %304 : vector<16x32xf32>
    %306 = vector.extract_strided_slice %276 {offsets = [0, 0, 8], sizes = [2, 8, 8], strides = [1, 1, 1]} : vector<2x8x32xf32> to vector<2x8x8xf32>
    %307 = vector.extract_strided_slice %277 {offsets = [0, 0, 8], sizes = [2, 8, 8], strides = [1, 1, 1]} : vector<2x8x32xf32> to vector<2x8x8xf32>
    "tpu.trace_start"() <{level = 10 : i32, message = "bqd,bkd->bqk"}> : () -> ()
    %cst_145 = arith.constant dense<0.000000e+00> : vector<2x8x8xf32>
    %308 = tpu.matmul %306, %307, %cst_145 {dimension_numbers = #tpu.dot_dimension_numbers<[2], [2], [1], [1], [0, 0, 0, 1, 1, 1], [0], [0]>} : vector<2x8x8xf32>, vector<2x8x8xf32>, vector<2x8x8xf32> -> vector<2x8x8xf32>
    "tpu.trace_stop"() : () -> ()
    %309 = vector.broadcast %34 : vector<1x8x8xf32> to vector<2x8x8xf32>
    %310 = arith.addf %308, %309 : vector<2x8x8xf32>
    %cst_146 = arith.constant dense<0xFF800000> : vector<2x8xf32>
    %311 = vector.multi_reduction <maximumf>, %310, %cst_146 [2] : vector<2x8x8xf32> to vector<2x8xf32>
    %312 = vector.shape_cast %311 : vector<2x8xf32> to vector<2x8x1xf32>
    %313 = vector.broadcast %312 : vector<2x8x1xf32> to vector<2x8x8xf32>
    %314 = arith.subf %310, %313 : vector<2x8x8xf32>
    %315 = math.exp %314 : vector<2x8x8xf32>
    %cst_147 = arith.constant dense<0.000000e+00> : vector<2x8xf32>
    %316 = vector.multi_reduction <add>, %315, %cst_147 [2] : vector<2x8x8xf32> to vector<2x8xf32>
    %317 = vector.shape_cast %316 : vector<2x8xf32> to vector<2x8x1xf32>
    %318 = tpu.reciprocal %317 {approx = true} : vector<2x8x1xf32> -> vector<2x8x1xf32>
    %319 = vector.broadcast %318 : vector<2x8x1xf32> to vector<2x8x8xf32>
    %320 = arith.mulf %315, %319 : vector<2x8x8xf32>
    %321 = vector.extract_strided_slice %278 {offsets = [0, 0, 8], sizes = [2, 8, 8], strides = [1, 1, 1]} : vector<2x8x32xf32> to vector<2x8x8xf32>
    "tpu.trace_start"() <{level = 10 : i32, message = "bqk,bkd->bqd"}> : () -> ()
    %cst_148 = arith.constant dense<0.000000e+00> : vector<2x8x8xf32>
    %322 = tpu.matmul %320, %321, %cst_148 {dimension_numbers = #tpu.dot_dimension_numbers<[2], [1], [1], [2], [0, 0, 0, 1, 1, 2], [0], [0]>} : vector<2x8x8xf32>, vector<2x8x8xf32>, vector<2x8x8xf32> -> vector<2x8x8xf32>
    "tpu.trace_stop"() : () -> ()
    %323 = vector.shape_cast %322 : vector<2x8x8xf32> to vector<16x8xf32>
    %324 = vector.extract_strided_slice %280 {offsets = [8, 0], sizes = [8, 32], strides = [1, 1]} : vector<32x32xf32> to vector<8x32xf32>
    %cst_149 = arith.constant dense<0.000000e+00> : vector<16x32xf32>
    %325 = tpu.matmul %323, %324, %cst_149 {dimension_numbers = #tpu.dot_dimension_numbers<[1], [0], [0], [1], [0, 0, 1, 1], [], []>} : vector<16x8xf32>, vector<8x32xf32>, vector<16x32xf32> -> vector<16x32xf32>
    %326 = arith.addf %305, %325 : vector<16x32xf32>
    %327 = vector.extract_strided_slice %276 {offsets = [0, 0, 16], sizes = [2, 8, 8], strides = [1, 1, 1]} : vector<2x8x32xf32> to vector<2x8x8xf32>
    %328 = vector.extract_strided_slice %277 {offsets = [0, 0, 16], sizes = [2, 8, 8], strides = [1, 1, 1]} : vector<2x8x32xf32> to vector<2x8x8xf32>
    "tpu.trace_start"() <{level = 10 : i32, message = "bqd,bkd->bqk"}> : () -> ()
    %cst_150 = arith.constant dense<0.000000e+00> : vector<2x8x8xf32>
    %329 = tpu.matmul %327, %328, %cst_150 {dimension_numbers = #tpu.dot_dimension_numbers<[2], [2], [1], [1], [0, 0, 0, 1, 1, 1], [0], [0]>} : vector<2x8x8xf32>, vector<2x8x8xf32>, vector<2x8x8xf32> -> vector<2x8x8xf32>
    "tpu.trace_stop"() : () -> ()
    %330 = vector.broadcast %34 : vector<1x8x8xf32> to vector<2x8x8xf32>
    %331 = arith.addf %329, %330 : vector<2x8x8xf32>
    %cst_151 = arith.constant dense<0xFF800000> : vector<2x8xf32>
    %332 = vector.multi_reduction <maximumf>, %331, %cst_151 [2] : vector<2x8x8xf32> to vector<2x8xf32>
    %333 = vector.shape_cast %332 : vector<2x8xf32> to vector<2x8x1xf32>
    %334 = vector.broadcast %333 : vector<2x8x1xf32> to vector<2x8x8xf32>
    %335 = arith.subf %331, %334 : vector<2x8x8xf32>
    %336 = math.exp %335 : vector<2x8x8xf32>
    %cst_152 = arith.constant dense<0.000000e+00> : vector<2x8xf32>
    %337 = vector.multi_reduction <add>, %336, %cst_152 [2] : vector<2x8x8xf32> to vector<2x8xf32>
    %338 = vector.shape_cast %337 : vector<2x8xf32> to vector<2x8x1xf32>
    %339 = tpu.reciprocal %338 {approx = true} : vector<2x8x1xf32> -> vector<2x8x1xf32>
    %340 = vector.broadcast %339 : vector<2x8x1xf32> to vector<2x8x8xf32>
    %341 = arith.mulf %336, %340 : vector<2x8x8xf32>
    %342 = vector.extract_strided_slice %278 {offsets = [0, 0, 16], sizes = [2, 8, 8], strides = [1, 1, 1]} : vector<2x8x32xf32> to vector<2x8x8xf32>
    "tpu.trace_start"() <{level = 10 : i32, message = "bqk,bkd->bqd"}> : () -> ()
    %cst_153 = arith.constant dense<0.000000e+00> : vector<2x8x8xf32>
    %343 = tpu.matmul %341, %342, %cst_153 {dimension_numbers = #tpu.dot_dimension_numbers<[2], [1], [1], [2], [0, 0, 0, 1, 1, 2], [0], [0]>} : vector<2x8x8xf32>, vector<2x8x8xf32>, vector<2x8x8xf32> -> vector<2x8x8xf32>
    "tpu.trace_stop"() : () -> ()
    %344 = vector.shape_cast %343 : vector<2x8x8xf32> to vector<16x8xf32>
    %345 = vector.extract_strided_slice %280 {offsets = [16, 0], sizes = [8, 32], strides = [1, 1]} : vector<32x32xf32> to vector<8x32xf32>
    %cst_154 = arith.constant dense<0.000000e+00> : vector<16x32xf32>
    %346 = tpu.matmul %344, %345, %cst_154 {dimension_numbers = #tpu.dot_dimension_numbers<[1], [0], [0], [1], [0, 0, 1, 1], [], []>} : vector<16x8xf32>, vector<8x32xf32>, vector<16x32xf32> -> vector<16x32xf32>
    %347 = arith.addf %326, %346 : vector<16x32xf32>
    %348 = vector.extract_strided_slice %276 {offsets = [0, 0, 24], sizes = [2, 8, 8], strides = [1, 1, 1]} : vector<2x8x32xf32> to vector<2x8x8xf32>
    %349 = vector.extract_strided_slice %277 {offsets = [0, 0, 24], sizes = [2, 8, 8], strides = [1, 1, 1]} : vector<2x8x32xf32> to vector<2x8x8xf32>
    "tpu.trace_start"() <{level = 10 : i32, message = "bqd,bkd->bqk"}> : () -> ()
    %cst_155 = arith.constant dense<0.000000e+00> : vector<2x8x8xf32>
    %350 = tpu.matmul %348, %349, %cst_155 {dimension_numbers = #tpu.dot_dimension_numbers<[2], [2], [1], [1], [0, 0, 0, 1, 1, 1], [0], [0]>} : vector<2x8x8xf32>, vector<2x8x8xf32>, vector<2x8x8xf32> -> vector<2x8x8xf32>
    "tpu.trace_stop"() : () -> ()
    %351 = vector.broadcast %34 : vector<1x8x8xf32> to vector<2x8x8xf32>
    %352 = arith.addf %350, %351 : vector<2x8x8xf32>
    %cst_156 = arith.constant dense<0xFF800000> : vector<2x8xf32>
    %353 = vector.multi_reduction <maximumf>, %352, %cst_156 [2] : vector<2x8x8xf32> to vector<2x8xf32>
    %354 = vector.shape_cast %353 : vector<2x8xf32> to vector<2x8x1xf32>
    %355 = vector.broadcast %354 : vector<2x8x1xf32> to vector<2x8x8xf32>
    %356 = arith.subf %352, %355 : vector<2x8x8xf32>
    %357 = math.exp %356 : vector<2x8x8xf32>
    %cst_157 = arith.constant dense<0.000000e+00> : vector<2x8xf32>
    %358 = vector.multi_reduction <add>, %357, %cst_157 [2] : vector<2x8x8xf32> to vector<2x8xf32>
    %359 = vector.shape_cast %358 : vector<2x8xf32> to vector<2x8x1xf32>
    %360 = tpu.reciprocal %359 {approx = true} : vector<2x8x1xf32> -> vector<2x8x1xf32>
    %361 = vector.broadcast %360 : vector<2x8x1xf32> to vector<2x8x8xf32>
    %362 = arith.mulf %357, %361 : vector<2x8x8xf32>
    %363 = vector.extract_strided_slice %278 {offsets = [0, 0, 24], sizes = [2, 8, 8], strides = [1, 1, 1]} : vector<2x8x32xf32> to vector<2x8x8xf32>
    "tpu.trace_start"() <{level = 10 : i32, message = "bqk,bkd->bqd"}> : () -> ()
    %cst_158 = arith.constant dense<0.000000e+00> : vector<2x8x8xf32>
    %364 = tpu.matmul %362, %363, %cst_158 {dimension_numbers = #tpu.dot_dimension_numbers<[2], [1], [1], [2], [0, 0, 0, 1, 1, 2], [0], [0]>} : vector<2x8x8xf32>, vector<2x8x8xf32>, vector<2x8x8xf32> -> vector<2x8x8xf32>
    "tpu.trace_stop"() : () -> ()
    %365 = vector.shape_cast %364 : vector<2x8x8xf32> to vector<16x8xf32>
    %366 = vector.extract_strided_slice %280 {offsets = [24, 0], sizes = [8, 32], strides = [1, 1]} : vector<32x32xf32> to vector<8x32xf32>
    %cst_159 = arith.constant dense<0.000000e+00> : vector<16x32xf32>
    %367 = tpu.matmul %365, %366, %cst_159 {dimension_numbers = #tpu.dot_dimension_numbers<[1], [0], [0], [1], [0, 0, 1, 1], [], []>} : vector<16x8xf32>, vector<8x32xf32>, vector<16x32xf32> -> vector<16x32xf32>
    %368 = arith.addf %347, %367 : vector<16x32xf32>
    %369 = arith.addf %226, %368 : vector<16x32xf32>
    %c1_160 = arith.constant 1 : index
    %c0_161 = arith.constant 0 : index
    %c0_162 = arith.constant 0 : index
    %370 = vector.load %arg15[%c1_160, %c0_161, %c0_162] : memref<2x1x32xf32, #tpu.memory_space<vmem>>, vector<1x1x32xf32>
    %371 = vector.shape_cast %370 : vector<1x1x32xf32> to vector<1x32xf32>
    %c1_163 = arith.constant 1 : index
    %c0_164 = arith.constant 0 : index
    %c0_165 = arith.constant 0 : index
    %372 = vector.load %arg16[%c1_163, %c0_164, %c0_165] : memref<2x1x32xf32, #tpu.memory_space<vmem>>, vector<1x1x32xf32>
    %373 = vector.shape_cast %372 : vector<1x1x32xf32> to vector<1x32xf32>
    %cst_166 = arith.constant dense<0.000000e+00> : vector<16xf32>
    %374 = vector.multi_reduction <add>, %369, %cst_166 [1] : vector<16x32xf32> to vector<16xf32>
    %375 = vector.shape_cast %374 : vector<16xf32> to vector<16x1xf32>
    %cst_167 = arith.constant 3.200000e+01 : f32
    %376 = vector.broadcast %cst_167 : f32 to vector<16x1xf32>
    %377 = arith.divf %375, %376 : vector<16x1xf32>
    %378 = vector.broadcast %377 : vector<16x1xf32> to vector<16x32xf32>
    %379 = arith.subf %369, %378 : vector<16x32xf32>
    %380 = arith.mulf %379, %379 : vector<16x32xf32>
    %cst_168 = arith.constant dense<0.000000e+00> : vector<16xf32>
    %381 = vector.multi_reduction <add>, %380, %cst_168 [1] : vector<16x32xf32> to vector<16xf32>
    %382 = vector.shape_cast %381 : vector<16xf32> to vector<16x1xf32>
    %cst_169 = arith.constant 3.200000e+01 : f32
    %383 = vector.broadcast %cst_169 : f32 to vector<16x1xf32>
    %384 = arith.divf %382, %383 : vector<16x1xf32>
    %385 = vector.broadcast %377 : vector<16x1xf32> to vector<16x32xf32>
    %386 = arith.subf %369, %385 : vector<16x32xf32>
    %cst_170 = arith.constant 9.99999974E-6 : f32
    %387 = vector.broadcast %cst_170 : f32 to vector<16x1xf32>
    %388 = arith.addf %384, %387 : vector<16x1xf32>
    %389 = math.rsqrt %388 : vector<16x1xf32>
    %390 = vector.broadcast %389 : vector<16x1xf32> to vector<16x32xf32>
    %391 = arith.mulf %386, %390 : vector<16x32xf32>
    %392 = vector.broadcast %371 : vector<1x32xf32> to vector<16x32xf32>
    %393 = arith.mulf %391, %392 : vector<16x32xf32>
    %394 = vector.broadcast %373 : vector<1x32xf32> to vector<16x32xf32>
    %395 = arith.addf %393, %394 : vector<16x32xf32>
    %c1_171 = arith.constant 1 : index
    %c0_172 = arith.constant 0 : index
    %c0_173 = arith.constant 0 : index
    %396 = vector.load %arg17[%c1_171, %c0_172, %c0_173] : memref<2x32x128xf32, #tpu.memory_space<vmem>>, vector<1x32x128xf32>
    %397 = vector.shape_cast %396 : vector<1x32x128xf32> to vector<32x128xf32>
    %cst_174 = arith.constant dense<0.000000e+00> : vector<16x128xf32>
    %398 = tpu.matmul %395, %397, %cst_174 {dimension_numbers = #tpu.dot_dimension_numbers<[1], [0], [0], [1], [0, 0, 1, 1], [], []>} : vector<16x32xf32>, vector<32x128xf32>, vector<16x128xf32> -> vector<16x128xf32>
    %c1_175 = arith.constant 1 : index
    %c0_176 = arith.constant 0 : index
    %c0_177 = arith.constant 0 : index
    %399 = vector.load %arg18[%c1_175, %c0_176, %c0_177] : memref<2x1x128xf32, #tpu.memory_space<vmem>>, vector<1x1x128xf32>
    %400 = vector.shape_cast %399 : vector<1x1x128xf32> to vector<1x128xf32>
    %401 = vector.broadcast %400 : vector<1x128xf32> to vector<16x128xf32>
    %402 = arith.addf %398, %401 : vector<16x128xf32>
    %cst_178 = arith.constant 1.702000e+00 : f32
    %403 = vector.broadcast %cst_178 : f32 to vector<16x128xf32>
    %404 = arith.mulf %403, %402 : vector<16x128xf32>
    %405 = arith.negf %404 : vector<16x128xf32>
    %406 = math.exp %405 : vector<16x128xf32>
    %cst_179 = arith.constant 1.000000e+00 : f32
    %407 = vector.broadcast %cst_179 : f32 to vector<16x128xf32>
    %408 = arith.addf %407, %406 : vector<16x128xf32>
    %409 = arith.divf %407, %408 : vector<16x128xf32>
    %410 = arith.mulf %402, %409 : vector<16x128xf32>
    %c1_180 = arith.constant 1 : index
    %c0_181 = arith.constant 0 : index
    %c0_182 = arith.constant 0 : index
    %411 = vector.load %arg19[%c1_180, %c0_181, %c0_182] : memref<2x128x32xf32, #tpu.memory_space<vmem>>, vector<1x128x32xf32>
    %412 = vector.shape_cast %411 : vector<1x128x32xf32> to vector<128x32xf32>
    %cst_183 = arith.constant dense<0.000000e+00> : vector<16x32xf32>
    %413 = tpu.matmul %410, %412, %cst_183 {dimension_numbers = #tpu.dot_dimension_numbers<[1], [0], [0], [1], [0, 0, 1, 1], [], []>} : vector<16x128xf32>, vector<128x32xf32>, vector<16x32xf32> -> vector<16x32xf32>
    %c1_184 = arith.constant 1 : index
    %c0_185 = arith.constant 0 : index
    %c0_186 = arith.constant 0 : index
    %414 = vector.load %arg20[%c1_184, %c0_185, %c0_186] : memref<2x1x32xf32, #tpu.memory_space<vmem>>, vector<1x1x32xf32>
    %415 = vector.shape_cast %414 : vector<1x1x32xf32> to vector<1x32xf32>
    %416 = vector.broadcast %415 : vector<1x32xf32> to vector<16x32xf32>
    %417 = arith.addf %413, %416 : vector<16x32xf32>
    %418 = arith.addf %369, %417 : vector<16x32xf32>
    %419 = vector.shape_cast %418 : vector<16x32xf32> to vector<2x8x32xf32>
    %420 = vector.extract_strided_slice %419 {offsets = [0, 0, 0], sizes = [2, 1, 32], strides = [1, 1, 1]} : vector<2x8x32xf32> to vector<2x1x32xf32>
    %421 = vector.shape_cast %420 : vector<2x1x32xf32> to vector<2x32xf32>
    %c0_187 = arith.constant 0 : index
    %c0_188 = arith.constant 0 : index
    %422 = vector.load %arg21[%c0_187, %c0_188] : memref<1x32xf32, #tpu.memory_space<vmem>>, vector<1x32xf32>
    %c0_189 = arith.constant 0 : index
    %c0_190 = arith.constant 0 : index
    %423 = vector.load %arg22[%c0_189, %c0_190] : memref<1x32xf32, #tpu.memory_space<vmem>>, vector<1x32xf32>
    %cst_191 = arith.constant dense<0.000000e+00> : vector<2xf32>
    %424 = vector.multi_reduction <add>, %421, %cst_191 [1] : vector<2x32xf32> to vector<2xf32>
    %425 = vector.shape_cast %424 : vector<2xf32> to vector<2x1xf32>
    %cst_192 = arith.constant 3.200000e+01 : f32
    %426 = vector.broadcast %cst_192 : f32 to vector<2x1xf32>
    %427 = arith.divf %425, %426 : vector<2x1xf32>
    %428 = vector.broadcast %427 : vector<2x1xf32> to vector<2x32xf32>
    %429 = arith.subf %421, %428 : vector<2x32xf32>
    %430 = arith.mulf %429, %429 : vector<2x32xf32>
    %cst_193 = arith.constant dense<0.000000e+00> : vector<2xf32>
    %431 = vector.multi_reduction <add>, %430, %cst_193 [1] : vector<2x32xf32> to vector<2xf32>
    %432 = vector.shape_cast %431 : vector<2xf32> to vector<2x1xf32>
    %cst_194 = arith.constant 3.200000e+01 : f32
    %433 = vector.broadcast %cst_194 : f32 to vector<2x1xf32>
    %434 = arith.divf %432, %433 : vector<2x1xf32>
    %435 = vector.broadcast %427 : vector<2x1xf32> to vector<2x32xf32>
    %436 = arith.subf %421, %435 : vector<2x32xf32>
    %cst_195 = arith.constant 9.99999974E-6 : f32
    %437 = vector.broadcast %cst_195 : f32 to vector<2x1xf32>
    %438 = arith.addf %434, %437 : vector<2x1xf32>
    %439 = math.rsqrt %438 : vector<2x1xf32>
    %440 = vector.broadcast %439 : vector<2x1xf32> to vector<2x32xf32>
    %441 = arith.mulf %436, %440 : vector<2x32xf32>
    %442 = vector.broadcast %422 : vector<1x32xf32> to vector<2x32xf32>
    %443 = arith.mulf %441, %442 : vector<2x32xf32>
    %444 = vector.broadcast %423 : vector<1x32xf32> to vector<2x32xf32>
    %445 = arith.addf %443, %444 : vector<2x32xf32>
    %c0_196 = arith.constant 0 : index
    %c0_197 = arith.constant 0 : index
    %446 = vector.load %arg23[%c0_196, %c0_197] : memref<32x16xf32, #tpu.memory_space<vmem>>, vector<32x16xf32>
    %cst_198 = arith.constant dense<0.000000e+00> : vector<2x16xf32>
    %447 = tpu.matmul %445, %446, %cst_198 {dimension_numbers = #tpu.dot_dimension_numbers<[1], [0], [0], [1], [0, 0, 1, 1], [], []>} : vector<2x32xf32>, vector<32x16xf32>, vector<2x16xf32> -> vector<2x16xf32>
    %c0_199 = arith.constant 0 : index
    %c0_200 = arith.constant 0 : index
    %448 = vector.load %arg24[%c0_199, %c0_200] : memref<2x16xf32, #tpu.memory_space<vmem>>, vector<2x16xf32>
    tpu.vector_store %arg24[%c0_199, %c0_200], %447 {strides = array<i32>} : memref<2x16xf32, #tpu.memory_space<vmem>>, vector<2x16xf32>,
    return
  }
}

</mosaic_0001>

<llo_original>
// kernel: clip_get_image_features.1
$region0: #{clip_get_image_features.1}
  #allocation0 [shape = 'u32[]', space=smem, size = 0x4, offset = 0x4, fixed_abs, tag = 'smem constant byte address 0x4 - core index']
  #allocation1 [shape = 'u32[72,128]{1,0:T(1,128)}', space=vmem, size = 0x9000, scoped, tag = 'internal scratch']
  %s0 = inlined_call_operand.vmem [shape: f32[16,192], index: 0, kind: input, shape index: {}]
  %s1 = inlined_call_operand.vmem [shape: f32[192,32], index: 1, kind: input, shape index: {}]
  %s2 = inlined_call_operand.vmem [shape: f32[16,32], index: 2, kind: input, shape index: {}]
  %s3 = inlined_call_operand.vmem [shape: f32[1,32], index: 3, kind: input, shape index: {}]
  %s4 = inlined_call_operand.vmem [shape: f32[1,32], index: 4, kind: input, shape index: {}]
  %s5 = inlined_call_operand.vmem [shape: f32[2,1,32], index: 5, kind: input, shape index: {}]
  %s6 = inlined_call_operand.vmem [shape: f32[2,1,32], index: 6, kind: input, shape index: {}]
  %s7 = inlined_call_operand.vmem [shape: f32[2,32,32], index: 7, kind: input, shape index: {}]
  %s8 = inlined_call_operand.vmem [shape: f32[2,1,32], index: 8, kind: input, shape index: {}]
  %s9 = inlined_call_operand.vmem [shape: f32[2,32,32], index: 9, kind: input, shape index: {}]
  %s10 = inlined_call_operand.vmem [shape: f32[2,1,32], index: 10, kind: input, shape index: {}]
  %s11 = inlined_call_operand.vmem [shape: f32[2,32,32], index: 11, kind: input, shape index: {}]
  %s12 = inlined_call_operand.vmem [shape: f32[2,1,32], index: 12, kind: input, shape index: {}]
  %s13 = inlined_call_operand.vmem [shape: f32[2,32,32], index: 13, kind: input, shape index: {}]
  %s14 = inlined_call_operand.vmem [shape: f32[2,1,32], index: 14, kind: input, shape index: {}]
  %s15 = inlined_call_operand.vmem [shape: f32[2,1,32], index: 15, kind: input, shape index: {}]
  %s16 = inlined_call_operand.vmem [shape: f32[2,1,32], index: 16, kind: input, shape index: {}]
  %s17 = inlined_call_operand.vmem [shape: f32[2,32,128], index: 17, kind: input, shape index: {}]
  %s18 = inlined_call_operand.vmem [shape: f32[2,1,128], index: 18, kind: input, shape index: {}]
  %s19 = inlined_call_operand.vmem [shape: f32[2,128,32], index: 19, kind: input, shape index: {}]
  %s20 = inlined_call_operand.vmem [shape: f32[2,1,32], index: 20, kind: input, shape index: {}]
  %s21 = inlined_call_operand.vmem [shape: f32[1,32], index: 21, kind: input, shape index: {}]
  %s22 = inlined_call_operand.vmem [shape: f32[1,32], index: 22, kind: input, shape index: {}]
  %s23 = inlined_call_operand.vmem [shape: f32[32,16], index: 23, kind: input, shape index: {}]
  %s24 = inlined_call_operand.hbm [shape: f32[2,16], index: 24, kind: output, shape index: {}]
  %s25 = sld [smem:[#allocation0]]
  $region106: #{clip_get_image_features.1} parent=0
    _
  %s27 = ssub.s32 1, %s25
  %s28 = scalar_select 0, %s27, %s25
  $region1: #{clip_get_image_features.1} parent=0
    #allocation2 [shape = 'u8[1024]{0}', space=vmem, size = 0x400, scoped, tag = 'output window, operand 0, single buffered']
    #allocation3 [shape = 's32[1]{0}', space=sflag, size = 0x4, scoped, tag = 'scoped memory for clip_get_image_features.1']
    %29 = vsyncpa [#allocation3], 0
    // Predicated region
    $region2: #{clip_get_image_features.1} parent=1 // pred_check
      _
    $region3: #{clip_get_image_features.1} parent=1 // pred_check_branch
      %31 = sbr.rel (0) target = $region5
    $region4: #{clip_get_image_features.1} parent=1 // pred_region
      _
    $region5: #{clip_get_image_features.1} parent=1 // pred_fallthru
      _
    // Predicated region
    $region6: #{clip_get_image_features.1} parent=1 // pred_check
      _
    $region7: #{clip_get_image_features.1} parent=1 // pred_check_branch
      %33 = sbr.rel (0) target = $region9
    $region8: #{clip_get_image_features.1} parent=1 // pred_region
      _
    $region9: #{clip_get_image_features.1} parent=1 // pred_fallthru
      _
    // Predicated region
    $region10: #{clip_get_image_features.1} parent=1 // pred_check
      _
    $region11: #{clip_get_image_features.1} parent=1 // pred_check_branch
      %35 = sbr.rel (0) target = $region13
    $region12: #{clip_get_image_features.1} parent=1 // pred_region
      _
    $region13: #{clip_get_image_features.1} parent=1 // pred_fallthru
      _
    // Predicated region
    $region14: #{clip_get_image_features.1} parent=1 // pred_check
      _
    $region15: #{clip_get_image_features.1} parent=1 // pred_check_branch
      %37 = sbr.rel (0) target = $region17
    $region16: #{clip_get_image_features.1} parent=1 // pred_region
      _
    $region17: #{clip_get_image_features.1} parent=1 // pred_fallthru
      _
    // Predicated region
    $region18: #{clip_get_image_features.1} parent=1 // pred_check
      _
    $region19: #{clip_get_image_features.1} parent=1 // pred_check_branch
      %39 = sbr.rel (0) target = $region21
    $region20: #{clip_get_image_features.1} parent=1 // pred_region
      _
    $region21: #{clip_get_image_features.1} parent=1 // pred_fallthru
      _
    // Predicated region
    $region22: #{clip_get_image_features.1} parent=1 // pred_check
      _
    $region23: #{clip_get_image_features.1} parent=1 // pred_check_branch
      %41 = sbr.rel (0) target = $region25
    $region24: #{clip_get_image_features.1} parent=1 // pred_region
      _
    $region25: #{clip_get_image_features.1} parent=1 // pred_fallthru
      _
    // Predicated region
    $region26: #{clip_get_image_features.1} parent=1 // pred_check
      _
    $region27: #{clip_get_image_features.1} parent=1 // pred_check_branch
      %43 = sbr.rel (0) target = $region29
    $region28: #{clip_get_image_features.1} parent=1 // pred_region
      _
    $region29: #{clip_get_image_features.1} parent=1 // pred_fallthru
      _
    // Predicated region
    $region30: #{clip_get_image_features.1} parent=1 // pred_check
      _
    $region31: #{clip_get_image_features.1} parent=1 // pred_check_branch
      %45 = sbr.rel (0) target = $region33
    $region32: #{clip_get_image_features.1} parent=1 // pred_region
      _
    $region33: #{clip_get_image_features.1} parent=1 // pred_fallthru
      _
    // Predicated region
    $region34: #{clip_get_image_features.1} parent=1 // pred_check
      _
    $region35: #{clip_get_image_features.1} parent=1 // pred_check_branch
      %47 = sbr.rel (0) target = $region37
    $region36: #{clip_get_image_features.1} parent=1 // pred_region
      _
    $region37: #{clip_get_image_features.1} parent=1 // pred_fallthru
      _
    // Predicated region
    $region38: #{clip_get_image_features.1} parent=1 // pred_check
      _
    $region39: #{clip_get_image_features.1} parent=1 // pred_check_branch
      %49 = sbr.rel (0) target = $region41
    $region40: #{clip_get_image_features.1} parent=1 // pred_region
      _
    $region41: #{clip_get_image_features.1} parent=1 // pred_fallthru
      _
    // Predicated region
    $region42: #{clip_get_image_features.1} parent=1 // pred_check
      _
    $region43: #{clip_get_image_features.1} parent=1 // pred_check_branch
      %51 = sbr.rel (0) target = $region45
    $region44: #{clip_get_image_features.1} parent=1 // pred_region
      _
    $region45: #{clip_get_image_features.1} parent=1 // pred_fallthru
      _
    // Predicated region
    $region46: #{clip_get_image_features.1} parent=1 // pred_check
      _
    $region47: #{clip_get_image_features.1} parent=1 // pred_check_branch
      %53 = sbr.rel (0) target = $region49
    $region48: #{clip_get_image_features.1} parent=1 // pred_region
      _
    $region49: #{clip_get_image_features.1} parent=1 // pred_fallthru
      _
    // Predicated region
    $region50: #{clip_get_image_features.1} parent=1 // pred_check
      _
    $region51: #{clip_get_image_features.1} parent=1 // pred_check_branch
      %55 = sbr.rel (0) target = $region53
    $region52: #{clip_get_image_features.1} parent=1 // pred_region
      _
    $region53: #{clip_get_image_features.1} parent=1 // pred_fallthru
      _
    // Predicated region
    $region54: #{clip_get_image_features.1} parent=1 // pred_check
      _
    $region55: #{clip_get_image_features.1} parent=1 // pred_check_branch
      %57 = sbr.rel (0) target = $region57
    $region56: #{clip_get_image_features.1} parent=1 // pred_region
      _
    $region57: #{clip_get_image_features.1} parent=1 // pred_fallthru
      _
    // Predicated region
    $region58: #{clip_get_image_features.1} parent=1 // pred_check
      _
    $region59: #{clip_get_image_features.1} parent=1 // pred_check_branch
      %59 = sbr.rel (0) target = $region61
    $region60: #{clip_get_image_features.1} parent=1 // pred_region
      _
    $region61: #{clip_get_image_features.1} parent=1 // pred_fallthru
      _
    // Predicated region
    $region62: #{clip_get_image_features.1} parent=1 // pred_check
      _
    $region63: #{clip_get_image_features.1} parent=1 // pred_check_branch
      %61 = sbr.rel (0) target = $region65
    $region64: #{clip_get_image_features.1} parent=1 // pred_region
      _
    $region65: #{clip_get_image_features.1} parent=1 // pred_fallthru
      _
    // Predicated region
    $region66: #{clip_get_image_features.1} parent=1 // pred_check
      _
    $region67: #{clip_get_image_features.1} parent=1 // pred_check_branch
      %63 = sbr.rel (0) target = $region69
    $region68: #{clip_get_image_features.1} parent=1 // pred_region
      _
    $region69: #{clip_get_image_features.1} parent=1 // pred_fallthru
      _
    // Predicated region
    $region70: #{clip_get_image_features.1} parent=1 // pred_check
      _
    $region71: #{clip_get_image_features.1} parent=1 // pred_check_branch
      %65 = sbr.rel (0) target = $region73
    $region72: #{clip_get_image_features.1} parent=1 // pred_region
      _
    $region73: #{clip_get_image_features.1} parent=1 // pred_fallthru
      _
    // Predicated region
    $region74: #{clip_get_image_features.1} parent=1 // pred_check
      _
    $region75: #{clip_get_image_features.1} parent=1 // pred_check_branch
      %67 = sbr.rel (0) target = $region77
    $region76: #{clip_get_image_features.1} parent=1 // pred_region
      _
    $region77: #{clip_get_image_features.1} parent=1 // pred_fallthru
      _
    // Predicated region
    $region78: #{clip_get_image_features.1} parent=1 // pred_check
      _
    $region79: #{clip_get_image_features.1} parent=1 // pred_check_branch
      %69 = sbr.rel (0) target = $region81
    $region80: #{clip_get_image_features.1} parent=1 // pred_region
      _
    $region81: #{clip_get_image_features.1} parent=1 // pred_fallthru
      _
    // Predicated region
    $region82: #{clip_get_image_features.1} parent=1 // pred_check
      _
    $region83: #{clip_get_image_features.1} parent=1 // pred_check_branch
      %71 = sbr.rel (0) target = $region85
    $region84: #{clip_get_image_features.1} parent=1 // pred_region
      _
    $region85: #{clip_get_image_features.1} parent=1 // pred_fallthru
      _
    // Predicated region
    $region86: #{clip_get_image_features.1} parent=1 // pred_check
      _
    $region87: #{clip_get_image_features.1} parent=1 // pred_check_branch
      %73 = sbr.rel (0) target = $region89
    $region88: #{clip_get_image_features.1} parent=1 // pred_region
      _
    $region89: #{clip_get_image_features.1} parent=1 // pred_fallthru
      _
    // Predicated region
    $region90: #{clip_get_image_features.1} parent=1 // pred_check
      _
    $region91: #{clip_get_image_features.1} parent=1 // pred_check_branch
      %75 = sbr.rel (0) target = $region93
    $region92: #{clip_get_image_features.1} parent=1 // pred_region
      _
    $region93: #{clip_get_image_features.1} parent=1 // pred_fallthru
      _
    // Predicated region
    $region94: #{clip_get_image_features.1} parent=1 // pred_check
      _
    $region95: #{clip_get_image_features.1} parent=1 // pred_check_branch
      %77 = sbr.rel (0) target = $region97
    $region96: #{clip_get_image_features.1} parent=1 // pred_region
      _
    $region97: #{clip_get_image_features.1} parent=1 // pred_fallthru
      _
    %v78 = vld [vmem:[%s0] sm:$0xff]
    %v79 = vld [vmem:[%s0 + $0x8] sm:$0xff]
    %v80 = vld [vmem:[%s0 + $0x10] sm:$0xff]
    %v81 = vld [vmem:[%s0 + $0x18] sm:$0xff]
    %v82 = vld [vmem:[%s1] sm:$0xff]
    %v83 = vld [vmem:[%s1 + $0x8] sm:$0xff]
    %v84 = vld [vmem:[%s1 + $0x10] sm:$0xff]
    %v85 = vld [vmem:[%s1 + $0x18] sm:$0xff]
    %v86 = vld [vmem:[%s1 + $0x20] sm:$0xff]
    %v87 = vld [vmem:[%s1 + $0x28] sm:$0xff]
    %v88 = vld [vmem:[%s1 + $0x30] sm:$0xff]
    %v89 = vld [vmem:[%s1 + $0x38] sm:$0xff]
    %v90 = vld [vmem:[%s1 + $0x40] sm:$0xff]
    %v91 = vld [vmem:[%s1 + $0x48] sm:$0xff]
    %v92 = vld [vmem:[%s1 + $0x50] sm:$0xff]
    %v93 = vld [vmem:[%s1 + $0x58] sm:$0xff]
    %v94 = vld [vmem:[%s1 + $0x60] sm:$0xff]
    %v95 = vld [vmem:[%s1 + $0x68] sm:$0xff]
    %v96 = vld [vmem:[%s1 + $0x70] sm:$0xff]
    %v97 = vld [vmem:[%s1 + $0x78] sm:$0xff]
    %v98 = vld [vmem:[%s1 + $0x80] sm:$0xff]
    %v99 = vld [vmem:[%s1 + $0x88] sm:$0xff]
    %v100 = vld [vmem:[%s1 + $0x90] sm:$0xff]
    %v101 = vld [vmem:[%s1 + $0x98] sm:$0xff]
    %v102 = vld [vmem:[%s1 + $0xa0] sm:$0xff]
    %v103 = vld [vmem:[%s1 + $0xa8] sm:$0xff]
    %v104 = vld [vmem:[%s1 + $0xb0] sm:$0xff]
    %v105 = vld [vmem:[%s1 + $0xb8] sm:$0xff]
    %v106 = vld [vmem:[%s2] sm:$0xff]
    %v107 = vld [vmem:[%s2 + $0x8] sm:$0xff]
    %vm108 = vcmask 523264
    %v110 = vsel %vm108, %v79, 0
    %v113 = vsel %vm108, %v81, 0
    %115 = vmatpush.msra.mxu0 %v97
    %116 = vmatpush.msra.mxu0 %v96
    %117 = vmatpush.msra.mxu0 %v95
    %118 = vmatpush.msra.mxu0 %v94
    %119 = vmatpush.msra.mxu0 %v93
    %120 = vmatpush.msra.mxu0 %v92
    %121 = vmatpush.msra.mxu0 %v91
    %122 = vmatpush.msra.mxu0 %v90
    %123 = vmatpush.msra.mxu0 %v89
    %124 = vmatpush.msra.mxu0 %v88
    %125 = vmatpush.msra.mxu0 %v87
    %126 = vmatpush.msra.mxu0 %v86
    %127 = vmatpush.msra.mxu0 %v85
    %128 = vmatpush.msra.mxu0 %v84
    %129 = vmatpush.msra.mxu0 %v83
    %130 = vmatpush.msra.mxu0 %v82
    %131 = vmatmul.f32.gmra.mxu0 %v78
    %v132 = vpop.f32.mrf.mxu0
    %v133 = vadd.f32 %v106, %v132
    %134 = vmatmul.f32.gmra.mxu0 %v80
    %v135 = vpop.f32.mrf.mxu0
    %v136 = vadd.f32 %v107, %v135
    %137 = vdwg.mxu0
    %138 = vmatpush.msra.mxu0 0.0
    %139 = vmatpush.msra.mxu0 0.0
    %140 = vmatpush.msra.mxu0 0.0
    %141 = vmatpush.msra.mxu0 0.0
    %142 = vmatpush.msra.mxu0 0.0
    %143 = vmatpush.msra.mxu0 0.0
    %144 = vmatpush.msra.mxu0 0.0
    %145 = vmatpush.msra.mxu0 0.0
    %146 = vmatpush.msra.mxu0 %v105
    %147 = vmatpush.msra.mxu0 %v104
    %148 = vmatpush.msra.mxu0 %v103
    %149 = vmatpush.msra.mxu0 %v102
    %150 = vmatpush.msra.mxu0 %v101
    %151 = vmatpush.msra.mxu0 %v100
    %152 = vmatpush.msra.mxu0 %v99
    %153 = vmatpush.msra.mxu0 %v98
    %154 = vmatmul.f32.gmra.mxu0 %v110
    %v155 = vpop.f32.mrf.mxu0
    %v156 = vadd.f32 %v133, %v155
    %157 = vmatmul.f32.gmra.mxu0 %v113
    %v158 = vpop.f32.mrf.mxu0
    %v159 = vadd.f32 %v136, %v158
    %160 = vdwg.mxu0
    %v161 = vld [vmem:[%s3] sm:$0x1]
    %v162 = vld [vmem:[%s4] sm:$0x1]
    %vm163 = vcmask 261120
    %v164 = vsel %vm163, %v156, 0.0
    %165 = vadd.xlane.f32.xlu0 %v164
    %v166 = vpop.xlane.xlu0 %165
    %v167 = vsel %vm163, %v159, 0.0
    %168 = vadd.xlane.f32.xlu0 %v167
    %v169 = vpop.xlane.xlu0 %168
    %v170 = vrcp.pop 32.0
    %v171 = vmul.f32 32.0, %v170
    %v172 = vsub.f32 1.0, %v171
    %v173 = vmul.f32 %v170, %v172
    %v174 = vadd.f32 %v170, %v173
    %vm175 = vweird.f32 %v170
    %v176 = vsel %vm175, %v170, %v174
    %v177 = vmul.f32 %v166, %v176
    %v178 = vmul.f32 %v169, %v176
    %v179 = vsub.f32 %v156, %v177
    %v180 = vsub.f32 %v159, %v178
    %v181 = vmul.f32 %v179, %v179
    %v182 = vmul.f32 %v180, %v180
    %v183 = vsel %vm163, %v181, 0.0
    %184 = vadd.xlane.f32.xlu0 %v183
    %v185 = vpop.xlane.xlu0 %184
    %v186 = vsel %vm163, %v182, 0.0
    %187 = vadd.xlane.f32.xlu0 %v186
    %v188 = vpop.xlane.xlu0 %187
    %v189 = vmul.f32 %v185, %v176
    %v190 = vmul.f32 %v188, %v176
    %v191 = vadd.f32 %v189, 1e-05
    %v192 = vadd.f32 %v190, 1e-05
    %v193 = vrsqrt.pop %v191
    %v194 = vmul.f32 %v193, %v191
    %v195 = vmul.f32 %v194, %v193
    %v196 = vmul.f32 0.5, %v195
    %v197 = vsub.f32 1.5, %v196
    %v198 = vmul.f32 %v193, %v197
    %vm199 = vweird.f32 %v191
    %vm200 = vweird.f32 %v193
    %vm201 = vmor %vm199, %vm200
    %v202 = vsel %vm201, %v193, %v198
    %v203 = vrsqrt.pop %v192
    %v204 = vmul.f32 %v203, %v192
    %v205 = vmul.f32 %v204, %v203
    %v206 = vmul.f32 0.5, %v205
    %v207 = vsub.f32 1.5, %v206
    %v208 = vmul.f32 %v203, %v207
    %vm209 = vweird.f32 %v192
    %vm210 = vweird.f32 %v203
    %vm211 = vmor %vm209, %vm210
    %v212 = vsel %vm211, %v203, %v208
    %v213 = vmul.f32 %v179, %v202
    %v214 = vmul.f32 %v180, %v212
    %v216 = vperm.slane %v161, 0
    %v218 = vmul.f32 %v213, %v216
    %v219 = vmul.f32 %v214, %v216
    %v221 = vperm.slane %v162, 0
    %v223 = vadd.f32 %v218, %v221
    %v224 = vadd.f32 %v219, %v221
    %v225 = vlaneseq
    %v226 = vand.u32 %v225, 127
    %vm227 = vcmp.lt.s32.totalorder %v226, 5
    %v228 = vsel %vm227, 0.0, -1e+30
    %v229 = vld [vmem:[%s5] sm:$0x1]
    %v230 = vld [vmem:[%s6] sm:$0x1]
    %v231 = vsel %vm163, %v223, 0.0
    %232 = vadd.xlane.f32.xlu0 %v231
    %v233 = vpop.xlane.xlu0 %232
    %v234 = vsel %vm163, %v224, 0.0
    %235 = vadd.xlane.f32.xlu0 %v234
    %v236 = vpop.xlane.xlu0 %235
    %v237 = vmul.f32 %v233, %v176
    %v238 = vmul.f32 %v236, %v176
    %v239 = vsub.f32 %v223, %v237
    %v240 = vsub.f32 %v224, %v238
    %v241 = vmul.f32 %v239, %v239
    %v242 = vmul.f32 %v240, %v240
    %v243 = vsel %vm163, %v241, 0.0
    %244 = vadd.xlane.f32.xlu0 %v243
    %v245 = vpop.xlane.xlu0 %244
    %v246 = vsel %vm163, %v242, 0.0
    %247 = vadd.xlane.f32.xlu0 %v246
    %v248 = vpop.xlane.xlu0 %247
    %v249 = vmul.f32 %v245, %v176
    %v250 = vmul.f32 %v248, %v176
    %v251 = vadd.f32 %v249, 1e-05
    %v252 = vadd.f32 %v250, 1e-05
    %v253 = vrsqrt.pop %v251
    %v254 = vmul.f32 %v253, %v251
    %v255 = vmul.f32 %v254, %v253
    %v256 = vmul.f32 0.5, %v255
    %v257 = vsub.f32 1.5, %v256
    %v258 = vmul.f32 %v253, %v257
    %vm259 = vweird.f32 %v251
    %vm260 = vweird.f32 %v253
    %vm261 = vmor %vm259, %vm260
    %v262 = vsel %vm261, %v253, %v258
    %v263 = vrsqrt.pop %v252
    %v264 = vmul.f32 %v263, %v252
    %v265 = vmul.f32 %v264, %v263
    %v266 = vmul.f32 0.5, %v265
    %v267 = vsub.f32 1.5, %v266
    %v268 = vmul.f32 %v263, %v267
    %vm269 = vweird.f32 %v252
    %vm270 = vweird.f32 %v263
    %vm271 = vmor %vm269, %vm270
    %v272 = vsel %vm271, %v263, %v268
    %v273 = vmul.f32 %v239, %v262
    %v274 = vmul.f32 %v240, %v272
    %v276 = vperm.slane %v229, 0
    %v278 = vmul.f32 %v273, %v276
    %v279 = vmul.f32 %v274, %v276
    %v281 = vperm.slane %v230, 0
    %v283 = vadd.f32 %v278, %v281
    %v284 = vadd.f32 %v279, %v281
    %v285 = vld [vmem:[%s7] sm:$0xff]
    %v286 = vld [vmem:[%s7 + $0x8] sm:$0xff]
    %v287 = vld [vmem:[%s7 + $0x10] sm:$0xff]
    %v288 = vld [vmem:[%s7 + $0x18] sm:$0xff]
    %v289 = vld [vmem:[%s8] sm:$0x1]
    %v291 = vperm.slane %v289, 0
    %v294 = vsel %vm163, %v283, 0
    %v297 = vsel %vm163, %v284, 0
    %299 = vmatpush.msra.mxu0 0.0
    %300 = vmatpush.msra.mxu0 0.0
    %301 = vmatpush.msra.mxu0 0.0
    %302 = vmatpush.msra.mxu0 0.0
    %303 = vmatpush.msra.mxu0 0.0
    %304 = vmatpush.msra.mxu0 0.0
    %305 = vmatpush.msra.mxu0 0.0
    %306 = vmatpush.msra.mxu0 0.0
    %307 = vmatpush.msra.mxu0 0.0
    %308 = vmatpush.msra.mxu0 0.0
    %309 = vmatpush.msra.mxu0 0.0
    %310 = vmatpush.msra.mxu0 0.0
    %311 = vmatpush.msra.mxu0 %v288
    %312 = vmatpush.msra.mxu0 %v287
    %313 = vmatpush.msra.mxu0 %v286
    %314 = vmatpush.msra.mxu0 %v285
    %315 = vmatmul.f32.gmra.mxu0 %v294
    %v316 = vpop.f32.mrf.mxu0
    %v317 = vadd.f32 %v291, %v316
    %318 = vmatmul.f32.gmra.mxu0 %v297
    %v319 = vpop.f32.mrf.mxu0
    %v320 = vadd.f32 %v291, %v319
    %321 = vdwg.mxu0
    %v322 = vld [vmem:[%s9] sm:$0xff]
    %v323 = vld [vmem:[%s9 + $0x8] sm:$0xff]
    %v324 = vld [vmem:[%s9 + $0x10] sm:$0xff]
    %v325 = vld [vmem:[%s9 + $0x18] sm:$0xff]
    %v326 = vld [vmem:[%s10] sm:$0x1]
    %v328 = vperm.slane %v326, 0
    %330 = vmatpush.msra.mxu0 0.0
    %331 = vmatpush.msra.mxu0 0.0
    %332 = vmatpush.msra.mxu0 0.0
    %333 = vmatpush.msra.mxu0 0.0
    %334 = vmatpush.msra.mxu0 0.0
    %335 = vmatpush.msra.mxu0 0.0
    %336 = vmatpush.msra.mxu0 0.0
    %337 = vmatpush.msra.mxu0 0.0
    %338 = vmatpush.msra.mxu0 0.0
    %339 = vmatpush.msra.mxu0 0.0
    %340 = vmatpush.msra.mxu0 0.0
    %341 = vmatpush.msra.mxu0 0.0
    %342 = vmatpush.msra.mxu0 %v325
    %343 = vmatpush.msra.mxu0 %v324
    %344 = vmatpush.msra.mxu0 %v323
    %345 = vmatpush.msra.mxu0 %v322
    %346 = vmatmul.f32.gmra.mxu0 %v294
    %v347 = vpop.f32.mrf.mxu0
    %v348 = vadd.f32 %v328, %v347
    %349 = vmatmul.f32.gmra.mxu0 %v297
    %v350 = vpop.f32.mrf.mxu0
    %v351 = vadd.f32 %v328, %v350
    %352 = vdwg.mxu0
    %v353 = vld [vmem:[%s11] sm:$0xff]
    %v354 = vld [vmem:[%s11 + $0x8] sm:$0xff]
    %v355 = vld [vmem:[%s11 + $0x10] sm:$0xff]
    %v356 = vld [vmem:[%s11 + $0x18] sm:$0xff]
    %v357 = vld [vmem:[%s12] sm:$0x1]
    %v359 = vperm.slane %v357, 0
    %361 = vmatpush.msra.mxu0 0.0
    %362 = vmatpush.msra.mxu0 0.0
    %363 = vmatpush.msra.mxu0 0.0
    %364 = vmatpush.msra.mxu0 0.0
    %365 = vmatpush.msra.mxu0 0.0
    %366 = vmatpush.msra.mxu0 0.0
    %367 = vmatpush.msra.mxu0 0.0
    %368 = vmatpush.msra.mxu0 0.0
    %369 = vmatpush.msra.mxu0 0.0
    %370 = vmatpush.msra.mxu0 0.0
    %371 = vmatpush.msra.mxu0 0.0
    %372 = vmatpush.msra.mxu0 0.0
    %373 = vmatpush.msra.mxu0 %v356
    %374 = vmatpush.msra.mxu0 %v355
    %375 = vmatpush.msra.mxu0 %v354
    %376 = vmatpush.msra.mxu0 %v353
    %377 = vmatmul.f32.gmra.mxu0 %v294
    %v378 = vpop.f32.mrf.mxu0
    %v379 = vadd.f32 %v359, %v378
    %380 = vmatmul.f32.gmra.mxu0 %v297
    %v381 = vpop.f32.mrf.mxu0
    %v382 = vadd.f32 %v359, %v381
    %383 = vdwg.mxu0
    %v384 = vmul.f32 %v317, 0.35355338
    %v385 = vmul.f32 %v320, 0.35355338
    %v386 = vld [vmem:[%s13] sm:$0xff]
    %v387 = vld [vmem:[%s13 + $0x8] sm:$0xff]
    %v388 = vld [vmem:[%s13 + $0x10] sm:$0xff]
    %v389 = vld [vmem:[%s13 + $0x18] sm:$0xff]
    %v390 = vld [vmem:[%s14] sm:$0x1]
    %v392 = vperm.slane %v390, 0
    %vm394 = vcmask 64512
    %v396 = vsel %vm394, %v384, 0
    %v399 = vsel %vm394, %v348, 0
    %401 = vmatpush.xpose.msra.mxu0 0.0
    %402 = vmatpush.xpose.msra.mxu0 0.0
    %403 = vmatpush.xpose.msra.mxu0 0.0
    %404 = vmatpush.xpose.msra.mxu0 0.0
    %405 = vmatpush.xpose.msra.mxu0 0.0
    %406 = vmatpush.xpose.msra.mxu0 0.0
    %407 = vmatpush.xpose.msra.mxu0 0.0
    %408 = vmatpush.xpose.msra.mxu0 0.0
    %409 = vmatpush.xpose.msra.mxu0 0.0
    %410 = vmatpush.xpose.msra.mxu0 0.0
    %411 = vmatpush.xpose.msra.mxu0 0.0
    %412 = vmatpush.xpose.msra.mxu0 0.0
    %413 = vmatpush.xpose.msra.mxu0 0.0
    %414 = vmatpush.xpose.msra.mxu0 0.0
    %415 = vmatpush.xpose.msra.mxu0 0.0
    %416 = vmatpush.xpose.msra.mxu0 %v399
    %417 = vmatmul.f32.gmra.mxu0 %v396
    %v418 = vpop.f32.mrf.mxu0
    %v419 = vadd.f32 %v228, %v418
    %420 = vdwg.mxu0
    %v422 = vsel %vm394, %v385, 0
    %v425 = vsel %vm394, %v351, 0
    %427 = vmatpush.xpose.msra.mxu0 0.0
    %428 = vmatpush.xpose.msra.mxu0 0.0
    %429 = vmatpush.xpose.msra.mxu0 0.0
    %430 = vmatpush.xpose.msra.mxu0 0.0
    %431 = vmatpush.xpose.msra.mxu0 0.0
    %432 = vmatpush.xpose.msra.mxu0 0.0
    %433 = vmatpush.xpose.msra.mxu0 0.0
    %434 = vmatpush.xpose.msra.mxu0 0.0
    %435 = vmatpush.xpose.msra.mxu0 0.0
    %436 = vmatpush.xpose.msra.mxu0 0.0
    %437 = vmatpush.xpose.msra.mxu0 0.0
    %438 = vmatpush.xpose.msra.mxu0 0.0
    %439 = vmatpush.xpose.msra.mxu0 0.0
    %440 = vmatpush.xpose.msra.mxu0 0.0
    %441 = vmatpush.xpose.msra.mxu0 0.0
    %442 = vmatpush.xpose.msra.mxu0 %v425
    %443 = vmatmul.f32.gmra.mxu0 %v422
    %v444 = vpop.f32.mrf.mxu0
    %v445 = vadd.f32 %v228, %v444
    %446 = vdwg.mxu0
    %v447 = vsel %vm394, %v419, -inf
    %448 = vmax.xlane.f32.xlu0 %v447
    %v449 = vpop.xlane.xlu0 %448
    %v450 = vsel %vm394, %v445, -inf
    %451 = vmax.xlane.f32.xlu0 %v450
    %v452 = vpop.xlane.xlu0 %451
    %v453 = vsub.f32 %v419, %v449
    %v454 = vsub.f32 %v445, %v452
    %v455 = vmul.f32 %v453, 1.442695
    %v456 = vpow.pop %v455
    %v457 = vmul.f32 %v454, 1.442695
    %v458 = vpow.pop %v457
    %v459 = vsel %vm394, %v456, 0.0
    %460 = vadd.xlane.f32.xlu0 %v459
    %v461 = vpop.xlane.xlu0 %460
    %v462 = vsel %vm394, %v458, 0.0
    %463 = vadd.xlane.f32.xlu0 %v462
    %v464 = vpop.xlane.xlu0 %463
    %v465 = vrcp.pop %v461
    %v466 = vrcp.pop %v464
    %v467 = vmul.f32 %v456, %v465
    %v468 = vmul.f32 %v458, %v466
    %v470 = vsel %vm394, %v467, 0
    %472 = vmatpush.msra.mxu0 0.0
    %473 = vmatpush.msra.mxu0 0.0
    %474 = vmatpush.msra.mxu0 0.0
    %475 = vmatpush.msra.mxu0 0.0
    %476 = vmatpush.msra.mxu0 0.0
    %477 = vmatpush.msra.mxu0 0.0
    %478 = vmatpush.msra.mxu0 0.0
    %479 = vmatpush.msra.mxu0 0.0
    %480 = vmatpush.msra.mxu0 0.0
    %481 = vmatpush.msra.mxu0 0.0
    %482 = vmatpush.msra.mxu0 0.0
    %483 = vmatpush.msra.mxu0 0.0
    %484 = vmatpush.msra.mxu0 0.0
    %485 = vmatpush.msra.mxu0 0.0
    %486 = vmatpush.msra.mxu0 0.0
    %487 = vmatpush.msra.mxu0 %v379
    %488 = vmatmul.f32.gmra.mxu0 %v470
    %v489 = vpop.f32.mrf.mxu0
    %v490 = vadd.f32 0.0, %v489
    %491 = vdwg.mxu0
    %v493 = vsel %vm394, %v468, 0
    %495 = vmatpush.msra.mxu0 0.0
    %496 = vmatpush.msra.mxu0 0.0
    %497 = vmatpush.msra.mxu0 0.0
    %498 = vmatpush.msra.mxu0 0.0
    %499 = vmatpush.msra.mxu0 0.0
    %500 = vmatpush.msra.mxu0 0.0
    %501 = vmatpush.msra.mxu0 0.0
    %502 = vmatpush.msra.mxu0 0.0
    %503 = vmatpush.msra.mxu0 0.0
    %504 = vmatpush.msra.mxu0 0.0
    %505 = vmatpush.msra.mxu0 0.0
    %506 = vmatpush.msra.mxu0 0.0
    %507 = vmatpush.msra.mxu0 0.0
    %508 = vmatpush.msra.mxu0 0.0
    %509 = vmatpush.msra.mxu0 0.0
    %510 = vmatpush.msra.mxu0 %v382
    %511 = vmatmul.f32.gmra.mxu0 %v493
    %v512 = vpop.f32.mrf.mxu0
    %v513 = vadd.f32 0.0, %v512
    %514 = vdwg.mxu0
    %v516 = vsel %vm394, %v490, 0
    %v519 = vsel %vm394, %v513, 0
    %521 = vmatpush.msra.mxu0 0.0
    %522 = vmatpush.msra.mxu0 0.0
    %523 = vmatpush.msra.mxu0 0.0
    %524 = vmatpush.msra.mxu0 0.0
    %525 = vmatpush.msra.mxu0 0.0
    %526 = vmatpush.msra.mxu0 0.0
    %527 = vmatpush.msra.mxu0 0.0
    %528 = vmatpush.msra.mxu0 0.0
    %529 = vmatpush.msra.mxu0 0.0
    %530 = vmatpush.msra.mxu0 0.0
    %531 = vmatpush.msra.mxu0 0.0
    %532 = vmatpush.msra.mxu0 0.0
    %533 = vmatpush.msra.mxu0 0.0
    %534 = vmatpush.msra.mxu0 0.0
    %535 = vmatpush.msra.mxu0 0.0
    %536 = vmatpush.msra.mxu0 %v386
    %537 = vmatmul.f32.gmra.mxu0 %v516
    %v538 = vpop.f32.mrf.mxu0
    %v539 = vadd.f32 0.0, %v538
    %540 = vmatmul.f32.gmra.mxu0 %v519
    %v541 = vpop.f32.mrf.mxu0
    %v542 = vadd.f32 0.0, %v541
    %543 = vdwg.mxu0
    %v544 = vadd.f32 %v392, %v539
    %v545 = vadd.f32 %v392, %v542
    %546 = vrot.lane.b32.xlu0 %v384, 120
    %v547 = vpop.permute.xlu0 %546
    %548 = vrot.lane.b32.xlu0 %v348, 120
    %v549 = vpop.permute.xlu0 %548
    %v550 = vsel %vm394, %v547, 0
    %v552 = vsel %vm394, %v549, 0
    %554 = vmatpush.xpose.msra.mxu0 0.0
    %555 = vmatpush.xpose.msra.mxu0 0.0
    %556 = vmatpush.xpose.msra.mxu0 0.0
    %557 = vmatpush.xpose.msra.mxu0 0.0
    %558 = vmatpush.xpose.msra.mxu0 0.0
    %559 = vmatpush.xpose.msra.mxu0 0.0
    %560 = vmatpush.xpose.msra.mxu0 0.0
    %561 = vmatpush.xpose.msra.mxu0 0.0
    %562 = vmatpush.xpose.msra.mxu0 0.0
    %563 = vmatpush.xpose.msra.mxu0 0.0
    %564 = vmatpush.xpose.msra.mxu0 0.0
    %565 = vmatpush.xpose.msra.mxu0 0.0
    %566 = vmatpush.xpose.msra.mxu0 0.0
    %567 = vmatpush.xpose.msra.mxu0 0.0
    %568 = vmatpush.xpose.msra.mxu0 0.0
    %569 = vmatpush.xpose.msra.mxu0 %v552
    %570 = vmatmul.f32.gmra.mxu0 %v550
    %v571 = vpop.f32.mrf.mxu0
    %v572 = vadd.f32 %v228, %v571
    %573 = vdwg.mxu0
    %574 = vrot.lane.b32.xlu0 %v385, 120
    %v575 = vpop.permute.xlu0 %574
    %576 = vrot.lane.b32.xlu0 %v351, 120
    %v577 = vpop.permute.xlu0 %576
    %v578 = vsel %vm394, %v575, 0
    %v580 = vsel %vm394, %v577, 0
    %582 = vmatpush.xpose.msra.mxu0 0.0
    %583 = vmatpush.xpose.msra.mxu0 0.0
    %584 = vmatpush.xpose.msra.mxu0 0.0
    %585 = vmatpush.xpose.msra.mxu0 0.0
    %586 = vmatpush.xpose.msra.mxu0 0.0
    %587 = vmatpush.xpose.msra.mxu0 0.0
    %588 = vmatpush.xpose.msra.mxu0 0.0
    %589 = vmatpush.xpose.msra.mxu0 0.0
    %590 = vmatpush.xpose.msra.mxu0 0.0
    %591 = vmatpush.xpose.msra.mxu0 0.0
    %592 = vmatpush.xpose.msra.mxu0 0.0
    %593 = vmatpush.xpose.msra.mxu0 0.0
    %594 = vmatpush.xpose.msra.mxu0 0.0
    %595 = vmatpush.xpose.msra.mxu0 0.0
    %596 = vmatpush.xpose.msra.mxu0 0.0
    %597 = vmatpush.xpose.msra.mxu0 %v580
    %598 = vmatmul.f32.gmra.mxu0 %v578
    %v599 = vpop.f32.mrf.mxu0
    %v600 = vadd.f32 %v228, %v599
    %601 = vdwg.mxu0
    %v602 = vsel %vm394, %v572, -inf
    %603 = vmax.xlane.f32.xlu0 %v602
    %v604 = vpop.xlane.xlu0 %603
    %v605 = vsel %vm394, %v600, -inf
    %606 = vmax.xlane.f32.xlu0 %v605
    %v607 = vpop.xlane.xlu0 %606
    %v608 = vsub.f32 %v572, %v604
    %v609 = vsub.f32 %v600, %v607
    %v610 = vmul.f32 %v608, 1.442695
    %v611 = vpow.pop %v610
    %v612 = vmul.f32 %v609, 1.442695
    %v613 = vpow.pop %v612
    %v614 = vsel %vm394, %v611, 0.0
    %615 = vadd.xlane.f32.xlu0 %v614
    %v616 = vpop.xlane.xlu0 %615
    %v617 = vsel %vm394, %v613, 0.0
    %618 = vadd.xlane.f32.xlu0 %v617
    %v619 = vpop.xlane.xlu0 %618
    %v620 = vrcp.pop %v616
    %v621 = vrcp.pop %v619
    %v622 = vmul.f32 %v611, %v620
    %v623 = vmul.f32 %v613, %v621
    %625 = vrot.lane.b32.xlu0 %v379, 120
    %v626 = vpop.permute.xlu0 %625
    %v629 = vsel %vm394, %v622, 0
    %631 = vmatpush.msra.mxu0 0.0
    %632 = vmatpush.msra.mxu0 0.0
    %633 = vmatpush.msra.mxu0 0.0
    %634 = vmatpush.msra.mxu0 0.0
    %635 = vmatpush.msra.mxu0 0.0
    %636 = vmatpush.msra.mxu0 0.0
    %637 = vmatpush.msra.mxu0 0.0
    %638 = vmatpush.msra.mxu0 0.0
    %639 = vmatpush.msra.mxu0 0.0
    %640 = vmatpush.msra.mxu0 0.0
    %641 = vmatpush.msra.mxu0 0.0
    %642 = vmatpush.msra.mxu0 0.0
    %643 = vmatpush.msra.mxu0 0.0
    %644 = vmatpush.msra.mxu0 0.0
    %645 = vmatpush.msra.mxu0 0.0
    %646 = vmatpush.msra.mxu0 %v626
    %647 = vmatmul.f32.gmra.mxu0 %v629
    %v648 = vpop.f32.mrf.mxu0
    %v649 = vadd.f32 0.0, %v648
    %650 = vdwg.mxu0
    %652 = vrot.lane.b32.xlu0 %v382, 120
    %v653 = vpop.permute.xlu0 %652
    %v656 = vsel %vm394, %v623, 0
    %658 = vmatpush.msra.mxu0 0.0
    %659 = vmatpush.msra.mxu0 0.0
    %660 = vmatpush.msra.mxu0 0.0
    %661 = vmatpush.msra.mxu0 0.0
    %662 = vmatpush.msra.mxu0 0.0
    %663 = vmatpush.msra.mxu0 0.0
    %664 = vmatpush.msra.mxu0 0.0
    %665 = vmatpush.msra.mxu0 0.0
    %666 = vmatpush.msra.mxu0 0.0
    %667 = vmatpush.msra.mxu0 0.0
    %668 = vmatpush.msra.mxu0 0.0
    %669 = vmatpush.msra.mxu0 0.0
    %670 = vmatpush.msra.mxu0 0.0
    %671 = vmatpush.msra.mxu0 0.0
    %672 = vmatpush.msra.mxu0 0.0
    %673 = vmatpush.msra.mxu0 %v653
    %674 = vmatmul.f32.gmra.mxu0 %v656
    %v675 = vpop.f32.mrf.mxu0
    %v676 = vadd.f32 0.0, %v675
    %677 = vdwg.mxu0
    %v679 = vsel %vm394, %v649, 0
    %v682 = vsel %vm394, %v676, 0
    %684 = vmatpush.msra.mxu0 0.0
    %685 = vmatpush.msra.mxu0 0.0
    %686 = vmatpush.msra.mxu0 0.0
    %687 = vmatpush.msra.mxu0 0.0
    %688 = vmatpush.msra.mxu0 0.0
    %689 = vmatpush.msra.mxu0 0.0
    %690 = vmatpush.msra.mxu0 0.0
    %691 = vmatpush.msra.mxu0 0.0
    %692 = vmatpush.msra.mxu0 0.0
    %693 = vmatpush.msra.mxu0 0.0
    %694 = vmatpush.msra.mxu0 0.0
    %695 = vmatpush.msra.mxu0 0.0
    %696 = vmatpush.msra.mxu0 0.0
    %697 = vmatpush.msra.mxu0 0.0
    %698 = vmatpush.msra.mxu0 0.0
    %699 = vmatpush.msra.mxu0 %v387
    %700 = vmatmul.f32.gmra.mxu0 %v679
    %v701 = vpop.f32.mrf.mxu0
    %v702 = vadd.f32 0.0, %v701
    %703 = vmatmul.f32.gmra.mxu0 %v682
    %v704 = vpop.f32.mrf.mxu0
    %v705 = vadd.f32 0.0, %v704
    %706 = vdwg.mxu0
    %v707 = vadd.f32 %v544, %v702
    %v708 = vadd.f32 %v545, %v705
    %709 = vrot.lane.b32.xlu0 %v384, 112
    %v710 = vpop.permute.xlu0 %709
    %711 = vrot.lane.b32.xlu0 %v348, 112
    %v712 = vpop.permute.xlu0 %711
    %v713 = vsel %vm394, %v710, 0
    %v715 = vsel %vm394, %v712, 0
    %717 = vmatpush.xpose.msra.mxu0 0.0
    %718 = vmatpush.xpose.msra.mxu0 0.0
    %719 = vmatpush.xpose.msra.mxu0 0.0
    %720 = vmatpush.xpose.msra.mxu0 0.0
    %721 = vmatpush.xpose.msra.mxu0 0.0
    %722 = vmatpush.xpose.msra.mxu0 0.0
    %723 = vmatpush.xpose.msra.mxu0 0.0
    %724 = vmatpush.xpose.msra.mxu0 0.0
    %725 = vmatpush.xpose.msra.mxu0 0.0
    %726 = vmatpush.xpose.msra.mxu0 0.0
    %727 = vmatpush.xpose.msra.mxu0 0.0
    %728 = vmatpush.xpose.msra.mxu0 0.0
    %729 = vmatpush.xpose.msra.mxu0 0.0
    %730 = vmatpush.xpose.msra.mxu0 0.0
    %731 = vmatpush.xpose.msra.mxu0 0.0
    %732 = vmatpush.xpose.msra.mxu0 %v715
    %733 = vmatmul.f32.gmra.mxu0 %v713
    %v734 = vpop.f32.mrf.mxu0
    %v735 = vadd.f32 %v228, %v734
    %736 = vdwg.mxu0
    %737 = vrot.lane.b32.xlu0 %v385, 112
    %v738 = vpop.permute.xlu0 %737
    %739 = vrot.lane.b32.xlu0 %v351, 112
    %v740 = vpop.permute.xlu0 %739
    %v741 = vsel %vm394, %v738, 0
    %v743 = vsel %vm394, %v740, 0
    %745 = vmatpush.xpose.msra.mxu0 0.0
    %746 = vmatpush.xpose.msra.mxu0 0.0
    %747 = vmatpush.xpose.msra.mxu0 0.0
    %748 = vmatpush.xpose.msra.mxu0 0.0
    %749 = vmatpush.xpose.msra.mxu0 0.0
    %750 = vmatpush.xpose.msra.mxu0 0.0
    %751 = vmatpush.xpose.msra.mxu0 0.0
    %752 = vmatpush.xpose.msra.mxu0 0.0
    %753 = vmatpush.xpose.msra.mxu0 0.0
    %754 = vmatpush.xpose.msra.mxu0 0.0
    %755 = vmatpush.xpose.msra.mxu0 0.0
    %756 = vmatpush.xpose.msra.mxu0 0.0
    %757 = vmatpush.xpose.msra.mxu0 0.0
    %758 = vmatpush.xpose.msra.mxu0 0.0
    %759 = vmatpush.xpose.msra.mxu0 0.0
    %760 = vmatpush.xpose.msra.mxu0 %v743
    %761 = vmatmul.f32.gmra.mxu0 %v741
    %v762 = vpop.f32.mrf.mxu0
    %v763 = vadd.f32 %v228, %v762
    %764 = vdwg.mxu0
    %v765 = vsel %vm394, %v735, -inf
    %766 = vmax.xlane.f32.xlu0 %v765
    %v767 = vpop.xlane.xlu0 %766
    %v768 = vsel %vm394, %v763, -inf
    %769 = vmax.xlane.f32.xlu0 %v768
    %v770 = vpop.xlane.xlu0 %769
    %v771 = vsub.f32 %v735, %v767
    %v772 = vsub.f32 %v763, %v770
    %v773 = vmul.f32 %v771, 1.442695
    %v774 = vpow.pop %v773
    %v775 = vmul.f32 %v772, 1.442695
    %v776 = vpow.pop %v775
    %v777 = vsel %vm394, %v774, 0.0
    %778 = vadd.xlane.f32.xlu0 %v777
    %v779 = vpop.xlane.xlu0 %778
    %v780 = vsel %vm394, %v776, 0.0
    %781 = vadd.xlane.f32.xlu0 %v780
    %v782 = vpop.xlane.xlu0 %781
    %v783 = vrcp.pop %v779
    %v784 = vrcp.pop %v782
    %v785 = vmul.f32 %v774, %v783
    %v786 = vmul.f32 %v776, %v784
    %787 = vrot.lane.b32.xlu0 %v379, 112
    %v788 = vpop.permute.xlu0 %787
    %v791 = vsel %vm394, %v785, 0
    %793 = vmatpush.msra.mxu0 0.0
    %794 = vmatpush.msra.mxu0 0.0
    %795 = vmatpush.msra.mxu0 0.0
    %796 = vmatpush.msra.mxu0 0.0
    %797 = vmatpush.msra.mxu0 0.0
    %798 = vmatpush.msra.mxu0 0.0
    %799 = vmatpush.msra.mxu0 0.0
    %800 = vmatpush.msra.mxu0 0.0
    %801 = vmatpush.msra.mxu0 0.0
    %802 = vmatpush.msra.mxu0 0.0
    %803 = vmatpush.msra.mxu0 0.0
    %804 = vmatpush.msra.mxu0 0.0
    %805 = vmatpush.msra.mxu0 0.0
    %806 = vmatpush.msra.mxu0 0.0
    %807 = vmatpush.msra.mxu0 0.0
    %808 = vmatpush.msra.mxu0 %v788
    %809 = vmatmul.f32.gmra.mxu0 %v791
    %v810 = vpop.f32.mrf.mxu0
    %v811 = vadd.f32 0.0, %v810
    %812 = vdwg.mxu0
    %813 = vrot.lane.b32.xlu0 %v382, 112
    %v814 = vpop.permute.xlu0 %813
    %v817 = vsel %vm394, %v786, 0
    %819 = vmatpush.msra.mxu0 0.0
    %820 = vmatpush.msra.mxu0 0.0
    %821 = vmatpush.msra.mxu0 0.0
    %822 = vmatpush.msra.mxu0 0.0
    %823 = vmatpush.msra.mxu0 0.0
    %824 = vmatpush.msra.mxu0 0.0
    %825 = vmatpush.msra.mxu0 0.0
    %826 = vmatpush.msra.mxu0 0.0
    %827 = vmatpush.msra.mxu0 0.0
    %828 = vmatpush.msra.mxu0 0.0
    %829 = vmatpush.msra.mxu0 0.0
    %830 = vmatpush.msra.mxu0 0.0
    %831 = vmatpush.msra.mxu0 0.0
    %832 = vmatpush.msra.mxu0 0.0
    %833 = vmatpush.msra.mxu0 0.0
    %834 = vmatpush.msra.mxu0 %v814
    %835 = vmatmul.f32.gmra.mxu0 %v817
    %v836 = vpop.f32.mrf.mxu0
    %v837 = vadd.f32 0.0, %v836
    %838 = vdwg.mxu0
    %v840 = vsel %vm394, %v811, 0
    %v843 = vsel %vm394, %v837, 0
    %845 = vmatpush.msra.mxu0 0.0
    %846 = vmatpush.msra.mxu0 0.0
    %847 = vmatpush.msra.mxu0 0.0
    %848 = vmatpush.msra.mxu0 0.0
    %849 = vmatpush.msra.mxu0 0.0
    %850 = vmatpush.msra.mxu0 0.0
    %851 = vmatpush.msra.mxu0 0.0
    %852 = vmatpush.msra.mxu0 0.0
    %853 = vmatpush.msra.mxu0 0.0
    %854 = vmatpush.msra.mxu0 0.0
    %855 = vmatpush.msra.mxu0 0.0
    %856 = vmatpush.msra.mxu0 0.0
    %857 = vmatpush.msra.mxu0 0.0
    %858 = vmatpush.msra.mxu0 0.0
    %859 = vmatpush.msra.mxu0 0.0
    %860 = vmatpush.msra.mxu0 %v388
    %861 = vmatmul.f32.gmra.mxu0 %v840
    %v862 = vpop.f32.mrf.mxu0
    %v863 = vadd.f32 0.0, %v862
    %864 = vmatmul.f32.gmra.mxu0 %v843
    %v865 = vpop.f32.mrf.mxu0
    %v866 = vadd.f32 0.0, %v865
    %867 = vdwg.mxu0
    %v868 = vadd.f32 %v707, %v863
    %v869 = vadd.f32 %v708, %v866
    %870 = vrot.lane.b32.xlu0 %v384, 104
    %v871 = vpop.permute.xlu0 %870
    %872 = vrot.lane.b32.xlu0 %v348, 104
    %v873 = vpop.permute.xlu0 %872
    %v874 = vsel %vm394, %v871, 0
    %v876 = vsel %vm394, %v873, 0
    %878 = vmatpush.xpose.msra.mxu0 0.0
    %879 = vmatpush.xpose.msra.mxu0 0.0
    %880 = vmatpush.xpose.msra.mxu0 0.0
    %881 = vmatpush.xpose.msra.mxu0 0.0
    %882 = vmatpush.xpose.msra.mxu0 0.0
    %883 = vmatpush.xpose.msra.mxu0 0.0
    %884 = vmatpush.xpose.msra.mxu0 0.0
    %885 = vmatpush.xpose.msra.mxu0 0.0
    %886 = vmatpush.xpose.msra.mxu0 0.0
    %887 = vmatpush.xpose.msra.mxu0 0.0
    %888 = vmatpush.xpose.msra.mxu0 0.0
    %889 = vmatpush.xpose.msra.mxu0 0.0
    %890 = vmatpush.xpose.msra.mxu0 0.0
    %891 = vmatpush.xpose.msra.mxu0 0.0
    %892 = vmatpush.xpose.msra.mxu0 0.0
    %893 = vmatpush.xpose.msra.mxu0 %v876
    %894 = vmatmul.f32.gmra.mxu0 %v874
    %v895 = vpop.f32.mrf.mxu0
    %v896 = vadd.f32 %v228, %v895
    %897 = vdwg.mxu0
    %898 = vrot.lane.b32.xlu0 %v385, 104
    %v899 = vpop.permute.xlu0 %898
    %900 = vrot.lane.b32.xlu0 %v351, 104
    %v901 = vpop.permute.xlu0 %900
    %v902 = vsel %vm394, %v899, 0
    %v904 = vsel %vm394, %v901, 0
    %906 = vmatpush.xpose.msra.mxu0 0.0
    %907 = vmatpush.xpose.msra.mxu0 0.0
    %908 = vmatpush.xpose.msra.mxu0 0.0
    %909 = vmatpush.xpose.msra.mxu0 0.0
    %910 = vmatpush.xpose.msra.mxu0 0.0
    %911 = vmatpush.xpose.msra.mxu0 0.0
    %912 = vmatpush.xpose.msra.mxu0 0.0
    %913 = vmatpush.xpose.msra.mxu0 0.0
    %914 = vmatpush.xpose.msra.mxu0 0.0
    %915 = vmatpush.xpose.msra.mxu0 0.0
    %916 = vmatpush.xpose.msra.mxu0 0.0
    %917 = vmatpush.xpose.msra.mxu0 0.0
    %918 = vmatpush.xpose.msra.mxu0 0.0
    %919 = vmatpush.xpose.msra.mxu0 0.0
    %920 = vmatpush.xpose.msra.mxu0 0.0
    %921 = vmatpush.xpose.msra.mxu0 %v904
    %922 = vmatmul.f32.gmra.mxu0 %v902
    %v923 = vpop.f32.mrf.mxu0
    %v924 = vadd.f32 %v228, %v923
    %925 = vdwg.mxu0
    %v926 = vsel %vm394, %v896, -inf
    %927 = vmax.xlane.f32.xlu0 %v926
    %v928 = vpop.xlane.xlu0 %927
    %v929 = vsel %vm394, %v924, -inf
    %930 = vmax.xlane.f32.xlu0 %v929
    %v931 = vpop.xlane.xlu0 %930
    %v932 = vsub.f32 %v896, %v928
    %v933 = vsub.f32 %v924, %v931
    %v934 = vmul.f32 %v932, 1.442695
    %v935 = vpow.pop %v934
    %v936 = vmul.f32 %v933, 1.442695
    %v937 = vpow.pop %v936
    %v938 = vsel %vm394, %v935, 0.0
    %939 = vadd.xlane.f32.xlu0 %v938
    %v940 = vpop.xlane.xlu0 %939
    %v941 = vsel %vm394, %v937, 0.0
    %942 = vadd.xlane.f32.xlu0 %v941
    %v943 = vpop.xlane.xlu0 %942
    %v944 = vrcp.pop %v940
    %v945 = vrcp.pop %v943
    %v946 = vmul.f32 %v935, %v944
    %v947 = vmul.f32 %v937, %v945
    %948 = vrot.lane.b32.xlu0 %v379, 104
    %v949 = vpop.permute.xlu0 %948
    %v952 = vsel %vm394, %v946, 0
    %954 = vmatpush.msra.mxu0 0.0
    %955 = vmatpush.msra.mxu0 0.0
    %956 = vmatpush.msra.mxu0 0.0
    %957 = vmatpush.msra.mxu0 0.0
    %958 = vmatpush.msra.mxu0 0.0
    %959 = vmatpush.msra.mxu0 0.0
    %960 = vmatpush.msra.mxu0 0.0
    %961 = vmatpush.msra.mxu0 0.0
    %962 = vmatpush.msra.mxu0 0.0
    %963 = vmatpush.msra.mxu0 0.0
    %964 = vmatpush.msra.mxu0 0.0
    %965 = vmatpush.msra.mxu0 0.0
    %966 = vmatpush.msra.mxu0 0.0
    %967 = vmatpush.msra.mxu0 0.0
    %968 = vmatpush.msra.mxu0 0.0
    %969 = vmatpush.msra.mxu0 %v949
    %970 = vmatmul.f32.gmra.mxu0 %v952
    %v971 = vpop.f32.mrf.mxu0
    %v972 = vadd.f32 0.0, %v971
    %973 = vdwg.mxu0
    %974 = vrot.lane.b32.xlu0 %v382, 104
    %v975 = vpop.permute.xlu0 %974
    %v978 = vsel %vm394, %v947, 0
    %980 = vmatpush.msra.mxu0 0.0
    %981 = vmatpush.msra.mxu0 0.0
    %982 = vmatpush.msra.mxu0 0.0
    %983 = vmatpush.msra.mxu0 0.0
    %984 = vmatpush.msra.mxu0 0.0
    %985 = vmatpush.msra.mxu0 0.0
    %986 = vmatpush.msra.mxu0 0.0
    %987 = vmatpush.msra.mxu0 0.0
    %988 = vmatpush.msra.mxu0 0.0
    %989 = vmatpush.msra.mxu0 0.0
    %990 = vmatpush.msra.mxu0 0.0
    %991 = vmatpush.msra.mxu0 0.0
    %992 = vmatpush.msra.mxu0 0.0
    %993 = vmatpush.msra.mxu0 0.0
    %994 = vmatpush.msra.mxu0 0.0
    %995 = vmatpush.msra.mxu0 %v975
    %996 = vmatmul.f32.gmra.mxu0 %v978
    %v997 = vpop.f32.mrf.mxu0
    %v998 = vadd.f32 0.0, %v997
    %999 = vdwg.mxu0
    %v1001 = vsel %vm394, %v972, 0
    %v1004 = vsel %vm394, %v998, 0
    %1006 = vmatpush.msra.mxu0 0.0
    %1007 = vmatpush.msra.mxu0 0.0
    %1008 = vmatpush.msra.mxu0 0.0
    %1009 = vmatpush.msra.mxu0 0.0
    %1010 = vmatpush.msra.mxu0 0.0
    %1011 = vmatpush.msra.mxu0 0.0
    %1012 = vmatpush.msra.mxu0 0.0
    %1013 = vmatpush.msra.mxu0 0.0
    %1014 = vmatpush.msra.mxu0 0.0
    %1015 = vmatpush.msra.mxu0 0.0
    %1016 = vmatpush.msra.mxu0 0.0
    %1017 = vmatpush.msra.mxu0 0.0
    %1018 = vmatpush.msra.mxu0 0.0
    %1019 = vmatpush.msra.mxu0 0.0
    %1020 = vmatpush.msra.mxu0 0.0
    %1021 = vmatpush.msra.mxu0 %v389
    %1022 = vmatmul.f32.gmra.mxu0 %v1001
    %v1023 = vpop.f32.mrf.mxu0
    %v1024 = vadd.f32 0.0, %v1023
    %1025 = vmatmul.f32.gmra.mxu0 %v1004
    %v1026 = vpop.f32.mrf.mxu0
    %v1027 = vadd.f32 0.0, %v1026
    %1028 = vdwg.mxu0
    %v1029 = vadd.f32 %v868, %v1024
    %v1030 = vadd.f32 %v869, %v1027
    %v1031 = vadd.f32 %v223, %v1029
    %v1032 = vadd.f32 %v224, %v1030
    %v1033 = vld [vmem:[%s15] sm:$0x1]
    %v1034 = vld [vmem:[%s16] sm:$0x1]
    %v1035 = vsel %vm163, %v1031, 0.0
    %1036 = vadd.xlane.f32.xlu0 %v1035
    %v1037 = vpop.xlane.xlu0 %1036
    %v1038 = vsel %vm163, %v1032, 0.0
    %1039 = vadd.xlane.f32.xlu0 %v1038
    %v1040 = vpop.xlane.xlu0 %1039
    %v1041 = vmul.f32 %v1037, %v176
    %v1042 = vmul.f32 %v1040, %v176
    %v1043 = vsub.f32 %v1031, %v1041
    %v1044 = vsub.f32 %v1032, %v1042
    %v1045 = vmul.f32 %v1043, %v1043
    %v1046 = vmul.f32 %v1044, %v1044
    %v1047 = vsel %vm163, %v1045, 0.0
    %1048 = vadd.xlane.f32.xlu0 %v1047
    %v1049 = vpop.xlane.xlu0 %1048
    %v1050 = vsel %vm163, %v1046, 0.0
    %1051 = vadd.xlane.f32.xlu0 %v1050
    %v1052 = vpop.xlane.xlu0 %1051
    %v1053 = vmul.f32 %v1049, %v176
    %v1054 = vmul.f32 %v1052, %v176
    %v1055 = vadd.f32 %v1053, 1e-05
    %v1056 = vadd.f32 %v1054, 1e-05
    %v1057 = vrsqrt.pop %v1055
    %v1058 = vmul.f32 %v1057, %v1055
    %v1059 = vmul.f32 %v1058, %v1057
    %v1060 = vmul.f32 0.5, %v1059
    %v1061 = vsub.f32 1.5, %v1060
    %v1062 = vmul.f32 %v1057, %v1061
    %vm1063 = vweird.f32 %v1055
    %vm1064 = vweird.f32 %v1057
    %vm1065 = vmor %vm1063, %vm1064
    %v1066 = vsel %vm1065, %v1057, %v1062
    %v1067 = vrsqrt.pop %v1056
    %v1068 = vmul.f32 %v1067, %v1056
    %v1069 = vmul.f32 %v1068, %v1067
    %v1070 = vmul.f32 0.5, %v1069
    %v1071 = vsub.f32 1.5, %v1070
    %v1072 = vmul.f32 %v1067, %v1071
    %vm1073 = vweird.f32 %v1056
    %vm1074 = vweird.f32 %v1067
    %vm1075 = vmor %vm1073, %vm1074
    %v1076 = vsel %vm1075, %v1067, %v1072
    %v1077 = vmul.f32 %v1043, %v1066
    %v1078 = vmul.f32 %v1044, %v1076
    %v1080 = vperm.slane %v1033, 0
    %v1082 = vmul.f32 %v1077, %v1080
    %v1083 = vmul.f32 %v1078, %v1080
    %v1085 = vperm.slane %v1034, 0
    %v1087 = vadd.f32 %v1082, %v1085
    %v1088 = vadd.f32 %v1083, %v1085
    %v1089 = vld [vmem:[%s17] sm:$0xff]
    %v1090 = vld [vmem:[%s17 + $0x8] sm:$0xff]
    %v1091 = vld [vmem:[%s17 + $0x10] sm:$0xff]
    %v1092 = vld [vmem:[%s17 + $0x18] sm:$0xff]
    %v1093 = vld [vmem:[%s18] sm:$0x1]
    %v1095 = vperm.slane %v1093, 0
    %v1098 = vsel %vm163, %v1087, 0
    %v1101 = vsel %vm163, %v1088, 0
    %1103 = vmatpush.msra.mxu0 0.0
    %1104 = vmatpush.msra.mxu0 0.0
    %1105 = vmatpush.msra.mxu0 0.0
    %1106 = vmatpush.msra.mxu0 0.0
    %1107 = vmatpush.msra.mxu0 0.0
    %1108 = vmatpush.msra.mxu0 0.0
    %1109 = vmatpush.msra.mxu0 0.0
    %1110 = vmatpush.msra.mxu0 0.0
    %1111 = vmatpush.msra.mxu0 0.0
    %1112 = vmatpush.msra.mxu0 0.0
    %1113 = vmatpush.msra.mxu0 0.0
    %1114 = vmatpush.msra.mxu0 0.0
    %1115 = vmatpush.msra.mxu0 %v1092
    %1116 = vmatpush.msra.mxu0 %v1091
    %1117 = vmatpush.msra.mxu0 %v1090
    %1118 = vmatpush.msra.mxu0 %v1089
    %1119 = vmatmul.f32.gmra.mxu0 %v1098
    %v1120 = vpop.f32.mrf.mxu0
    %v1121 = vadd.f32 %v1095, %v1120
    %1122 = vmatmul.f32.gmra.mxu0 %v1101
    %v1123 = vpop.f32.mrf.mxu0
    %v1124 = vadd.f32 %v1095, %v1123
    %1125 = vdwg.mxu0
    %v1126 = vmul.f32 %v1121, 1.702
    %v1127 = vmul.f32 %v1124, 1.702
    %v1128 = vxor.u32 %v1126, 2147483648
    %v1129 = vxor.u32 %v1127, 2147483648
    %v1130 = vmul.f32 %v1128, 1.442695
    %v1131 = vpow.pop %v1130
    %v1132 = vmul.f32 %v1129, 1.442695
    %v1133 = vpow.pop %v1132
    %v1134 = vadd.f32 %v1131, 1.0
    %v1135 = vadd.f32 %v1133, 1.0
    %v1136 = vrcp.pop %v1134
    %v1137 = vmul.f32 %v1134, %v1136
    %v1138 = vsub.f32 1.0, %v1137
    %v1139 = vmul.f32 %v1136, %v1138
    %v1140 = vadd.f32 %v1136, %v1139
    %vm1141 = vweird.f32 %v1134
    %vm1142 = vweird.f32 %v1136
    %vm1143 = vmor %vm1141, %vm1142
    %v1144 = vsel %vm1143, %v1136, %v1140
    %v1145 = vand.u32 2147483647, %v1134
    %vm1146 = vcmp.eq.f32.partialorder %v1145, 8.507059e+37
    %v1147 = vand.u32 %v1134, 2147483648
    %v1148 = vor.u32 1.1754944e-38, %v1147
    %v1149 = vsel %vm1146, %v1148, %v1144
    %v1150 = vmul.f32 1.0, %v1149
    %v1151 = vrcp.pop %v1135
    %v1152 = vmul.f32 %v1135, %v1151
    %v1153 = vsub.f32 1.0, %v1152
    %v1154 = vmul.f32 %v1151, %v1153
    %v1155 = vadd.f32 %v1151, %v1154
    %vm1156 = vweird.f32 %v1135
    %vm1157 = vweird.f32 %v1151
    %vm1158 = vmor %vm1156, %vm1157
    %v1159 = vsel %vm1158, %v1151, %v1155
    %v1160 = vand.u32 2147483647, %v1135
    %vm1161 = vcmp.eq.f32.partialorder %v1160, 8.507059e+37
    %v1162 = vand.u32 %v1135, 2147483648
    %v1163 = vor.u32 1.1754944e-38, %v1162
    %v1164 = vsel %vm1161, %v1163, %v1159
    %v1165 = vmul.f32 1.0, %v1164
    %v1166 = vmul.f32 %v1121, %v1150
    %v1167 = vmul.f32 %v1124, %v1165
    %v1168 = vld [vmem:[%s19] sm:$0xff]
    %v1169 = vld [vmem:[%s19 + $0x8] sm:$0xff]
    %v1170 = vld [vmem:[%s19 + $0x10] sm:$0xff]
    %v1171 = vld [vmem:[%s19 + $0x18] sm:$0xff]
    %v1172 = vld [vmem:[%s19 + $0x20] sm:$0xff]
    %v1173 = vld [vmem:[%s19 + $0x28] sm:$0xff]
    %v1174 = vld [vmem:[%s19 + $0x30] sm:$0xff]
    %v1175 = vld [vmem:[%s19 + $0x38] sm:$0xff]
    %v1176 = vld [vmem:[%s19 + $0x40] sm:$0xff]
    %v1177 = vld [vmem:[%s19 + $0x48] sm:$0xff]
    %v1178 = vld [vmem:[%s19 + $0x50] sm:$0xff]
    %v1179 = vld [vmem:[%s19 + $0x58] sm:$0xff]
    %v1180 = vld [vmem:[%s19 + $0x60] sm:$0xff]
    %v1181 = vld [vmem:[%s19 + $0x68] sm:$0xff]
    %v1182 = vld [vmem:[%s19 + $0x70] sm:$0xff]
    %v1183 = vld [vmem:[%s19 + $0x78] sm:$0xff]
    %v1184 = vld [vmem:[%s20] sm:$0x1]
    %v1186 = vperm.slane %v1184, 0
    %1188 = vmatpush.msra.mxu0 %v1183
    %1189 = vmatpush.msra.mxu0 %v1182
    %1190 = vmatpush.msra.mxu0 %v1181
    %1191 = vmatpush.msra.mxu0 %v1180
    %1192 = vmatpush.msra.mxu0 %v1179
    %1193 = vmatpush.msra.mxu0 %v1178
    %1194 = vmatpush.msra.mxu0 %v1177
    %1195 = vmatpush.msra.mxu0 %v1176
    %1196 = vmatpush.msra.mxu0 %v1175
    %1197 = vmatpush.msra.mxu0 %v1174
    %1198 = vmatpush.msra.mxu0 %v1173
    %1199 = vmatpush.msra.mxu0 %v1172
    %1200 = vmatpush.msra.mxu0 %v1171
    %1201 = vmatpush.msra.mxu0 %v1170
    %1202 = vmatpush.msra.mxu0 %v1169
    %1203 = vmatpush.msra.mxu0 %v1168
    %1204 = vmatmul.f32.gmra.mxu0 %v1166
    %v1205 = vpop.f32.mrf.mxu0
    %v1206 = vadd.f32 %v1186, %v1205
    %1207 = vmatmul.f32.gmra.mxu0 %v1167
    %v1208 = vpop.f32.mrf.mxu0
    %v1209 = vadd.f32 %v1186, %v1208
    %1210 = vdwg.mxu0
    %v1211 = vadd.f32 %v1031, %v1206
    %v1212 = vadd.f32 %v1032, %v1209
    %s1213 = scalar_lea.vmem %s5, 1
    %v1214 = vld [vmem:[%s1213] sm:$0x1]
    %s1215 = scalar_lea.vmem %s6, 1
    %v1216 = vld [vmem:[%s1215] sm:$0x1]
    %v1217 = vsel %vm163, %v1211, 0.0
    %1218 = vadd.xlane.f32.xlu0 %v1217
    %v1219 = vpop.xlane.xlu0 %1218
    %v1220 = vsel %vm163, %v1212, 0.0
    %1221 = vadd.xlane.f32.xlu0 %v1220
    %v1222 = vpop.xlane.xlu0 %1221
    %v1223 = vmul.f32 %v1219, %v176
    %v1224 = vmul.f32 %v1222, %v176
    %v1225 = vsub.f32 %v1211, %v1223
    %v1226 = vsub.f32 %v1212, %v1224
    %v1227 = vmul.f32 %v1225, %v1225
    %v1228 = vmul.f32 %v1226, %v1226
    %v1229 = vsel %vm163, %v1227, 0.0
    %1230 = vadd.xlane.f32.xlu0 %v1229
    %v1231 = vpop.xlane.xlu0 %1230
    %v1232 = vsel %vm163, %v1228, 0.0
    %1233 = vadd.xlane.f32.xlu0 %v1232
    %v1234 = vpop.xlane.xlu0 %1233
    %v1235 = vmul.f32 %v1231, %v176
    %v1236 = vmul.f32 %v1234, %v176
    %v1237 = vadd.f32 %v1235, 1e-05
    %v1238 = vadd.f32 %v1236, 1e-05
    %v1239 = vrsqrt.pop %v1237
    %v1240 = vmul.f32 %v1239, %v1237
    %v1241 = vmul.f32 %v1240, %v1239
    %v1242 = vmul.f32 0.5, %v1241
    %v1243 = vsub.f32 1.5, %v1242
    %v1244 = vmul.f32 %v1239, %v1243
    %vm1245 = vweird.f32 %v1237
    %vm1246 = vweird.f32 %v1239
    %vm1247 = vmor %vm1245, %vm1246
    %v1248 = vsel %vm1247, %v1239, %v1244
    %v1249 = vrsqrt.pop %v1238
    %v1250 = vmul.f32 %v1249, %v1238
    %v1251 = vmul.f32 %v1250, %v1249
    %v1252 = vmul.f32 0.5, %v1251
    %v1253 = vsub.f32 1.5, %v1252
    %v1254 = vmul.f32 %v1249, %v1253
    %vm1255 = vweird.f32 %v1238
    %vm1256 = vweird.f32 %v1249
    %vm1257 = vmor %vm1255, %vm1256
    %v1258 = vsel %vm1257, %v1249, %v1254
    %v1259 = vmul.f32 %v1225, %v1248
    %v1260 = vmul.f32 %v1226, %v1258
    %v1262 = vperm.slane %v1214, 0
    %v1264 = vmul.f32 %v1259, %v1262
    %v1265 = vmul.f32 %v1260, %v1262
    %v1267 = vperm.slane %v1216, 0
    %v1269 = vadd.f32 %v1264, %v1267
    %v1270 = vadd.f32 %v1265, %v1267
    %s1271 = scalar_lea.vmem %s7, 32
    %v1272 = vld [vmem:[%s1271] sm:$0xff]
    %v1273 = vld [vmem:[%s1271 + $0x8] sm:$0xff]
    %v1274 = vld [vmem:[%s1271 + $0x10] sm:$0xff]
    %v1275 = vld [vmem:[%s1271 + $0x18] sm:$0xff]
    %s1276 = scalar_lea.vmem %s8, 1
    %v1277 = vld [vmem:[%s1276] sm:$0x1]
    %v1279 = vperm.slane %v1277, 0
    %v1282 = vsel %vm163, %v1269, 0
    %v1285 = vsel %vm163, %v1270, 0
    %1287 = vmatpush.msra.mxu0 0.0
    %1288 = vmatpush.msra.mxu0 0.0
    %1289 = vmatpush.msra.mxu0 0.0
    %1290 = vmatpush.msra.mxu0 0.0
    %1291 = vmatpush.msra.mxu0 0.0
    %1292 = vmatpush.msra.mxu0 0.0
    %1293 = vmatpush.msra.mxu0 0.0
    %1294 = vmatpush.msra.mxu0 0.0
    %1295 = vmatpush.msra.mxu0 0.0
    %1296 = vmatpush.msra.mxu0 0.0
    %1297 = vmatpush.msra.mxu0 0.0
    %1298 = vmatpush.msra.mxu0 0.0
    %1299 = vmatpush.msra.mxu0 %v1275
    %1300 = vmatpush.msra.mxu0 %v1274
    %1301 = vmatpush.msra.mxu0 %v1273
    %1302 = vmatpush.msra.mxu0 %v1272
    %1303 = vmatmul.f32.gmra.mxu0 %v1282
    %v1304 = vpop.f32.mrf.mxu0
    %v1305 = vadd.f32 %v1279, %v1304
    %1306 = vmatmul.f32.gmra.mxu0 %v1285
    %v1307 = vpop.f32.mrf.mxu0
    %v1308 = vadd.f32 %v1279, %v1307
    %1309 = vdwg.mxu0
    %s1310 = scalar_lea.vmem %s9, 32
    %v1311 = vld [vmem:[%s1310] sm:$0xff]
    %v1312 = vld [vmem:[%s1310 + $0x8] sm:$0xff]
    %v1313 = vld [vmem:[%s1310 + $0x10] sm:$0xff]
    %v1314 = vld [vmem:[%s1310 + $0x18] sm:$0xff]
    %s1315 = scalar_lea.vmem %s10, 1
    %v1316 = vld [vmem:[%s1315] sm:$0x1]
    %v1318 = vperm.slane %v1316, 0
    %1320 = vmatpush.msra.mxu0 0.0
    %1321 = vmatpush.msra.mxu0 0.0
    %1322 = vmatpush.msra.mxu0 0.0
    %1323 = vmatpush.msra.mxu0 0.0
    %1324 = vmatpush.msra.mxu0 0.0
    %1325 = vmatpush.msra.mxu0 0.0
    %1326 = vmatpush.msra.mxu0 0.0
    %1327 = vmatpush.msra.mxu0 0.0
    %1328 = vmatpush.msra.mxu0 0.0
    %1329 = vmatpush.msra.mxu0 0.0
    %1330 = vmatpush.msra.mxu0 0.0
    %1331 = vmatpush.msra.mxu0 0.0
    %1332 = vmatpush.msra.mxu0 %v1314
    %1333 = vmatpush.msra.mxu0 %v1313
    %1334 = vmatpush.msra.mxu0 %v1312
    %1335 = vmatpush.msra.mxu0 %v1311
    %1336 = vmatmul.f32.gmra.mxu0 %v1282
    %v1337 = vpop.f32.mrf.mxu0
    %v1338 = vadd.f32 %v1318, %v1337
    %1339 = vmatmul.f32.gmra.mxu0 %v1285
    %v1340 = vpop.f32.mrf.mxu0
    %v1341 = vadd.f32 %v1318, %v1340
    %1342 = vdwg.mxu0
    %s1343 = scalar_lea.vmem %s11, 32
    %v1344 = vld [vmem:[%s1343] sm:$0xff]
    %v1345 = vld [vmem:[%s1343 + $0x8] sm:$0xff]
    %v1346 = vld [vmem:[%s1343 + $0x10] sm:$0xff]
    %v1347 = vld [vmem:[%s1343 + $0x18] sm:$0xff]
    %s1348 = scalar_lea.vmem %s12, 1
    %v1349 = vld [vmem:[%s1348] sm:$0x1]
    %v1351 = vperm.slane %v1349, 0
    %1353 = vmatpush.msra.mxu0 0.0
    %1354 = vmatpush.msra.mxu0 0.0
    %1355 = vmatpush.msra.mxu0 0.0
    %1356 = vmatpush.msra.mxu0 0.0
    %1357 = vmatpush.msra.mxu0 0.0
    %1358 = vmatpush.msra.mxu0 0.0
    %1359 = vmatpush.msra.mxu0 0.0
    %1360 = vmatpush.msra.mxu0 0.0
    %1361 = vmatpush.msra.mxu0 0.0
    %1362 = vmatpush.msra.mxu0 0.0
    %1363 = vmatpush.msra.mxu0 0.0
    %1364 = vmatpush.msra.mxu0 0.0
    %1365 = vmatpush.msra.mxu0 %v1347
    %1366 = vmatpush.msra.mxu0 %v1346
    %1367 = vmatpush.msra.mxu0 %v1345
    %1368 = vmatpush.msra.mxu0 %v1344
    %1369 = vmatmul.f32.gmra.mxu0 %v1282
    %v1370 = vpop.f32.mrf.mxu0
    %v1371 = vadd.f32 %v1351, %v1370
    %1372 = vmatmul.f32.gmra.mxu0 %v1285
    %v1373 = vpop.f32.mrf.mxu0
    %v1374 = vadd.f32 %v1351, %v1373
    %1375 = vdwg.mxu0
    %v1376 = vmul.f32 %v1305, 0.35355338
    %v1377 = vmul.f32 %v1308, 0.35355338
    %s1378 = scalar_lea.vmem %s13, 32
    %v1379 = vld [vmem:[%s1378] sm:$0xff]
    %v1380 = vld [vmem:[%s1378 + $0x8] sm:$0xff]
    %v1381 = vld [vmem:[%s1378 + $0x10] sm:$0xff]
    %v1382 = vld [vmem:[%s1378 + $0x18] sm:$0xff]
    %s1383 = scalar_lea.vmem %s14, 1
    %v1384 = vld [vmem:[%s1383] sm:$0x1]
    %v1386 = vperm.slane %v1384, 0
    %v1389 = vsel %vm394, %v1376, 0
    %v1392 = vsel %vm394, %v1338, 0
    %1394 = vmatpush.xpose.msra.mxu0 0.0
    %1395 = vmatpush.xpose.msra.mxu0 0.0
    %1396 = vmatpush.xpose.msra.mxu0 0.0
    %1397 = vmatpush.xpose.msra.mxu0 0.0
    %1398 = vmatpush.xpose.msra.mxu0 0.0
    %1399 = vmatpush.xpose.msra.mxu0 0.0
    %1400 = vmatpush.xpose.msra.mxu0 0.0
    %1401 = vmatpush.xpose.msra.mxu0 0.0
    %1402 = vmatpush.xpose.msra.mxu0 0.0
    %1403 = vmatpush.xpose.msra.mxu0 0.0
    %1404 = vmatpush.xpose.msra.mxu0 0.0
    %1405 = vmatpush.xpose.msra.mxu0 0.0
    %1406 = vmatpush.xpose.msra.mxu0 0.0
    %1407 = vmatpush.xpose.msra.mxu0 0.0
    %1408 = vmatpush.xpose.msra.mxu0 0.0
    %1409 = vmatpush.xpose.msra.mxu0 %v1392
    %1410 = vmatmul.f32.gmra.mxu0 %v1389
    %v1411 = vpop.f32.mrf.mxu0
    %v1412 = vadd.f32 %v228, %v1411
    %1413 = vdwg.mxu0
    %v1415 = vsel %vm394, %v1377, 0
    %v1418 = vsel %vm394, %v1341, 0
    %1420 = vmatpush.xpose.msra.mxu0 0.0
    %1421 = vmatpush.xpose.msra.mxu0 0.0
    %1422 = vmatpush.xpose.msra.mxu0 0.0
    %1423 = vmatpush.xpose.msra.mxu0 0.0
    %1424 = vmatpush.xpose.msra.mxu0 0.0
    %1425 = vmatpush.xpose.msra.mxu0 0.0
    %1426 = vmatpush.xpose.msra.mxu0 0.0
    %1427 = vmatpush.xpose.msra.mxu0 0.0
    %1428 = vmatpush.xpose.msra.mxu0 0.0
    %1429 = vmatpush.xpose.msra.mxu0 0.0
    %1430 = vmatpush.xpose.msra.mxu0 0.0
    %1431 = vmatpush.xpose.msra.mxu0 0.0
    %1432 = vmatpush.xpose.msra.mxu0 0.0
    %1433 = vmatpush.xpose.msra.mxu0 0.0
    %1434 = vmatpush.xpose.msra.mxu0 0.0
    %1435 = vmatpush.xpose.msra.mxu0 %v1418
    %1436 = vmatmul.f32.gmra.mxu0 %v1415
    %v1437 = vpop.f32.mrf.mxu0
    %v1438 = vadd.f32 %v228, %v1437
    %1439 = vdwg.mxu0
    %v1440 = vsel %vm394, %v1412, -inf
    %1441 = vmax.xlane.f32.xlu0 %v1440
    %v1442 = vpop.xlane.xlu0 %1441
    %v1443 = vsel %vm394, %v1438, -inf
    %1444 = vmax.xlane.f32.xlu0 %v1443
    %v1445 = vpop.xlane.xlu0 %1444
    %v1446 = vsub.f32 %v1412, %v1442
    %v1447 = vsub.f32 %v1438, %v1445
    %v1448 = vmul.f32 %v1446, 1.442695
    %v1449 = vpow.pop %v1448
    %v1450 = vmul.f32 %v1447, 1.442695
    %v1451 = vpow.pop %v1450
    %v1452 = vsel %vm394, %v1449, 0.0
    %1453 = vadd.xlane.f32.xlu0 %v1452
    %v1454 = vpop.xlane.xlu0 %1453
    %v1455 = vsel %vm394, %v1451, 0.0
    %1456 = vadd.xlane.f32.xlu0 %v1455
    %v1457 = vpop.xlane.xlu0 %1456
    %v1458 = vrcp.pop %v1454
    %v1459 = vrcp.pop %v1457
    %v1460 = vmul.f32 %v1449, %v1458
    %v1461 = vmul.f32 %v1451, %v1459
    %v1463 = vsel %vm394, %v1460, 0
    %1465 = vmatpush.msra.mxu0 0.0
    %1466 = vmatpush.msra.mxu0 0.0
    %1467 = vmatpush.msra.mxu0 0.0
    %1468 = vmatpush.msra.mxu0 0.0
    %1469 = vmatpush.msra.mxu0 0.0
    %1470 = vmatpush.msra.mxu0 0.0
    %1471 = vmatpush.msra.mxu0 0.0
    %1472 = vmatpush.msra.mxu0 0.0
    %1473 = vmatpush.msra.mxu0 0.0
    %1474 = vmatpush.msra.mxu0 0.0
    %1475 = vmatpush.msra.mxu0 0.0
    %1476 = vmatpush.msra.mxu0 0.0
    %1477 = vmatpush.msra.mxu0 0.0
    %1478 = vmatpush.msra.mxu0 0.0
    %1479 = vmatpush.msra.mxu0 0.0
    %1480 = vmatpush.msra.mxu0 %v1371
    %1481 = vmatmul.f32.gmra.mxu0 %v1463
    %v1482 = vpop.f32.mrf.mxu0
    %v1483 = vadd.f32 0.0, %v1482
    %1484 = vdwg.mxu0
    %v1486 = vsel %vm394, %v1461, 0
    %1488 = vmatpush.msra.mxu0 0.0
    %1489 = vmatpush.msra.mxu0 0.0
    %1490 = vmatpush.msra.mxu0 0.0
    %1491 = vmatpush.msra.mxu0 0.0
    %1492 = vmatpush.msra.mxu0 0.0
    %1493 = vmatpush.msra.mxu0 0.0
    %1494 = vmatpush.msra.mxu0 0.0
    %1495 = vmatpush.msra.mxu0 0.0
    %1496 = vmatpush.msra.mxu0 0.0
    %1497 = vmatpush.msra.mxu0 0.0
    %1498 = vmatpush.msra.mxu0 0.0
    %1499 = vmatpush.msra.mxu0 0.0
    %1500 = vmatpush.msra.mxu0 0.0
    %1501 = vmatpush.msra.mxu0 0.0
    %1502 = vmatpush.msra.mxu0 0.0
    %1503 = vmatpush.msra.mxu0 %v1374
    %1504 = vmatmul.f32.gmra.mxu0 %v1486
    %v1505 = vpop.f32.mrf.mxu0
    %v1506 = vadd.f32 0.0, %v1505
    %1507 = vdwg.mxu0
    %v1509 = vsel %vm394, %v1483, 0
    %v1512 = vsel %vm394, %v1506, 0
    %1514 = vmatpush.msra.mxu0 0.0
    %1515 = vmatpush.msra.mxu0 0.0
    %1516 = vmatpush.msra.mxu0 0.0
    %1517 = vmatpush.msra.mxu0 0.0
    %1518 = vmatpush.msra.mxu0 0.0
    %1519 = vmatpush.msra.mxu0 0.0
    %1520 = vmatpush.msra.mxu0 0.0
    %1521 = vmatpush.msra.mxu0 0.0
    %1522 = vmatpush.msra.mxu0 0.0
    %1523 = vmatpush.msra.mxu0 0.0
    %1524 = vmatpush.msra.mxu0 0.0
    %1525 = vmatpush.msra.mxu0 0.0
    %1526 = vmatpush.msra.mxu0 0.0
    %1527 = vmatpush.msra.mxu0 0.0
    %1528 = vmatpush.msra.mxu0 0.0
    %1529 = vmatpush.msra.mxu0 %v1379
    %1530 = vmatmul.f32.gmra.mxu0 %v1509
    %v1531 = vpop.f32.mrf.mxu0
    %v1532 = vadd.f32 0.0, %v1531
    %1533 = vmatmul.f32.gmra.mxu0 %v1512
    %v1534 = vpop.f32.mrf.mxu0
    %v1535 = vadd.f32 0.0, %v1534
    %1536 = vdwg.mxu0
    %v1537 = vadd.f32 %v1386, %v1532
    %v1538 = vadd.f32 %v1386, %v1535
    %1539 = vrot.lane.b32.xlu0 %v1376, 120
    %v1540 = vpop.permute.xlu0 %1539
    %1541 = vrot.lane.b32.xlu0 %v1338, 120
    %v1542 = vpop.permute.xlu0 %1541
    %v1543 = vsel %vm394, %v1540, 0
    %v1545 = vsel %vm394, %v1542, 0
    %1547 = vmatpush.xpose.msra.mxu0 0.0
    %1548 = vmatpush.xpose.msra.mxu0 0.0
    %1549 = vmatpush.xpose.msra.mxu0 0.0
    %1550 = vmatpush.xpose.msra.mxu0 0.0
    %1551 = vmatpush.xpose.msra.mxu0 0.0
    %1552 = vmatpush.xpose.msra.mxu0 0.0
    %1553 = vmatpush.xpose.msra.mxu0 0.0
    %1554 = vmatpush.xpose.msra.mxu0 0.0
    %1555 = vmatpush.xpose.msra.mxu0 0.0
    %1556 = vmatpush.xpose.msra.mxu0 0.0
    %1557 = vmatpush.xpose.msra.mxu0 0.0
    %1558 = vmatpush.xpose.msra.mxu0 0.0
    %1559 = vmatpush.xpose.msra.mxu0 0.0
    %1560 = vmatpush.xpose.msra.mxu0 0.0
    %1561 = vmatpush.xpose.msra.mxu0 0.0
    %1562 = vmatpush.xpose.msra.mxu0 %v1545
    %1563 = vmatmul.f32.gmra.mxu0 %v1543
    %v1564 = vpop.f32.mrf.mxu0
    %v1565 = vadd.f32 %v228, %v1564
    %1566 = vdwg.mxu0
    %1567 = vrot.lane.b32.xlu0 %v1377, 120
    %v1568 = vpop.permute.xlu0 %1567
    %1569 = vrot.lane.b32.xlu0 %v1341, 120
    %v1570 = vpop.permute.xlu0 %1569
    %v1571 = vsel %vm394, %v1568, 0
    %v1573 = vsel %vm394, %v1570, 0
    %1575 = vmatpush.xpose.msra.mxu0 0.0
    %1576 = vmatpush.xpose.msra.mxu0 0.0
    %1577 = vmatpush.xpose.msra.mxu0 0.0
    %1578 = vmatpush.xpose.msra.mxu0 0.0
    %1579 = vmatpush.xpose.msra.mxu0 0.0
    %1580 = vmatpush.xpose.msra.mxu0 0.0
    %1581 = vmatpush.xpose.msra.mxu0 0.0
    %1582 = vmatpush.xpose.msra.mxu0 0.0
    %1583 = vmatpush.xpose.msra.mxu0 0.0
    %1584 = vmatpush.xpose.msra.mxu0 0.0
    %1585 = vmatpush.xpose.msra.mxu0 0.0
    %1586 = vmatpush.xpose.msra.mxu0 0.0
    %1587 = vmatpush.xpose.msra.mxu0 0.0
    %1588 = vmatpush.xpose.msra.mxu0 0.0
    %1589 = vmatpush.xpose.msra.mxu0 0.0
    %1590 = vmatpush.xpose.msra.mxu0 %v1573
    %1591 = vmatmul.f32.gmra.mxu0 %v1571
    %v1592 = vpop.f32.mrf.mxu0
    %v1593 = vadd.f32 %v228, %v1592
    %1594 = vdwg.mxu0
    %v1595 = vsel %vm394, %v1565, -inf
    %1596 = vmax.xlane.f32.xlu0 %v1595
    %v1597 = vpop.xlane.xlu0 %1596
    %v1598 = vsel %vm394, %v1593, -inf
    %1599 = vmax.xlane.f32.xlu0 %v1598
    %v1600 = vpop.xlane.xlu0 %1599
    %v1601 = vsub.f32 %v1565, %v1597
    %v1602 = vsub.f32 %v1593, %v1600
    %v1603 = vmul.f32 %v1601, 1.442695
    %v1604 = vpow.pop %v1603
    %v1605 = vmul.f32 %v1602, 1.442695
    %v1606 = vpow.pop %v1605
    %v1607 = vsel %vm394, %v1604, 0.0
    %1608 = vadd.xlane.f32.xlu0 %v1607
    %v1609 = vpop.xlane.xlu0 %1608
    %v1610 = vsel %vm394, %v1606, 0.0
    %1611 = vadd.xlane.f32.xlu0 %v1610
    %v1612 = vpop.xlane.xlu0 %1611
    %v1613 = vrcp.pop %v1609
    %v1614 = vrcp.pop %v1612
    %v1615 = vmul.f32 %v1604, %v1613
    %v1616 = vmul.f32 %v1606, %v1614
    %1618 = vrot.lane.b32.xlu0 %v1371, 120
    %v1619 = vpop.permute.xlu0 %1618
    %v1622 = vsel %vm394, %v1615, 0
    %1624 = vmatpush.msra.mxu0 0.0
    %1625 = vmatpush.msra.mxu0 0.0
    %1626 = vmatpush.msra.mxu0 0.0
    %1627 = vmatpush.msra.mxu0 0.0
    %1628 = vmatpush.msra.mxu0 0.0
    %1629 = vmatpush.msra.mxu0 0.0
    %1630 = vmatpush.msra.mxu0 0.0
    %1631 = vmatpush.msra.mxu0 0.0
    %1632 = vmatpush.msra.mxu0 0.0
    %1633 = vmatpush.msra.mxu0 0.0
    %1634 = vmatpush.msra.mxu0 0.0
    %1635 = vmatpush.msra.mxu0 0.0
    %1636 = vmatpush.msra.mxu0 0.0
    %1637 = vmatpush.msra.mxu0 0.0
    %1638 = vmatpush.msra.mxu0 0.0
    %1639 = vmatpush.msra.mxu0 %v1619
    %1640 = vmatmul.f32.gmra.mxu0 %v1622
    %v1641 = vpop.f32.mrf.mxu0
    %v1642 = vadd.f32 0.0, %v1641
    %1643 = vdwg.mxu0
    %1645 = vrot.lane.b32.xlu0 %v1374, 120
    %v1646 = vpop.permute.xlu0 %1645
    %v1649 = vsel %vm394, %v1616, 0
    %1651 = vmatpush.msra.mxu0 0.0
    %1652 = vmatpush.msra.mxu0 0.0
    %1653 = vmatpush.msra.mxu0 0.0
    %1654 = vmatpush.msra.mxu0 0.0
    %1655 = vmatpush.msra.mxu0 0.0
    %1656 = vmatpush.msra.mxu0 0.0
    %1657 = vmatpush.msra.mxu0 0.0
    %1658 = vmatpush.msra.mxu0 0.0
    %1659 = vmatpush.msra.mxu0 0.0
    %1660 = vmatpush.msra.mxu0 0.0
    %1661 = vmatpush.msra.mxu0 0.0
    %1662 = vmatpush.msra.mxu0 0.0
    %1663 = vmatpush.msra.mxu0 0.0
    %1664 = vmatpush.msra.mxu0 0.0
    %1665 = vmatpush.msra.mxu0 0.0
    %1666 = vmatpush.msra.mxu0 %v1646
    %1667 = vmatmul.f32.gmra.mxu0 %v1649
    %v1668 = vpop.f32.mrf.mxu0
    %v1669 = vadd.f32 0.0, %v1668
    %1670 = vdwg.mxu0
    %v1672 = vsel %vm394, %v1642, 0
    %v1675 = vsel %vm394, %v1669, 0
    %1677 = vmatpush.msra.mxu0 0.0
    %1678 = vmatpush.msra.mxu0 0.0
    %1679 = vmatpush.msra.mxu0 0.0
    %1680 = vmatpush.msra.mxu0 0.0
    %1681 = vmatpush.msra.mxu0 0.0
    %1682 = vmatpush.msra.mxu0 0.0
    %1683 = vmatpush.msra.mxu0 0.0
    %1684 = vmatpush.msra.mxu0 0.0
    %1685 = vmatpush.msra.mxu0 0.0
    %1686 = vmatpush.msra.mxu0 0.0
    %1687 = vmatpush.msra.mxu0 0.0
    %1688 = vmatpush.msra.mxu0 0.0
    %1689 = vmatpush.msra.mxu0 0.0
    %1690 = vmatpush.msra.mxu0 0.0
    %1691 = vmatpush.msra.mxu0 0.0
    %1692 = vmatpush.msra.mxu0 %v1380
    %1693 = vmatmul.f32.gmra.mxu0 %v1672
    %v1694 = vpop.f32.mrf.mxu0
    %v1695 = vadd.f32 0.0, %v1694
    %1696 = vmatmul.f32.gmra.mxu0 %v1675
    %v1697 = vpop.f32.mrf.mxu0
    %v1698 = vadd.f32 0.0, %v1697
    %1699 = vdwg.mxu0
    %v1700 = vadd.f32 %v1537, %v1695
    %v1701 = vadd.f32 %v1538, %v1698
    %1702 = vrot.lane.b32.xlu0 %v1376, 112
    %v1703 = vpop.permute.xlu0 %1702
    %1704 = vrot.lane.b32.xlu0 %v1338, 112
    %v1705 = vpop.permute.xlu0 %1704
    %v1706 = vsel %vm394, %v1703, 0
    %v1708 = vsel %vm394, %v1705, 0
    %1710 = vmatpush.xpose.msra.mxu0 0.0
    %1711 = vmatpush.xpose.msra.mxu0 0.0
    %1712 = vmatpush.xpose.msra.mxu0 0.0
    %1713 = vmatpush.xpose.msra.mxu0 0.0
    %1714 = vmatpush.xpose.msra.mxu0 0.0
    %1715 = vmatpush.xpose.msra.mxu0 0.0
    %1716 = vmatpush.xpose.msra.mxu0 0.0
    %1717 = vmatpush.xpose.msra.mxu0 0.0
    %1718 = vmatpush.xpose.msra.mxu0 0.0
    %1719 = vmatpush.xpose.msra.mxu0 0.0
    %1720 = vmatpush.xpose.msra.mxu0 0.0
    %1721 = vmatpush.xpose.msra.mxu0 0.0
    %1722 = vmatpush.xpose.msra.mxu0 0.0
    %1723 = vmatpush.xpose.msra.mxu0 0.0
    %1724 = vmatpush.xpose.msra.mxu0 0.0
    %1725 = vmatpush.xpose.msra.mxu0 %v1708
    %1726 = vmatmul.f32.gmra.mxu0 %v1706
    %v1727 = vpop.f32.mrf.mxu0
    %v1728 = vadd.f32 %v228, %v1727
    %1729 = vdwg.mxu0
    %1730 = vrot.lane.b32.xlu0 %v1377, 112
    %v1731 = vpop.permute.xlu0 %1730
    %1732 = vrot.lane.b32.xlu0 %v1341, 112
    %v1733 = vpop.permute.xlu0 %1732
    %v1734 = vsel %vm394, %v1731, 0
    %v1736 = vsel %vm394, %v1733, 0
    %1738 = vmatpush.xpose.msra.mxu0 0.0
    %1739 = vmatpush.xpose.msra.mxu0 0.0
    %1740 = vmatpush.xpose.msra.mxu0 0.0
    %1741 = vmatpush.xpose.msra.mxu0 0.0
    %1742 = vmatpush.xpose.msra.mxu0 0.0
    %1743 = vmatpush.xpose.msra.mxu0 0.0
    %1744 = vmatpush.xpose.msra.mxu0 0.0
    %1745 = vmatpush.xpose.msra.mxu0 0.0
    %1746 = vmatpush.xpose.msra.mxu0 0.0
    %1747 = vmatpush.xpose.msra.mxu0 0.0
    %1748 = vmatpush.xpose.msra.mxu0 0.0
    %1749 = vmatpush.xpose.msra.mxu0 0.0
    %1750 = vmatpush.xpose.msra.mxu0 0.0
    %1751 = vmatpush.xpose.msra.mxu0 0.0
    %1752 = vmatpush.xpose.msra.mxu0 0.0
    %1753 = vmatpush.xpose.msra.mxu0 %v1736
    %1754 = vmatmul.f32.gmra.mxu0 %v1734
    %v1755 = vpop.f32.mrf.mxu0
    %v1756 = vadd.f32 %v228, %v1755
    %1757 = vdwg.mxu0
    %v1758 = vsel %vm394, %v1728, -inf
    %1759 = vmax.xlane.f32.xlu0 %v1758
    %v1760 = vpop.xlane.xlu0 %1759
    %v1761 = vsel %vm394, %v1756, -inf
    %1762 = vmax.xlane.f32.xlu0 %v1761
    %v1763 = vpop.xlane.xlu0 %1762
    %v1764 = vsub.f32 %v1728, %v1760
    %v1765 = vsub.f32 %v1756, %v1763
    %v1766 = vmul.f32 %v1764, 1.442695
    %v1767 = vpow.pop %v1766
    %v1768 = vmul.f32 %v1765, 1.442695
    %v1769 = vpow.pop %v1768
    %v1770 = vsel %vm394, %v1767, 0.0
    %1771 = vadd.xlane.f32.xlu0 %v1770
    %v1772 = vpop.xlane.xlu0 %1771
    %v1773 = vsel %vm394, %v1769, 0.0
    %1774 = vadd.xlane.f32.xlu0 %v1773
    %v1775 = vpop.xlane.xlu0 %1774
    %v1776 = vrcp.pop %v1772
    %v1777 = vrcp.pop %v1775
    %v1778 = vmul.f32 %v1767, %v1776
    %v1779 = vmul.f32 %v1769, %v1777
    %1780 = vrot.lane.b32.xlu0 %v1371, 112
    %v1781 = vpop.permute.xlu0 %1780
    %v1784 = vsel %vm394, %v1778, 0
    %1786 = vmatpush.msra.mxu0 0.0
    %1787 = vmatpush.msra.mxu0 0.0
    %1788 = vmatpush.msra.mxu0 0.0
    %1789 = vmatpush.msra.mxu0 0.0
    %1790 = vmatpush.msra.mxu0 0.0
    %1791 = vmatpush.msra.mxu0 0.0
    %1792 = vmatpush.msra.mxu0 0.0
    %1793 = vmatpush.msra.mxu0 0.0
    %1794 = vmatpush.msra.mxu0 0.0
    %1795 = vmatpush.msra.mxu0 0.0
    %1796 = vmatpush.msra.mxu0 0.0
    %1797 = vmatpush.msra.mxu0 0.0
    %1798 = vmatpush.msra.mxu0 0.0
    %1799 = vmatpush.msra.mxu0 0.0
    %1800 = vmatpush.msra.mxu0 0.0
    %1801 = vmatpush.msra.mxu0 %v1781
    %1802 = vmatmul.f32.gmra.mxu0 %v1784
    %v1803 = vpop.f32.mrf.mxu0
    %v1804 = vadd.f32 0.0, %v1803
    %1805 = vdwg.mxu0
    %1806 = vrot.lane.b32.xlu0 %v1374, 112
    %v1807 = vpop.permute.xlu0 %1806
    %v1810 = vsel %vm394, %v1779, 0
    %1812 = vmatpush.msra.mxu0 0.0
    %1813 = vmatpush.msra.mxu0 0.0
    %1814 = vmatpush.msra.mxu0 0.0
    %1815 = vmatpush.msra.mxu0 0.0
    %1816 = vmatpush.msra.mxu0 0.0
    %1817 = vmatpush.msra.mxu0 0.0
    %1818 = vmatpush.msra.mxu0 0.0
    %1819 = vmatpush.msra.mxu0 0.0
    %1820 = vmatpush.msra.mxu0 0.0
    %1821 = vmatpush.msra.mxu0 0.0
    %1822 = vmatpush.msra.mxu0 0.0
    %1823 = vmatpush.msra.mxu0 0.0
    %1824 = vmatpush.msra.mxu0 0.0
    %1825 = vmatpush.msra.mxu0 0.0
    %1826 = vmatpush.msra.mxu0 0.0
    %1827 = vmatpush.msra.mxu0 %v1807
    %1828 = vmatmul.f32.gmra.mxu0 %v1810
    %v1829 = vpop.f32.mrf.mxu0
    %v1830 = vadd.f32 0.0, %v1829
    %1831 = vdwg.mxu0
    %v1833 = vsel %vm394, %v1804, 0
    %v1836 = vsel %vm394, %v1830, 0
    %1838 = vmatpush.msra.mxu0 0.0
    %1839 = vmatpush.msra.mxu0 0.0
    %1840 = vmatpush.msra.mxu0 0.0
    %1841 = vmatpush.msra.mxu0 0.0
    %1842 = vmatpush.msra.mxu0 0.0
    %1843 = vmatpush.msra.mxu0 0.0
    %1844 = vmatpush.msra.mxu0 0.0
    %1845 = vmatpush.msra.mxu0 0.0
    %1846 = vmatpush.msra.mxu0 0.0
    %1847 = vmatpush.msra.mxu0 0.0
    %1848 = vmatpush.msra.mxu0 0.0
    %1849 = vmatpush.msra.mxu0 0.0
    %1850 = vmatpush.msra.mxu0 0.0
    %1851 = vmatpush.msra.mxu0 0.0
    %1852 = vmatpush.msra.mxu0 0.0
    %1853 = vmatpush.msra.mxu0 %v1381
    %1854 = vmatmul.f32.gmra.mxu0 %v1833
    %v1855 = vpop.f32.mrf.mxu0
    %v1856 = vadd.f32 0.0, %v1855
    %1857 = vmatmul.f32.gmra.mxu0 %v1836
    %v1858 = vpop.f32.mrf.mxu0
    %v1859 = vadd.f32 0.0, %v1858
    %1860 = vdwg.mxu0
    %v1861 = vadd.f32 %v1700, %v1856
    %v1862 = vadd.f32 %v1701, %v1859
    %1863 = vrot.lane.b32.xlu0 %v1376, 104
    %v1864 = vpop.permute.xlu0 %1863
    %1865 = vrot.lane.b32.xlu0 %v1338, 104
    %v1866 = vpop.permute.xlu0 %1865
    %v1867 = vsel %vm394, %v1864, 0
    %v1869 = vsel %vm394, %v1866, 0
    %1871 = vmatpush.xpose.msra.mxu0 0.0
    %1872 = vmatpush.xpose.msra.mxu0 0.0
    %1873 = vmatpush.xpose.msra.mxu0 0.0
    %1874 = vmatpush.xpose.msra.mxu0 0.0
    %1875 = vmatpush.xpose.msra.mxu0 0.0
    %1876 = vmatpush.xpose.msra.mxu0 0.0
    %1877 = vmatpush.xpose.msra.mxu0 0.0
    %1878 = vmatpush.xpose.msra.mxu0 0.0
    %1879 = vmatpush.xpose.msra.mxu0 0.0
    %1880 = vmatpush.xpose.msra.mxu0 0.0
    %1881 = vmatpush.xpose.msra.mxu0 0.0
    %1882 = vmatpush.xpose.msra.mxu0 0.0
    %1883 = vmatpush.xpose.msra.mxu0 0.0
    %1884 = vmatpush.xpose.msra.mxu0 0.0
    %1885 = vmatpush.xpose.msra.mxu0 0.0
    %1886 = vmatpush.xpose.msra.mxu0 %v1869
    %1887 = vmatmul.f32.gmra.mxu0 %v1867
    %v1888 = vpop.f32.mrf.mxu0
    %v1889 = vadd.f32 %v228, %v1888
    %1890 = vdwg.mxu0
    %1891 = vrot.lane.b32.xlu0 %v1377, 104
    %v1892 = vpop.permute.xlu0 %1891
    %1893 = vrot.lane.b32.xlu0 %v1341, 104
    %v1894 = vpop.permute.xlu0 %1893
    %v1895 = vsel %vm394, %v1892, 0
    %v1897 = vsel %vm394, %v1894, 0
    %1899 = vmatpush.xpose.msra.mxu0 0.0
    %1900 = vmatpush.xpose.msra.mxu0 0.0
    %1901 = vmatpush.xpose.msra.mxu0 0.0
    %1902 = vmatpush.xpose.msra.mxu0 0.0
    %1903 = vmatpush.xpose.msra.mxu0 0.0
    %1904 = vmatpush.xpose.msra.mxu0 0.0
    %1905 = vmatpush.xpose.msra.mxu0 0.0
    %1906 = vmatpush.xpose.msra.mxu0 0.0
    %1907 = vmatpush.xpose.msra.mxu0 0.0
    %1908 = vmatpush.xpose.msra.mxu0 0.0
    %1909 = vmatpush.xpose.msra.mxu0 0.0
    %1910 = vmatpush.xpose.msra.mxu0 0.0
    %1911 = vmatpush.xpose.msra.mxu0 0.0
    %1912 = vmatpush.xpose.msra.mxu0 0.0
    %1913 = vmatpush.xpose.msra.mxu0 0.0
    %1914 = vmatpush.xpose.msra.mxu0 %v1897
    %1915 = vmatmul.f32.gmra.mxu0 %v1895
    %v1916 = vpop.f32.mrf.mxu0
    %v1917 = vadd.f32 %v228, %v1916
    %1918 = vdwg.mxu0
    %v1919 = vsel %vm394, %v1889, -inf
    %1920 = vmax.xlane.f32.xlu0 %v1919
    %v1921 = vpop.xlane.xlu0 %1920
    %v1922 = vsel %vm394, %v1917, -inf
    %1923 = vmax.xlane.f32.xlu0 %v1922
    %v1924 = vpop.xlane.xlu0 %1923
    %v1925 = vsub.f32 %v1889, %v1921
    %v1926 = vsub.f32 %v1917, %v1924
    %v1927 = vmul.f32 %v1925, 1.442695
    %v1928 = vpow.pop %v1927
    %v1929 = vmul.f32 %v1926, 1.442695
    %v1930 = vpow.pop %v1929
    %v1931 = vsel %vm394, %v1928, 0.0
    %1932 = vadd.xlane.f32.xlu0 %v1931
    %v1933 = vpop.xlane.xlu0 %1932
    %v1934 = vsel %vm394, %v1930, 0.0
    %1935 = vadd.xlane.f32.xlu0 %v1934
    %v1936 = vpop.xlane.xlu0 %1935
    %v1937 = vrcp.pop %v1933
    %v1938 = vrcp.pop %v1936
    %v1939 = vmul.f32 %v1928, %v1937
    %v1940 = vmul.f32 %v1930, %v1938
    %1941 = vrot.lane.b32.xlu0 %v1371, 104
    %v1942 = vpop.permute.xlu0 %1941
    %v1945 = vsel %vm394, %v1939, 0
    %1947 = vmatpush.msra.mxu0 0.0
    %1948 = vmatpush.msra.mxu0 0.0
    %1949 = vmatpush.msra.mxu0 0.0
    %1950 = vmatpush.msra.mxu0 0.0
    %1951 = vmatpush.msra.mxu0 0.0
    %1952 = vmatpush.msra.mxu0 0.0
    %1953 = vmatpush.msra.mxu0 0.0
    %1954 = vmatpush.msra.mxu0 0.0
    %1955 = vmatpush.msra.mxu0 0.0
    %1956 = vmatpush.msra.mxu0 0.0
    %1957 = vmatpush.msra.mxu0 0.0
    %1958 = vmatpush.msra.mxu0 0.0
    %1959 = vmatpush.msra.mxu0 0.0
    %1960 = vmatpush.msra.mxu0 0.0
    %1961 = vmatpush.msra.mxu0 0.0
    %1962 = vmatpush.msra.mxu0 %v1942
    %1963 = vmatmul.f32.gmra.mxu0 %v1945
    %v1964 = vpop.f32.mrf.mxu0
    %v1965 = vadd.f32 0.0, %v1964
    %1966 = vdwg.mxu0
    %1967 = vrot.lane.b32.xlu0 %v1374, 104
    %v1968 = vpop.permute.xlu0 %1967
    %v1971 = vsel %vm394, %v1940, 0
    %1973 = vmatpush.msra.mxu0 0.0
    %1974 = vmatpush.msra.mxu0 0.0
    %1975 = vmatpush.msra.mxu0 0.0
    %1976 = vmatpush.msra.mxu0 0.0
    %1977 = vmatpush.msra.mxu0 0.0
    %1978 = vmatpush.msra.mxu0 0.0
    %1979 = vmatpush.msra.mxu0 0.0
    %1980 = vmatpush.msra.mxu0 0.0
    %1981 = vmatpush.msra.mxu0 0.0
    %1982 = vmatpush.msra.mxu0 0.0
    %1983 = vmatpush.msra.mxu0 0.0
    %1984 = vmatpush.msra.mxu0 0.0
    %1985 = vmatpush.msra.mxu0 0.0
    %1986 = vmatpush.msra.mxu0 0.0
    %1987 = vmatpush.msra.mxu0 0.0
    %1988 = vmatpush.msra.mxu0 %v1968
    %1989 = vmatmul.f32.gmra.mxu0 %v1971
    %v1990 = vpop.f32.mrf.mxu0
    %v1991 = vadd.f32 0.0, %v1990
    %1992 = vdwg.mxu0
    %v1994 = vsel %vm394, %v1965, 0
    %v1997 = vsel %vm394, %v1991, 0
    %1999 = vmatpush.msra.mxu0 0.0
    %2000 = vmatpush.msra.mxu0 0.0
    %2001 = vmatpush.msra.mxu0 0.0
    %2002 = vmatpush.msra.mxu0 0.0
    %2003 = vmatpush.msra.mxu0 0.0
    %2004 = vmatpush.msra.mxu0 0.0
    %2005 = vmatpush.msra.mxu0 0.0
    %2006 = vmatpush.msra.mxu0 0.0
    %2007 = vmatpush.msra.mxu0 0.0
    %2008 = vmatpush.msra.mxu0 0.0
    %2009 = vmatpush.msra.mxu0 0.0
    %2010 = vmatpush.msra.mxu0 0.0
    %2011 = vmatpush.msra.mxu0 0.0
    %2012 = vmatpush.msra.mxu0 0.0
    %2013 = vmatpush.msra.mxu0 0.0
    %2014 = vmatpush.msra.mxu0 %v1382
    %2015 = vmatmul.f32.gmra.mxu0 %v1994
    %v2016 = vpop.f32.mrf.mxu0
    %v2017 = vadd.f32 0.0, %v2016
    %2018 = vmatmul.f32.gmra.mxu0 %v1997
    %v2019 = vpop.f32.mrf.mxu0
    %v2020 = vadd.f32 0.0, %v2019
    %2021 = vdwg.mxu0
    %v2022 = vadd.f32 %v1861, %v2017
    %v2023 = vadd.f32 %v1862, %v2020
    %v2024 = vadd.f32 %v1211, %v2022
    %v2025 = vadd.f32 %v1212, %v2023
    %s2026 = scalar_lea.vmem %s15, 1
    %v2027 = vld [vmem:[%s2026] sm:$0x1]
    %s2028 = scalar_lea.vmem %s16, 1
    %v2029 = vld [vmem:[%s2028] sm:$0x1]
    %v2030 = vsel %vm163, %v2024, 0.0
    %2031 = vadd.xlane.f32.xlu0 %v2030
    %v2032 = vpop.xlane.xlu0 %2031
    %v2033 = vsel %vm163, %v2025, 0.0
    %2034 = vadd.xlane.f32.xlu0 %v2033
    %v2035 = vpop.xlane.xlu0 %2034
    %v2036 = vmul.f32 %v2032, %v176
    %v2037 = vmul.f32 %v2035, %v176
    %v2038 = vsub.f32 %v2024, %v2036
    %v2039 = vsub.f32 %v2025, %v2037
    %v2040 = vmul.f32 %v2038, %v2038
    %v2041 = vmul.f32 %v2039, %v2039
    %v2042 = vsel %vm163, %v2040, 0.0
    %2043 = vadd.xlane.f32.xlu0 %v2042
    %v2044 = vpop.xlane.xlu0 %2043
    %v2045 = vsel %vm163, %v2041, 0.0
    %2046 = vadd.xlane.f32.xlu0 %v2045
    %v2047 = vpop.xlane.xlu0 %2046
    %v2048 = vmul.f32 %v2044, %v176
    %v2049 = vmul.f32 %v2047, %v176
    %v2050 = vadd.f32 %v2048, 1e-05
    %v2051 = vadd.f32 %v2049, 1e-05
    %v2052 = vrsqrt.pop %v2050
    %v2053 = vmul.f32 %v2052, %v2050
    %v2054 = vmul.f32 %v2053, %v2052
    %v2055 = vmul.f32 0.5, %v2054
    %v2056 = vsub.f32 1.5, %v2055
    %v2057 = vmul.f32 %v2052, %v2056
    %vm2058 = vweird.f32 %v2050
    %vm2059 = vweird.f32 %v2052
    %vm2060 = vmor %vm2058, %vm2059
    %v2061 = vsel %vm2060, %v2052, %v2057
    %v2062 = vrsqrt.pop %v2051
    %v2063 = vmul.f32 %v2062, %v2051
    %v2064 = vmul.f32 %v2063, %v2062
    %v2065 = vmul.f32 0.5, %v2064
    %v2066 = vsub.f32 1.5, %v2065
    %v2067 = vmul.f32 %v2062, %v2066
    %vm2068 = vweird.f32 %v2051
    %vm2069 = vweird.f32 %v2062
    %vm2070 = vmor %vm2068, %vm2069
    %v2071 = vsel %vm2070, %v2062, %v2067
    %v2072 = vmul.f32 %v2038, %v2061
    %v2073 = vmul.f32 %v2039, %v2071
    %v2075 = vperm.slane %v2027, 0
    %v2077 = vmul.f32 %v2072, %v2075
    %v2078 = vmul.f32 %v2073, %v2075
    %v2080 = vperm.slane %v2029, 0
    %v2082 = vadd.f32 %v2077, %v2080
    %v2083 = vadd.f32 %v2078, %v2080
    %s2084 = scalar_lea.vmem %s17, 32
    %v2085 = vld [vmem:[%s2084] sm:$0xff]
    %v2086 = vld [vmem:[%s2084 + $0x8] sm:$0xff]
    %v2087 = vld [vmem:[%s2084 + $0x10] sm:$0xff]
    %v2088 = vld [vmem:[%s2084 + $0x18] sm:$0xff]
    %s2089 = scalar_lea.vmem %s18, 1
    %v2090 = vld [vmem:[%s2089] sm:$0x1]
    %v2092 = vperm.slane %v2090, 0
    %v2095 = vsel %vm163, %v2082, 0
    %v2098 = vsel %vm163, %v2083, 0
    %2100 = vmatpush.msra.mxu0 0.0
    %2101 = vmatpush.msra.mxu0 0.0
    %2102 = vmatpush.msra.mxu0 0.0
    %2103 = vmatpush.msra.mxu0 0.0
    %2104 = vmatpush.msra.mxu0 0.0
    %2105 = vmatpush.msra.mxu0 0.0
    %2106 = vmatpush.msra.mxu0 0.0
    %2107 = vmatpush.msra.mxu0 0.0
    %2108 = vmatpush.msra.mxu0 0.0
    %2109 = vmatpush.msra.mxu0 0.0
    %2110 = vmatpush.msra.mxu0 0.0
    %2111 = vmatpush.msra.mxu0 0.0
    %2112 = vmatpush.msra.mxu0 %v2088
    %2113 = vmatpush.msra.mxu0 %v2087
    %2114 = vmatpush.msra.mxu0 %v2086
    %2115 = vmatpush.msra.mxu0 %v2085
    %2116 = vmatmul.f32.gmra.mxu0 %v2095
    %v2117 = vpop.f32.mrf.mxu0
    %v2118 = vadd.f32 %v2092, %v2117
    %2119 = vmatmul.f32.gmra.mxu0 %v2098
    %v2120 = vpop.f32.mrf.mxu0
    %v2121 = vadd.f32 %v2092, %v2120
    %2122 = vdwg.mxu0
    %v2123 = vmul.f32 %v2118, 1.702
    %v2124 = vmul.f32 %v2121, 1.702
    %v2125 = vxor.u32 %v2123, 2147483648
    %v2126 = vxor.u32 %v2124, 2147483648
    %v2127 = vmul.f32 %v2125, 1.442695
    %v2128 = vpow.pop %v2127
    %v2129 = vmul.f32 %v2126, 1.442695
    %v2130 = vpow.pop %v2129
    %v2131 = vadd.f32 %v2128, 1.0
    %v2132 = vadd.f32 %v2130, 1.0
    %v2133 = vrcp.pop %v2131
    %v2134 = vmul.f32 %v2131, %v2133
    %v2135 = vsub.f32 1.0, %v2134
    %v2136 = vmul.f32 %v2133, %v2135
    %v2137 = vadd.f32 %v2133, %v2136
    %vm2138 = vweird.f32 %v2131
    %vm2139 = vweird.f32 %v2133
    %vm2140 = vmor %vm2138, %vm2139
    %v2141 = vsel %vm2140, %v2133, %v2137
    %v2142 = vand.u32 2147483647, %v2131
    %vm2143 = vcmp.eq.f32.partialorder %v2142, 8.507059e+37
    %v2144 = vand.u32 %v2131, 2147483648
    %v2145 = vor.u32 1.1754944e-38, %v2144
    %v2146 = vsel %vm2143, %v2145, %v2141
    %v2147 = vmul.f32 1.0, %v2146
    %v2148 = vrcp.pop %v2132
    %v2149 = vmul.f32 %v2132, %v2148
    %v2150 = vsub.f32 1.0, %v2149
    %v2151 = vmul.f32 %v2148, %v2150
    %v2152 = vadd.f32 %v2148, %v2151
    %vm2153 = vweird.f32 %v2132
    %vm2154 = vweird.f32 %v2148
    %vm2155 = vmor %vm2153, %vm2154
    %v2156 = vsel %vm2155, %v2148, %v2152
    %v2157 = vand.u32 2147483647, %v2132
    %vm2158 = vcmp.eq.f32.partialorder %v2157, 8.507059e+37
    %v2159 = vand.u32 %v2132, 2147483648
    %v2160 = vor.u32 1.1754944e-38, %v2159
    %v2161 = vsel %vm2158, %v2160, %v2156
    %v2162 = vmul.f32 1.0, %v2161
    %v2163 = vmul.f32 %v2118, %v2147
    %v2164 = vmul.f32 %v2121, %v2162
    %s2165 = scalar_lea.vmem %s19, 128
    %v2166 = vld [vmem:[%s2165] sm:$0xff]
    %v2167 = vld [vmem:[%s2165 + $0x8] sm:$0xff]
    %v2168 = vld [vmem:[%s2165 + $0x10] sm:$0xff]
    %v2169 = vld [vmem:[%s2165 + $0x18] sm:$0xff]
    %v2170 = vld [vmem:[%s2165 + $0x20] sm:$0xff]
    %v2171 = vld [vmem:[%s2165 + $0x28] sm:$0xff]
    %v2172 = vld [vmem:[%s2165 + $0x30] sm:$0xff]
    %v2173 = vld [vmem:[%s2165 + $0x38] sm:$0xff]
    %v2174 = vld [vmem:[%s2165 + $0x40] sm:$0xff]
    %v2175 = vld [vmem:[%s2165 + $0x48] sm:$0xff]
    %v2176 = vld [vmem:[%s2165 + $0x50] sm:$0xff]
    %v2177 = vld [vmem:[%s2165 + $0x58] sm:$0xff]
    %v2178 = vld [vmem:[%s2165 + $0x60] sm:$0xff]
    %v2179 = vld [vmem:[%s2165 + $0x68] sm:$0xff]
    %v2180 = vld [vmem:[%s2165 + $0x70] sm:$0xff]
    %v2181 = vld [vmem:[%s2165 + $0x78] sm:$0xff]
    %s2182 = scalar_lea.vmem %s20, 1
    %v2183 = vld [vmem:[%s2182] sm:$0x1]
    %v2185 = vperm.slane %v2183, 0
    %2187 = vmatpush.msra.mxu0 %v2181
    %2188 = vmatpush.msra.mxu0 %v2180
    %2189 = vmatpush.msra.mxu0 %v2179
    %2190 = vmatpush.msra.mxu0 %v2178
    %2191 = vmatpush.msra.mxu0 %v2177
    %2192 = vmatpush.msra.mxu0 %v2176
    %2193 = vmatpush.msra.mxu0 %v2175
    %2194 = vmatpush.msra.mxu0 %v2174
    %2195 = vmatpush.msra.mxu0 %v2173
    %2196 = vmatpush.msra.mxu0 %v2172
    %2197 = vmatpush.msra.mxu0 %v2171
    %2198 = vmatpush.msra.mxu0 %v2170
    %2199 = vmatpush.msra.mxu0 %v2169
    %2200 = vmatpush.msra.mxu0 %v2168
    %2201 = vmatpush.msra.mxu0 %v2167
    %2202 = vmatpush.msra.mxu0 %v2166
    %2203 = vmatmul.f32.gmra.mxu0 %v2163
    %v2204 = vpop.f32.mrf.mxu0
    %v2205 = vadd.f32 %v2185, %v2204
    %2206 = vmatmul.f32.gmra.mxu0 %v2164
    %v2207 = vpop.f32.mrf.mxu0
    %v2208 = vadd.f32 %v2185, %v2207
    %2209 = vdwg.mxu0
    %v2210 = vadd.f32 %v2024, %v2205
    %v2211 = vadd.f32 %v2025, %v2208
    %v2212 = vld [vmem:[%s21] sm:$0x1]
    %v2213 = vld [vmem:[%s22] sm:$0x1]
    %v2216 = vrot.slane %v2211, 7
    %vm2217 = vcmask 1041409
    %v2218 = vsel %vm2217, %v2216, %v2210
    %vm2220 = vcmask 254976
    %v2221 = vsel %vm2220, %v2218, 0.0
    %2222 = vadd.xlane.f32.xlu0 %v2221
    %v2223 = vpop.xlane.xlu0 %2222
    %v2224 = vmul.f32 %v2223, %v176
    %v2226 = vrot.slane %v2224, 1
    %v2229 = vsub.f32 %v2210, %v2224
    %v2230 = vsub.f32 %v2211, %v2226
    %v2231 = vmul.f32 %v2229, %v2229
    %v2232 = vmul.f32 %v2230, %v2230
    %v2235 = vrot.slane %v2232, 7
    %v2236 = vsel %vm2217, %v2235, %v2231
    %v2238 = vsel %vm2220, %v2236, 0.0
    %2239 = vadd.xlane.f32.xlu0 %v2238
    %v2240 = vpop.xlane.xlu0 %2239
    %v2241 = vmul.f32 %v2240, %v176
    %v2242 = vadd.f32 %v2241, 1e-05
    %v2243 = vrsqrt.pop %v2242
    %v2244 = vmul.f32 %v2243, %v2242
    %v2245 = vmul.f32 %v2244, %v2243
    %v2246 = vmul.f32 0.5, %v2245
    %v2247 = vsub.f32 1.5, %v2246
    %v2248 = vmul.f32 %v2243, %v2247
    %vm2249 = vweird.f32 %v2242
    %vm2250 = vweird.f32 %v2243
    %vm2251 = vmor %vm2249, %vm2250
    %v2252 = vsel %vm2251, %v2243, %v2248
    %v2254 = vrot.slane %v2252, 1
    %v2257 = vmul.f32 %v2229, %v2252
    %v2258 = vmul.f32 %v2230, %v2254
    %v2260 = vperm.slane %v2212, 0
    %v2262 = vmul.f32 %v2257, %v2260
    %v2263 = vmul.f32 %v2258, %v2260
    %v2265 = vperm.slane %v2213, 0
    %v2267 = vadd.f32 %v2262, %v2265
    %v2268 = vadd.f32 %v2263, %v2265
    %v2269 = vld [vmem:[%s23] sm:$0xff]
    %v2270 = vld [vmem:[%s23 + $0x8] sm:$0xff]
    %v2271 = vld [vmem:[%s23 + $0x10] sm:$0xff]
    %v2272 = vld [vmem:[%s23 + $0x18] sm:$0xff]
    %v2275 = vrot.slane %v2268, 7
    %v2276 = vsel %vm2217, %v2275, %v2267
    %v2277 = vsel %vm163, %v2276, 0
    %2279 = vmatpush.msra.mxu0 0.0
    %2280 = vmatpush.msra.mxu0 0.0
    %2281 = vmatpush.msra.mxu0 0.0
    %2282 = vmatpush.msra.mxu0 0.0
    %2283 = vmatpush.msra.mxu0 0.0
    %2284 = vmatpush.msra.mxu0 0.0
    %2285 = vmatpush.msra.mxu0 0.0
    %2286 = vmatpush.msra.mxu0 0.0
    %2287 = vmatpush.msra.mxu0 0.0
    %2288 = vmatpush.msra.mxu0 0.0
    %2289 = vmatpush.msra.mxu0 0.0
    %2290 = vmatpush.msra.mxu0 0.0
    %2291 = vmatpush.msra.mxu0 %v2272
    %2292 = vmatpush.msra.mxu0 %v2271
    %2293 = vmatpush.msra.mxu0 %v2270
    %2294 = vmatpush.msra.mxu0 %v2269
    %2295 = vmatmul.f32.gmra.mxu0 %v2277
    %v2296 = vpop.f32.mrf.mxu0
    %v2297 = vadd.f32 0.0, %v2296
    %2298 = vdwg.mxu0
    %vm2299 = vcmask 123904
    %2300 = vst.msk [vmem:[#allocation2] sm:$0x3] %vm2299, %v2297
    // Predicated region
    $region98: #{clip_get_image_features.1} parent=1 // pred_check
      _
    $region99: #{clip_get_image_features.1} parent=1 // pred_check_branch
      %2302 = sbr.rel (0) target = $region101
    $region100: #{clip_get_image_features.1} parent=1 // pred_region
      %2304 = vsyncadd [#allocation3], 0
      %s2306 = sshll.u32 [#allocation2], 4
      %s2307 = int_to_ptr.vmem [resolvable:$true] %s2306
      %s2308 = sshll.u32 %s24, 4
      %s2309 = int_to_ptr.hbm [resolvable:$true] %s2308
      %2311 = dma.vmem_to_hbm [thread:$0]  %s2307, 32, %s2309, [#allocation3]
    $region101: #{clip_get_image_features.1} parent=1 // pred_fallthru
      _
    // Predicated region
    $region102: #{clip_get_image_features.1} parent=1 // pred_check
      _
    $region103: #{clip_get_image_features.1} parent=1 // pred_check_branch
      %2313 = sbr.rel (0) target = $region105
    $region104: #{clip_get_image_features.1} parent=1 // pred_region
      %2315 = dma.done [#allocation3], 32
    $region105: #{clip_get_image_features.1} parent=1 // pred_fallthru
      _
    %2316 = vsyncpa [#allocation3], 1

</llo_original>
